<compile_context>
chip_gen: v7x
topology: tpu7x:2x2x1
jax: 0.10.0
libtpu: 0.0.40
codegen_flags: <defaults>
</compile_context>

<pallas_src>
import functools

import jax
import jax.numpy as jnp
from jax.experimental import pallas as pl
from jax.experimental.pallas import tpu as pltpu

LN_EPS = 1e-5
BN_EPS = 1e-5


def _rup128(d):
    return ((d + 127) // 128) * 128


def _pad2(a, rows, cols):
    return jnp.pad(a, ((0, rows - a.shape[0]), (0, cols - a.shape[1])))


# ------------------------------ fused kernel ------------------------------- #

def _gin_fused_kernel(
        row_ref, col_ref, x_ref, e_ref,
        node_w_ref, edge_w_ref, emb_vecs_ref,
        w1_ref, w2_ref, w3_ref, lvec_ref,
        pool_w1_ref, pool_w2_ref, out_w_ref,
        head_b1_ref, head_vecs_ref,
        o_ref,
        *, n_layers, h_true, out_true):
    hp = node_w_ref.shape[1]
    op = out_w_ref.shape[1]
    n_nodes = x_ref.shape[0]
    e_cnt = e_ref.shape[0]
    inv_h = 1.0 / h_true
    inv_o = 1.0 / out_true
    bf16 = jnp.bfloat16
    f32 = jnp.float32

    # Lane-validity masks over the padded feature axes (built once per graph).
    mask_h = (jax.lax.broadcasted_iota(jnp.int32, (1, hp), 1) < h_true
              ).astype(f32)
    mask_o = (jax.lax.broadcasted_iota(jnp.int32, (1, op), 1) < out_true
              ).astype(f32)

    def ln_relu(y, gamma, beta, mask, inv_d):
        # LayerNorm over the true feature width; padded columns of y are exactly
        # zero (zero-padded weights/bias) and gamma/beta are zero-padded, so the
        # padded columns stay zero after normalisation.
        mean = jnp.sum(y, axis=-1, keepdims=True) * inv_d
        diff = (y - mean) * mask
        var = jnp.sum(diff * diff, axis=-1, keepdims=True) * inv_d
        z = diff * jax.lax.rsqrt(var + LN_EPS) * gamma + beta
        return jnp.maximum(z, 0.0)

    emb = emb_vecs_ref[...]                                   # (6, HP) f32
    node_b, node_g, node_bt = emb[0:1], emb[1:2], emb[2:3]
    edge_b, edge_g, edge_bt = emb[3:4], emb[4:5], emb[5:6]

    # ---- node / edge embeddings (Linear + LayerNorm + ReLU) ----
    x = ln_relu(jnp.dot(x_ref[...].astype(bf16), node_w_ref[...],
                        preferred_element_type=f32) + node_b,
                node_g, node_bt, mask_h, inv_h)               # (N, HP) f32
    e = ln_relu(jnp.dot(e_ref[...].astype(bf16), edge_w_ref[...],
                        preferred_element_type=f32) + edge_b,
                edge_g, edge_bt, mask_h, inv_h)               # (E, HP) f32
    e16 = e.astype(bf16)                                      # reused every layer

    # ---- one-hot gather/scatter matrices, built ONCE and reused per layer ----
    # gather:  oh_row[e, n]  = (row[e] == n)  ->  x_j = oh_row @ x
    oh_row = (jax.lax.broadcasted_iota(jnp.int32, (e_cnt, n_nodes), 1)
              == row_ref[...]).astype(bf16)                   # (E, N)
    # scatter (pre-transposed): oh_col_t[n, e] = (n == col[e])
    #   -> scatter_add = oh_col_t @ m
    oh_col_t = (jax.lax.broadcasted_iota(jnp.int32, (n_nodes, e_cnt), 0)
                == col_ref[...]).astype(bf16)                 # (N, E)

    layer_sum = jnp.zeros((n_nodes, hp), f32)
    for l in range(n_layers):
        vecs = lvec_ref[l]                                    # (12, HP) f32
        b1, g1, bt1 = vecs[0:1], vecs[1:2], vecs[2:3]
        b2, g2, bt2 = vecs[3:4], vecs[4:5], vecs[5:6]
        b3 = vecs[6:7]
        bn_rm, bn_rv = vecs[7:8], vecs[8:9]
        bn_w, bn_b = vecs[9:10], vecs[10:11]
        eps_row = vecs[11:12]                                 # learnable eps, broadcast

        # edge_node_mlp: Linear(concat([x[row], edge_attr])) + LayerNorm + ReLU.
        x_j = jnp.dot(oh_row, x.astype(bf16),
                      preferred_element_type=f32).astype(bf16)       # (E, HP)
        xe = jnp.concatenate([x_j, e16], axis=-1)                    # (E, 2HP)
        y = jnp.dot(xe, w1_ref[l], preferred_element_type=f32) + b1
        m = ln_relu(y, g1, bt1, mask_h, inv_h)                       # (E, HP) f32

        # (1 + eps) * x + scatter_add(m, col, dim_size=N)
        agg = (1.0 + eps_row) * x + jnp.dot(
            oh_col_t, m.astype(bf16), preferred_element_type=f32)    # (N, HP)

        # mlp: Linear + LayerNorm + ReLU + Linear
        h = ln_relu(jnp.dot(agg.astype(bf16), w2_ref[l],
                            preferred_element_type=f32) + b2,
                    g2, bt2, mask_h, inv_h)
        mlp_out = jnp.dot(h.astype(bf16), w3_ref[l],
                          preferred_element_type=f32) + b3

        # two residual additions (+x in GINLayer, +x in ResidualGINLayer),
        # eval-mode BatchNorm1d, then the outer ReLU (Dropout = identity).
        t = mlp_out + 2.0 * x
        t = (t - bn_rm) * jax.lax.rsqrt(bn_rv + BN_EPS) * bn_w + bn_b
        x = jnp.maximum(t, 0.0)
        layer_sum = layer_sum + x                             # stack(...).sum(0)

    # ---- readout: scatter_mean (batch == zeros) + pool MLP + out layer ----
    hv = head_vecs_ref[...]                                   # (4, OP) f32
    pool_b2, out_b, out_g, out_bt = hv[0:1], hv[1:2], hv[2:3], hv[3:4]

    pooled = jnp.sum(layer_sum, axis=0, keepdims=True) * (1.0 / n_nodes)  # (1, HP)
    g1h = jnp.maximum(
        jnp.dot(pooled.astype(jnp.bfloat16), pool_w1_ref[...],
                preferred_element_type=f32) + head_b1_ref[...], 0.0)      # (1, 2HP)
    g2 = jnp.dot(g1h.astype(jnp.bfloat16), pool_w2_ref[...],
                 preferred_element_type=f32) + pool_b2                    # (1, OP)
    out = ln_relu(jnp.dot(g2.astype(jnp.bfloat16), out_w_ref[...],
                          preferred_element_type=f32) + out_b,
                  out_g, out_bt, mask_o, inv_o)                           # (1, OP)
    o_ref[...] = out.astype(o_ref.dtype)


# ------------------------------ parameters --------------------------------- #

def _uniform_linear(key, d_in, d_out):
    k1, k2 = jax.random.split(key)
    lim = 1.0 / (d_in ** 0.5)
    w = jax.random.uniform(k1, (d_in, d_out), jnp.float32, -lim, lim)
    b = jax.random.uniform(k2, (1, d_out), jnp.float32, -lim, lim)
    return w, b


def _ones_padded(d_true, d_pad):
    return jnp.pad(jnp.ones((1, d_true), jnp.float32),
                   ((0, 0), (0, d_pad - d_true)))


def init_params(key, atom_dim, bond_dim, hidden, out_dim, n_layers=5):
    ap, bp, hp = _rup128(atom_dim), _rup128(bond_dim), _rup128(hidden)
    h2p, op = _rup128(2 * hidden), _rup128(out_dim)
    keys = iter(jax.random.split(key, 8 + 3 * n_layers))
    bf16 = jnp.bfloat16
    p = {"dims": {"atom": atom_dim, "bond": bond_dim, "hidden": hidden,
                  "out": out_dim, "n_layers": n_layers,
                  "ap": ap, "bp": bp, "hp": hp, "h2p": h2p, "op": op}}

    ones_h = _ones_padded(hidden, hp)
    zeros_h = jnp.zeros((1, hp), jnp.float32)

    # Embedding Linears (weights bf16, affine/bias packed in one f32 tensor).
    nw, nb = _uniform_linear(next(keys), atom_dim, hidden)
    ew, eb = _uniform_linear(next(keys), bond_dim, hidden)
    p["node_w"] = _pad2(nw, ap, hp).astype(bf16)
    p["edge_w"] = _pad2(ew, bp, hp).astype(bf16)
    p["emb_vecs"] = jnp.concatenate(
        [_pad2(nb, 1, hp), ones_h, zeros_h,       # node: bias, LN gamma, LN beta
         _pad2(eb, 1, hp), ones_h, zeros_h],      # edge: bias, LN gamma, LN beta
        axis=0)                                   # (6, HP)

    # Per-layer weights (stacked, bf16) and packed per-layer vectors (f32).
    w1_l, w2_l, w3_l, vec_l = [], [], [], []
    for _ in range(n_layers):
        # edge_node_mlp Linear (2H -> H).  Rows 0:H act on x_j (cols 0:HP of the
        # concatenated input), rows HP:HP+H act on edge_attr (cols HP:2HP).
        w, b1 = _uniform_linear(next(keys), 2 * hidden, hidden)
        w1p = jnp.zeros((2 * hp, hp), jnp.float32)
        w1p = w1p.at[0:hidden, 0:hidden].set(w[:hidden])
        w1p = w1p.at[hp:hp + hidden, 0:hidden].set(w[hidden:])
        w1_l.append(w1p.astype(bf16))

        w, b2 = _uniform_linear(next(keys), hidden, hidden)   # mlp Linear 1
        w2_l.append(_pad2(w, hp, hp).astype(bf16))
        w, b3 = _uniform_linear(next(keys), hidden, hidden)   # mlp Linear 2
        w3_l.append(_pad2(w, hp, hp).astype(bf16))

        vec_l.append(jnp.concatenate(
            [_pad2(b1, 1, hp), ones_h, zeros_h,    # edge-mlp bias, LN gamma, LN beta
             _pad2(b2, 1, hp), ones_h, zeros_h,    # mlp-1 bias,   LN gamma, LN beta
             _pad2(b3, 1, hp),                     # mlp-2 bias
             zeros_h, jnp.ones((1, hp), jnp.float32),   # BN running mean / var
             ones_h, zeros_h,                      # BN weight / bias
             jnp.zeros((1, hp), jnp.float32)],     # eps row (learnable eps = 0)
            axis=0))                               # (12, HP)

    p["w1"] = jnp.stack(w1_l)                      # (L, 2HP, HP) bf16
    p["w2"] = jnp.stack(w2_l)                      # (L, HP, HP)  bf16
    p["w3"] = jnp.stack(w3_l)                      # (L, HP, HP)  bf16
    p["layer_vecs"] = jnp.stack(vec_l)             # (L, 12, HP)  f32

    # Readout head.
    w, b = _uniform_linear(next(keys), hidden, 2 * hidden)
    p["pool_w1"] = _pad2(w, hp, h2p).astype(bf16)
    p["head_b1"] = _pad2(b, 1, h2p)                # (1, 2HP) f32
    w, pb2 = _uniform_linear(next(keys), 2 * hidden, out_dim)
    p["pool_w2"] = _pad2(w, h2p, op).astype(bf16)
    w, ob = _uniform_linear(next(keys), out_dim, out_dim)
    p["out_w"] = _pad2(w, op, op).astype(bf16)
    p["head_vecs"] = jnp.concatenate(
        [_pad2(pb2, 1, op), _pad2(ob, 1, op),
         _ones_padded(out_dim, op), jnp.zeros((1, op), jnp.float32)],
        axis=0)                                    # (4, OP) f32
    return p


# -------------------------------- forward ---------------------------------- #

def _per_graph_spec(tail):
    nd = len(tail)
    return pl.BlockSpec((None,) + tuple(tail),
                        lambda g, _nd=nd: (g,) + (0,) * _nd)


def _resident_spec(arr):
    nd = arr.ndim
    return pl.BlockSpec(arr.shape, lambda g, _nd=nd: (0,) * _nd)


def gin_forward(params, x, edge_index, edge_attr):
    """x: (G, N, atom) | (N, atom); edge_index: (G, 2, E) | (2, E);
    edge_attr: (G, E, bond) | (E, bond).  Returns (G, out) | (1, out)."""
    d = params["dims"]
    single = (x.ndim == 2)
    if single:
        x, edge_index, edge_attr = x[None], edge_index[None], edge_attr[None]
    G, N, _ = x.shape
    E = edge_attr.shape[1]
    assert N % 8 == 0 and E % 8 == 0, "node / edge counts must be multiples of 8"

    row = edge_index[:, 0].astype(jnp.int32).reshape(G, E, 1)   # gather index
    col = edge_index[:, 1].astype(jnp.int32).reshape(G, 1, E)   # scatter index (lane-dense)
    xp = jnp.pad(x.astype(jnp.float32),
                 ((0, 0), (0, 0), (0, d["ap"] - x.shape[-1])))
    ep = jnp.pad(edge_attr.astype(jnp.float32),
                 ((0, 0), (0, 0), (0, d["bp"] - edge_attr.shape[-1])))

    weights = [params["node_w"], params["edge_w"], params["emb_vecs"],
               params["w1"], params["w2"], params["w3"], params["layer_vecs"],
               params["pool_w1"], params["pool_w2"], params["out_w"],
               params["head_b1"], params["head_vecs"]]

    in_specs = [_per_graph_spec((E, 1)),            # row
                _per_graph_spec((1, E)),            # col
                _per_graph_spec((N, d["ap"])),      # x
                _per_graph_spec((E, d["bp"]))]      # edge_attr
    in_specs += [_resident_spec(w) for w in weights]  # constant index_map: DMA'd once

    out = pl.pallas_call(
        functools.partial(_gin_fused_kernel,
                          n_layers=d["n_layers"],
                          h_true=d["hidden"],
                          out_true=d["out"]),
        grid=(G,),
        in_specs=in_specs,
        out_specs=pl.BlockSpec((None, 1, d["op"]), lambda g: (g, 0, 0)),
        out_shape=jax.ShapeDtypeStruct((G, 1, d["op"]), jnp.float32),
        compiler_params=pltpu.CompilerParams(
            dimension_semantics=("parallel",),          # v7x: 2 TCs split the batch
            vmem_limit_bytes=32 * 1024 * 1024),
    )(row, col, xp, ep, *weights)

    out = out[:, 0, :d["out"]]
    return out


# ---------------------------------- main ------------------------------------ #

if __name__ == "__main__":
    GRAPHS, N_NODES, N_EDGES = 8, 16, 48
    ATOM_DIM, BOND_DIM, HIDDEN, OUT_DIM = 16, 8, 32, 64

    key = jax.random.PRNGKey(0)
    k_param, k_x, k_e, k_idx = jax.random.split(key, 4)

    params = init_params(k_param, ATOM_DIM, BOND_DIM, HIDDEN, OUT_DIM)
    x = jax.random.normal(k_x, (GRAPHS, N_NODES, ATOM_DIM), jnp.float32)
    edge_attr = jax.random.normal(k_e, (GRAPHS, N_EDGES, BOND_DIM), jnp.float32)
    edge_index = jax.random.randint(k_idx, (GRAPHS, 2, N_EDGES), 0, N_NODES,
                                    jnp.int32)

    fwd = jax.jit(functools.partial(gin_forward, params))
    out = fwd(x, edge_index, edge_attr)
    jax.block_until_ready(out)

    assert out.shape == (GRAPHS, OUT_DIM), out.shape
    assert bool(jnp.all(jnp.isfinite(out)))
    print("KERNEL_OK")
</pallas_src>

<mosaic_0001>
module attributes {stable_mosaic.version = 11 : i64} {
  func.func @_gin_fused_kernel(%arg0: i32, %arg1: memref<1x48x1xi32, #tpu.memory_space<vmem>>, %arg2: memref<1x1x48xi32, #tpu.memory_space<vmem>>, %arg3: memref<1x16x128xf32, #tpu.memory_space<vmem>>, %arg4: memref<1x48x128xf32, #tpu.memory_space<vmem>>, %arg5: memref<128x128xbf16, #tpu.memory_space<vmem>>, %arg6: memref<128x128xbf16, #tpu.memory_space<vmem>>, %arg7: memref<6x128xf32, #tpu.memory_space<vmem>>, %arg8: memref<5x256x128xbf16, #tpu.memory_space<vmem>>, %arg9: memref<5x128x128xbf16, #tpu.memory_space<vmem>>, %arg10: memref<5x128x128xbf16, #tpu.memory_space<vmem>>, %arg11: memref<5x12x128xf32, #tpu.memory_space<vmem>>, %arg12: memref<128x128xbf16, #tpu.memory_space<vmem>>, %arg13: memref<128x128xbf16, #tpu.memory_space<vmem>>, %arg14: memref<128x128xbf16, #tpu.memory_space<vmem>>, %arg15: memref<1x128xf32, #tpu.memory_space<vmem>>, %arg16: memref<4x128xf32, #tpu.memory_space<vmem>>, %arg17: memref<1x1x128xf32, #tpu.memory_space<vmem>>) attributes {dimension_semantics = [#tpu.dimension_semantics<parallel>], iteration_bounds = array<i64: 8>, scalar_prefetch = 0 : i64, scratch_operands = 0 : i64, tpu.core_type = #tpu.core_type<tc>, window_params = [{transform_indices = @transform_0, window_bounds = array<i64: 1, 48, 1>}, {transform_indices = @transform_1, window_bounds = array<i64: 1, 1, 48>}, {transform_indices = @transform_2, window_bounds = array<i64: 1, 16, 128>}, {transform_indices = @transform_3, window_bounds = array<i64: 1, 48, 128>}, {pipeline_mode = #tpu.pipeline_mode<synchronous>, transform_indices = @transform_4, window_bounds = array<i64: 128, 128>}, {pipeline_mode = #tpu.pipeline_mode<synchronous>, transform_indices = @transform_5, window_bounds = array<i64: 128, 128>}, {pipeline_mode = #tpu.pipeline_mode<synchronous>, transform_indices = @transform_6, window_bounds = array<i64: 6, 128>}, {pipeline_mode = #tpu.pipeline_mode<synchronous>, transform_indices = @transform_7, window_bounds = array<i64: 5, 256, 128>}, {pipeline_mode = #tpu.pipeline_mode<synchronous>, transform_indices = @transform_8, window_bounds = array<i64: 5, 128, 128>}, {pipeline_mode = #tpu.pipeline_mode<synchronous>, transform_indices = @transform_9, window_bounds = array<i64: 5, 128, 128>}, {pipeline_mode = #tpu.pipeline_mode<synchronous>, transform_indices = @transform_10, window_bounds = array<i64: 5, 12, 128>}, {pipeline_mode = #tpu.pipeline_mode<synchronous>, transform_indices = @transform_11, window_bounds = array<i64: 128, 128>}, {pipeline_mode = #tpu.pipeline_mode<synchronous>, transform_indices = @transform_12, window_bounds = array<i64: 128, 128>}, {pipeline_mode = #tpu.pipeline_mode<synchronous>, transform_indices = @transform_13, window_bounds = array<i64: 128, 128>}, {pipeline_mode = #tpu.pipeline_mode<synchronous>, transform_indices = @transform_14, window_bounds = array<i64: 1, 128>}, {pipeline_mode = #tpu.pipeline_mode<synchronous>, transform_indices = @transform_15, window_bounds = array<i64: 4, 128>}, {transform_indices = @transform_16, window_bounds = array<i64: 1, 1, 128>}]} {
    %0 = tpu.iota {dimensions = array<i32: 1>} : vector<1x128xi32>
    %c32_i32 = arith.constant 32 : i32
    %1 = vector.broadcast %c32_i32 : i32 to vector<1x128xi32>
    %2 = arith.cmpi slt, %0, %1 : vector<1x128xi32>
    %3 = arith.extui %2 : vector<1x128xi1> to vector<1x128xi32>
    %4 = arith.sitofp %3 : vector<1x128xi32> to vector<1x128xf32>
    %5 = tpu.iota {dimensions = array<i32: 1>} : vector<1x128xi32>
    %c64_i32 = arith.constant 64 : i32
    %6 = vector.broadcast %c64_i32 : i32 to vector<1x128xi32>
    %7 = arith.cmpi slt, %5, %6 : vector<1x128xi32>
    %8 = arith.extui %7 : vector<1x128xi1> to vector<1x128xi32>
    %9 = arith.sitofp %8 : vector<1x128xi32> to vector<1x128xf32>
    %c0 = arith.constant 0 : index
    %c0_0 = arith.constant 0 : index
    %10 = vector.load %arg7[%c0, %c0_0] : memref<6x128xf32, #tpu.memory_space<vmem>>, vector<6x128xf32>
    %11 = vector.extract_strided_slice %10 {offsets = [0, 0], sizes = [1, 128], strides = [1, 1]} : vector<6x128xf32> to vector<1x128xf32>
    %12 = vector.extract_strided_slice %10 {offsets = [1, 0], sizes = [1, 128], strides = [1, 1]} : vector<6x128xf32> to vector<1x128xf32>
    %13 = vector.extract_strided_slice %10 {offsets = [2, 0], sizes = [1, 128], strides = [1, 1]} : vector<6x128xf32> to vector<1x128xf32>
    %14 = vector.extract_strided_slice %10 {offsets = [3, 0], sizes = [1, 128], strides = [1, 1]} : vector<6x128xf32> to vector<1x128xf32>
    %15 = vector.extract_strided_slice %10 {offsets = [4, 0], sizes = [1, 128], strides = [1, 1]} : vector<6x128xf32> to vector<1x128xf32>
    %16 = vector.extract_strided_slice %10 {offsets = [5, 0], sizes = [1, 128], strides = [1, 1]} : vector<6x128xf32> to vector<1x128xf32>
    %c0_1 = arith.constant 0 : index
    %c0_2 = arith.constant 0 : index
    %c0_3 = arith.constant 0 : index
    %17 = vector.load %arg3[%c0_1, %c0_2, %c0_3] : memref<1x16x128xf32, #tpu.memory_space<vmem>>, vector<1x16x128xf32>
    %18 = vector.shape_cast %17 : vector<1x16x128xf32> to vector<16x128xf32>
    %19 = arith.truncf %18 : vector<16x128xf32> to vector<16x128xbf16>
    %c0_4 = arith.constant 0 : index
    %c0_5 = arith.constant 0 : index
    %20 = vector.load %arg5[%c0_4, %c0_5] : memref<128x128xbf16, #tpu.memory_space<vmem>>, vector<128x128xbf16>
    %cst = arith.constant dense<0.000000e+00> : vector<16x128xf32>
    %21 = tpu.matmul %19, %20, %cst {dimension_numbers = #tpu.dot_dimension_numbers<[1], [0], [0], [1], [0, 0, 1, 1], [], []>} : vector<16x128xbf16>, vector<128x128xbf16>, vector<16x128xf32> -> vector<16x128xf32>
    %22 = vector.broadcast %11 : vector<1x128xf32> to vector<16x128xf32>
    %23 = arith.addf %21, %22 : vector<16x128xf32>
    %cst_6 = arith.constant dense<0.000000e+00> : vector<16xf32>
    %24 = vector.multi_reduction <add>, %23, %cst_6 [1] : vector<16x128xf32> to vector<16xf32>
    %25 = vector.shape_cast %24 : vector<16xf32> to vector<16x1xf32>
    %cst_7 = arith.constant 3.125000e-02 : f32
    %26 = vector.broadcast %cst_7 : f32 to vector<16x1xf32>
    %27 = arith.mulf %25, %26 : vector<16x1xf32>
    %28 = vector.broadcast %27 : vector<16x1xf32> to vector<16x128xf32>
    %29 = arith.subf %23, %28 : vector<16x128xf32>
    %30 = vector.broadcast %4 : vector<1x128xf32> to vector<16x128xf32>
    %31 = arith.mulf %29, %30 : vector<16x128xf32>
    %32 = arith.mulf %31, %31 : vector<16x128xf32>
    %cst_8 = arith.constant dense<0.000000e+00> : vector<16xf32>
    %33 = vector.multi_reduction <add>, %32, %cst_8 [1] : vector<16x128xf32> to vector<16xf32>
    %34 = vector.shape_cast %33 : vector<16xf32> to vector<16x1xf32>
    %cst_9 = arith.constant 3.125000e-02 : f32
    %35 = vector.broadcast %cst_9 : f32 to vector<16x1xf32>
    %36 = arith.mulf %34, %35 : vector<16x1xf32>
    %cst_10 = arith.constant 9.99999974E-6 : f32
    %37 = vector.broadcast %cst_10 : f32 to vector<16x1xf32>
    %38 = arith.addf %36, %37 : vector<16x1xf32>
    %39 = math.rsqrt %38 : vector<16x1xf32>
    %40 = vector.broadcast %39 : vector<16x1xf32> to vector<16x128xf32>
    %41 = arith.mulf %31, %40 : vector<16x128xf32>
    %42 = vector.broadcast %12 : vector<1x128xf32> to vector<16x128xf32>
    %43 = arith.mulf %41, %42 : vector<16x128xf32>
    %44 = vector.broadcast %13 : vector<1x128xf32> to vector<16x128xf32>
    %45 = arith.addf %43, %44 : vector<16x128xf32>
    %cst_11 = arith.constant 0.000000e+00 : f32
    %46 = vector.broadcast %cst_11 : f32 to vector<16x128xf32>
    %47 = arith.maximumf %45, %46 : vector<16x128xf32>
    %c0_12 = arith.constant 0 : index
    %c0_13 = arith.constant 0 : index
    %c0_14 = arith.constant 0 : index
    %48 = vector.load %arg4[%c0_12, %c0_13, %c0_14] : memref<1x48x128xf32, #tpu.memory_space<vmem>>, vector<1x48x128xf32>
    %49 = vector.shape_cast %48 : vector<1x48x128xf32> to vector<48x128xf32>
    %50 = arith.truncf %49 : vector<48x128xf32> to vector<48x128xbf16>
    %c0_15 = arith.constant 0 : index
    %c0_16 = arith.constant 0 : index
    %51 = vector.load %arg6[%c0_15, %c0_16] : memref<128x128xbf16, #tpu.memory_space<vmem>>, vector<128x128xbf16>
    %cst_17 = arith.constant dense<0.000000e+00> : vector<48x128xf32>
    %52 = tpu.matmul %50, %51, %cst_17 {dimension_numbers = #tpu.dot_dimension_numbers<[1], [0], [0], [1], [0, 0, 1, 1], [], []>} : vector<48x128xbf16>, vector<128x128xbf16>, vector<48x128xf32> -> vector<48x128xf32>
    %53 = vector.broadcast %14 : vector<1x128xf32> to vector<48x128xf32>
    %54 = arith.addf %52, %53 : vector<48x128xf32>
    %cst_18 = arith.constant dense<0.000000e+00> : vector<48xf32>
    %55 = vector.multi_reduction <add>, %54, %cst_18 [1] : vector<48x128xf32> to vector<48xf32>
    %56 = vector.shape_cast %55 : vector<48xf32> to vector<48x1xf32>
    %cst_19 = arith.constant 3.125000e-02 : f32
    %57 = vector.broadcast %cst_19 : f32 to vector<48x1xf32>
    %58 = arith.mulf %56, %57 : vector<48x1xf32>
    %59 = vector.broadcast %58 : vector<48x1xf32> to vector<48x128xf32>
    %60 = arith.subf %54, %59 : vector<48x128xf32>
    %61 = vector.broadcast %4 : vector<1x128xf32> to vector<48x128xf32>
    %62 = arith.mulf %60, %61 : vector<48x128xf32>
    %63 = arith.mulf %62, %62 : vector<48x128xf32>
    %cst_20 = arith.constant dense<0.000000e+00> : vector<48xf32>
    %64 = vector.multi_reduction <add>, %63, %cst_20 [1] : vector<48x128xf32> to vector<48xf32>
    %65 = vector.shape_cast %64 : vector<48xf32> to vector<48x1xf32>
    %cst_21 = arith.constant 3.125000e-02 : f32
    %66 = vector.broadcast %cst_21 : f32 to vector<48x1xf32>
    %67 = arith.mulf %65, %66 : vector<48x1xf32>
    %cst_22 = arith.constant 9.99999974E-6 : f32
    %68 = vector.broadcast %cst_22 : f32 to vector<48x1xf32>
    %69 = arith.addf %67, %68 : vector<48x1xf32>
    %70 = math.rsqrt %69 : vector<48x1xf32>
    %71 = vector.broadcast %70 : vector<48x1xf32> to vector<48x128xf32>
    %72 = arith.mulf %62, %71 : vector<48x128xf32>
    %73 = vector.broadcast %15 : vector<1x128xf32> to vector<48x128xf32>
    %74 = arith.mulf %72, %73 : vector<48x128xf32>
    %75 = vector.broadcast %16 : vector<1x128xf32> to vector<48x128xf32>
    %76 = arith.addf %74, %75 : vector<48x128xf32>
    %cst_23 = arith.constant 0.000000e+00 : f32
    %77 = vector.broadcast %cst_23 : f32 to vector<48x128xf32>
    %78 = arith.maximumf %76, %77 : vector<48x128xf32>
    %79 = arith.truncf %78 : vector<48x128xf32> to vector<48x128xbf16>
    %80 = tpu.iota {dimensions = array<i32: 1>} : vector<48x16xi32>
    %c0_24 = arith.constant 0 : index
    %c0_25 = arith.constant 0 : index
    %c0_26 = arith.constant 0 : index
    %81 = vector.load %arg1[%c0_24, %c0_25, %c0_26] : memref<1x48x1xi32, #tpu.memory_space<vmem>>, vector<1x48x1xi32>
    %82 = vector.shape_cast %81 : vector<1x48x1xi32> to vector<48x1xi32>
    %83 = vector.broadcast %82 : vector<48x1xi32> to vector<48x16xi32>
    %84 = arith.cmpi eq, %80, %83 : vector<48x16xi32>
    %85 = arith.extui %84 : vector<48x16xi1> to vector<48x16xi32>
    %86 = arith.sitofp %85 : vector<48x16xi32> to vector<48x16xf32>
    %87 = arith.truncf %86 : vector<48x16xf32> to vector<48x16xbf16>
    %88 = tpu.iota {dimensions = array<i32: 0>} : vector<16x48xi32>
    %c0_27 = arith.constant 0 : index
    %c0_28 = arith.constant 0 : index
    %c0_29 = arith.constant 0 : index
    %89 = vector.load %arg2[%c0_27, %c0_28, %c0_29] : memref<1x1x48xi32, #tpu.memory_space<vmem>>, vector<1x1x48xi32>
    %90 = vector.shape_cast %89 : vector<1x1x48xi32> to vector<1x48xi32>
    %91 = vector.broadcast %90 : vector<1x48xi32> to vector<16x48xi32>
    %92 = arith.cmpi eq, %88, %91 : vector<16x48xi32>
    %93 = arith.extui %92 : vector<16x48xi1> to vector<16x48xi32>
    %94 = arith.sitofp %93 : vector<16x48xi32> to vector<16x48xf32>
    %95 = arith.truncf %94 : vector<16x48xf32> to vector<16x48xbf16>
    %cst_30 = arith.constant 0.000000e+00 : f32
    %96 = vector.broadcast %cst_30 : f32 to vector<16x128xf32>
    %c0_31 = arith.constant 0 : index
    %c0_32 = arith.constant 0 : index
    %c0_33 = arith.constant 0 : index
    %97 = vector.load %arg11[%c0_31, %c0_32, %c0_33] : memref<5x12x128xf32, #tpu.memory_space<vmem>>, vector<1x12x128xf32>
    %98 = vector.shape_cast %97 : vector<1x12x128xf32> to vector<12x128xf32>
    %99 = vector.extract_strided_slice %98 {offsets = [0, 0], sizes = [1, 128], strides = [1, 1]} : vector<12x128xf32> to vector<1x128xf32>
    %100 = vector.extract_strided_slice %98 {offsets = [1, 0], sizes = [1, 128], strides = [1, 1]} : vector<12x128xf32> to vector<1x128xf32>
    %101 = vector.extract_strided_slice %98 {offsets = [2, 0], sizes = [1, 128], strides = [1, 1]} : vector<12x128xf32> to vector<1x128xf32>
    %102 = vector.extract_strided_slice %98 {offsets = [3, 0], sizes = [1, 128], strides = [1, 1]} : vector<12x128xf32> to vector<1x128xf32>
    %103 = vector.extract_strided_slice %98 {offsets = [4, 0], sizes = [1, 128], strides = [1, 1]} : vector<12x128xf32> to vector<1x128xf32>
    %104 = vector.extract_strided_slice %98 {offsets = [5, 0], sizes = [1, 128], strides = [1, 1]} : vector<12x128xf32> to vector<1x128xf32>
    %105 = vector.extract_strided_slice %98 {offsets = [6, 0], sizes = [1, 128], strides = [1, 1]} : vector<12x128xf32> to vector<1x128xf32>
    %106 = vector.extract_strided_slice %98 {offsets = [7, 0], sizes = [1, 128], strides = [1, 1]} : vector<12x128xf32> to vector<1x128xf32>
    %107 = vector.extract_strided_slice %98 {offsets = [8, 0], sizes = [1, 128], strides = [1, 1]} : vector<12x128xf32> to vector<1x128xf32>
    %108 = vector.extract_strided_slice %98 {offsets = [9, 0], sizes = [1, 128], strides = [1, 1]} : vector<12x128xf32> to vector<1x128xf32>
    %109 = vector.extract_strided_slice %98 {offsets = [10, 0], sizes = [1, 128], strides = [1, 1]} : vector<12x128xf32> to vector<1x128xf32>
    %110 = vector.extract_strided_slice %98 {offsets = [11, 0], sizes = [1, 128], strides = [1, 1]} : vector<12x128xf32> to vector<1x128xf32>
    %111 = arith.truncf %47 : vector<16x128xf32> to vector<16x128xbf16>
    %cst_34 = arith.constant dense<0.000000e+00> : vector<48x128xf32>
    %112 = tpu.matmul %87, %111, %cst_34 {dimension_numbers = #tpu.dot_dimension_numbers<[1], [0], [0], [1], [0, 0, 1, 1], [], []>} : vector<48x16xbf16>, vector<16x128xbf16>, vector<48x128xf32> -> vector<48x128xf32>
    %113 = arith.truncf %112 : vector<48x128xf32> to vector<48x128xbf16>
    %114 = tpu.concatenate %113, %79 in 1 : vector<48x128xbf16>, vector<48x128xbf16> -> vector<48x256xbf16>
    %c0_35 = arith.constant 0 : index
    %c0_36 = arith.constant 0 : index
    %c0_37 = arith.constant 0 : index
    %115 = vector.load %arg8[%c0_35, %c0_36, %c0_37] : memref<5x256x128xbf16, #tpu.memory_space<vmem>>, vector<1x256x128xbf16>
    %116 = vector.shape_cast %115 : vector<1x256x128xbf16> to vector<256x128xbf16>
    %cst_38 = arith.constant dense<0.000000e+00> : vector<48x128xf32>
    %117 = tpu.matmul %114, %116, %cst_38 {dimension_numbers = #tpu.dot_dimension_numbers<[1], [0], [0], [1], [0, 0, 1, 1], [], []>} : vector<48x256xbf16>, vector<256x128xbf16>, vector<48x128xf32> -> vector<48x128xf32>
    %118 = vector.broadcast %99 : vector<1x128xf32> to vector<48x128xf32>
    %119 = arith.addf %117, %118 : vector<48x128xf32>
    %cst_39 = arith.constant dense<0.000000e+00> : vector<48xf32>
    %120 = vector.multi_reduction <add>, %119, %cst_39 [1] : vector<48x128xf32> to vector<48xf32>
    %121 = vector.shape_cast %120 : vector<48xf32> to vector<48x1xf32>
    %cst_40 = arith.constant 3.125000e-02 : f32
    %122 = vector.broadcast %cst_40 : f32 to vector<48x1xf32>
    %123 = arith.mulf %121, %122 : vector<48x1xf32>
    %124 = vector.broadcast %123 : vector<48x1xf32> to vector<48x128xf32>
    %125 = arith.subf %119, %124 : vector<48x128xf32>
    %126 = vector.broadcast %4 : vector<1x128xf32> to vector<48x128xf32>
    %127 = arith.mulf %125, %126 : vector<48x128xf32>
    %128 = arith.mulf %127, %127 : vector<48x128xf32>
    %cst_41 = arith.constant dense<0.000000e+00> : vector<48xf32>
    %129 = vector.multi_reduction <add>, %128, %cst_41 [1] : vector<48x128xf32> to vector<48xf32>
    %130 = vector.shape_cast %129 : vector<48xf32> to vector<48x1xf32>
    %cst_42 = arith.constant 3.125000e-02 : f32
    %131 = vector.broadcast %cst_42 : f32 to vector<48x1xf32>
    %132 = arith.mulf %130, %131 : vector<48x1xf32>
    %cst_43 = arith.constant 9.99999974E-6 : f32
    %133 = vector.broadcast %cst_43 : f32 to vector<48x1xf32>
    %134 = arith.addf %132, %133 : vector<48x1xf32>
    %135 = math.rsqrt %134 : vector<48x1xf32>
    %136 = vector.broadcast %135 : vector<48x1xf32> to vector<48x128xf32>
    %137 = arith.mulf %127, %136 : vector<48x128xf32>
    %138 = vector.broadcast %100 : vector<1x128xf32> to vector<48x128xf32>
    %139 = arith.mulf %137, %138 : vector<48x128xf32>
    %140 = vector.broadcast %101 : vector<1x128xf32> to vector<48x128xf32>
    %141 = arith.addf %139, %140 : vector<48x128xf32>
    %cst_44 = arith.constant 0.000000e+00 : f32
    %142 = vector.broadcast %cst_44 : f32 to vector<48x128xf32>
    %143 = arith.maximumf %141, %142 : vector<48x128xf32>
    %cst_45 = arith.constant 1.000000e+00 : f32
    %144 = vector.broadcast %cst_45 : f32 to vector<1x128xf32>
    %145 = arith.addf %144, %110 : vector<1x128xf32>
    %146 = vector.broadcast %145 : vector<1x128xf32> to vector<16x128xf32>
    %147 = arith.mulf %146, %47 : vector<16x128xf32>
    %148 = arith.truncf %143 : vector<48x128xf32> to vector<48x128xbf16>
    %cst_46 = arith.constant dense<0.000000e+00> : vector<16x128xf32>
    %149 = tpu.matmul %95, %148, %cst_46 {dimension_numbers = #tpu.dot_dimension_numbers<[1], [0], [0], [1], [0, 0, 1, 1], [], []>} : vector<16x48xbf16>, vector<48x128xbf16>, vector<16x128xf32> -> vector<16x128xf32>
    %150 = arith.addf %147, %149 : vector<16x128xf32>
    %151 = arith.truncf %150 : vector<16x128xf32> to vector<16x128xbf16>
    %c0_47 = arith.constant 0 : index
    %c0_48 = arith.constant 0 : index
    %c0_49 = arith.constant 0 : index
    %152 = vector.load %arg9[%c0_47, %c0_48, %c0_49] : memref<5x128x128xbf16, #tpu.memory_space<vmem>>, vector<1x128x128xbf16>
    %153 = vector.shape_cast %152 : vector<1x128x128xbf16> to vector<128x128xbf16>
    %cst_50 = arith.constant dense<0.000000e+00> : vector<16x128xf32>
    %154 = tpu.matmul %151, %153, %cst_50 {dimension_numbers = #tpu.dot_dimension_numbers<[1], [0], [0], [1], [0, 0, 1, 1], [], []>} : vector<16x128xbf16>, vector<128x128xbf16>, vector<16x128xf32> -> vector<16x128xf32>
    %155 = vector.broadcast %102 : vector<1x128xf32> to vector<16x128xf32>
    %156 = arith.addf %154, %155 : vector<16x128xf32>
    %cst_51 = arith.constant dense<0.000000e+00> : vector<16xf32>
    %157 = vector.multi_reduction <add>, %156, %cst_51 [1] : vector<16x128xf32> to vector<16xf32>
    %158 = vector.shape_cast %157 : vector<16xf32> to vector<16x1xf32>
    %cst_52 = arith.constant 3.125000e-02 : f32
    %159 = vector.broadcast %cst_52 : f32 to vector<16x1xf32>
    %160 = arith.mulf %158, %159 : vector<16x1xf32>
    %161 = vector.broadcast %160 : vector<16x1xf32> to vector<16x128xf32>
    %162 = arith.subf %156, %161 : vector<16x128xf32>
    %163 = vector.broadcast %4 : vector<1x128xf32> to vector<16x128xf32>
    %164 = arith.mulf %162, %163 : vector<16x128xf32>
    %165 = arith.mulf %164, %164 : vector<16x128xf32>
    %cst_53 = arith.constant dense<0.000000e+00> : vector<16xf32>
    %166 = vector.multi_reduction <add>, %165, %cst_53 [1] : vector<16x128xf32> to vector<16xf32>
    %167 = vector.shape_cast %166 : vector<16xf32> to vector<16x1xf32>
    %cst_54 = arith.constant 3.125000e-02 : f32
    %168 = vector.broadcast %cst_54 : f32 to vector<16x1xf32>
    %169 = arith.mulf %167, %168 : vector<16x1xf32>
    %cst_55 = arith.constant 9.99999974E-6 : f32
    %170 = vector.broadcast %cst_55 : f32 to vector<16x1xf32>
    %171 = arith.addf %169, %170 : vector<16x1xf32>
    %172 = math.rsqrt %171 : vector<16x1xf32>
    %173 = vector.broadcast %172 : vector<16x1xf32> to vector<16x128xf32>
    %174 = arith.mulf %164, %173 : vector<16x128xf32>
    %175 = vector.broadcast %103 : vector<1x128xf32> to vector<16x128xf32>
    %176 = arith.mulf %174, %175 : vector<16x128xf32>
    %177 = vector.broadcast %104 : vector<1x128xf32> to vector<16x128xf32>
    %178 = arith.addf %176, %177 : vector<16x128xf32>
    %cst_56 = arith.constant 0.000000e+00 : f32
    %179 = vector.broadcast %cst_56 : f32 to vector<16x128xf32>
    %180 = arith.maximumf %178, %179 : vector<16x128xf32>
    %181 = arith.truncf %180 : vector<16x128xf32> to vector<16x128xbf16>
    %c0_57 = arith.constant 0 : index
    %c0_58 = arith.constant 0 : index
    %c0_59 = arith.constant 0 : index
    %182 = vector.load %arg10[%c0_57, %c0_58, %c0_59] : memref<5x128x128xbf16, #tpu.memory_space<vmem>>, vector<1x128x128xbf16>
    %183 = vector.shape_cast %182 : vector<1x128x128xbf16> to vector<128x128xbf16>
    %cst_60 = arith.constant dense<0.000000e+00> : vector<16x128xf32>
    %184 = tpu.matmul %181, %183, %cst_60 {dimension_numbers = #tpu.dot_dimension_numbers<[1], [0], [0], [1], [0, 0, 1, 1], [], []>} : vector<16x128xbf16>, vector<128x128xbf16>, vector<16x128xf32> -> vector<16x128xf32>
    %185 = vector.broadcast %105 : vector<1x128xf32> to vector<16x128xf32>
    %186 = arith.addf %184, %185 : vector<16x128xf32>
    %cst_61 = arith.constant 2.000000e+00 : f32
    %187 = vector.broadcast %cst_61 : f32 to vector<16x128xf32>
    %188 = arith.mulf %187, %47 : vector<16x128xf32>
    %189 = arith.addf %186, %188 : vector<16x128xf32>
    %190 = vector.broadcast %106 : vector<1x128xf32> to vector<16x128xf32>
    %191 = arith.subf %189, %190 : vector<16x128xf32>
    %cst_62 = arith.constant 9.99999974E-6 : f32
    %192 = vector.broadcast %cst_62 : f32 to vector<1x128xf32>
    %193 = arith.addf %107, %192 : vector<1x128xf32>
    %194 = math.rsqrt %193 : vector<1x128xf32>
    %195 = vector.broadcast %194 : vector<1x128xf32> to vector<16x128xf32>
    %196 = arith.mulf %191, %195 : vector<16x128xf32>
    %197 = vector.broadcast %108 : vector<1x128xf32> to vector<16x128xf32>
    %198 = arith.mulf %196, %197 : vector<16x128xf32>
    %199 = vector.broadcast %109 : vector<1x128xf32> to vector<16x128xf32>
    %200 = arith.addf %198, %199 : vector<16x128xf32>
    %cst_63 = arith.constant 0.000000e+00 : f32
    %201 = vector.broadcast %cst_63 : f32 to vector<16x128xf32>
    %202 = arith.maximumf %200, %201 : vector<16x128xf32>
    %203 = arith.addf %96, %202 : vector<16x128xf32>
    %c1 = arith.constant 1 : index
    %c0_64 = arith.constant 0 : index
    %c0_65 = arith.constant 0 : index
    %204 = vector.load %arg11[%c1, %c0_64, %c0_65] : memref<5x12x128xf32, #tpu.memory_space<vmem>>, vector<1x12x128xf32>
    %205 = vector.shape_cast %204 : vector<1x12x128xf32> to vector<12x128xf32>
    %206 = vector.extract_strided_slice %205 {offsets = [0, 0], sizes = [1, 128], strides = [1, 1]} : vector<12x128xf32> to vector<1x128xf32>
    %207 = vector.extract_strided_slice %205 {offsets = [1, 0], sizes = [1, 128], strides = [1, 1]} : vector<12x128xf32> to vector<1x128xf32>
    %208 = vector.extract_strided_slice %205 {offsets = [2, 0], sizes = [1, 128], strides = [1, 1]} : vector<12x128xf32> to vector<1x128xf32>
    %209 = vector.extract_strided_slice %205 {offsets = [3, 0], sizes = [1, 128], strides = [1, 1]} : vector<12x128xf32> to vector<1x128xf32>
    %210 = vector.extract_strided_slice %205 {offsets = [4, 0], sizes = [1, 128], strides = [1, 1]} : vector<12x128xf32> to vector<1x128xf32>
    %211 = vector.extract_strided_slice %205 {offsets = [5, 0], sizes = [1, 128], strides = [1, 1]} : vector<12x128xf32> to vector<1x128xf32>
    %212 = vector.extract_strided_slice %205 {offsets = [6, 0], sizes = [1, 128], strides = [1, 1]} : vector<12x128xf32> to vector<1x128xf32>
    %213 = vector.extract_strided_slice %205 {offsets = [7, 0], sizes = [1, 128], strides = [1, 1]} : vector<12x128xf32> to vector<1x128xf32>
    %214 = vector.extract_strided_slice %205 {offsets = [8, 0], sizes = [1, 128], strides = [1, 1]} : vector<12x128xf32> to vector<1x128xf32>
    %215 = vector.extract_strided_slice %205 {offsets = [9, 0], sizes = [1, 128], strides = [1, 1]} : vector<12x128xf32> to vector<1x128xf32>
    %216 = vector.extract_strided_slice %205 {offsets = [10, 0], sizes = [1, 128], strides = [1, 1]} : vector<12x128xf32> to vector<1x128xf32>
    %217 = vector.extract_strided_slice %205 {offsets = [11, 0], sizes = [1, 128], strides = [1, 1]} : vector<12x128xf32> to vector<1x128xf32>
    %218 = arith.truncf %202 : vector<16x128xf32> to vector<16x128xbf16>
    %cst_66 = arith.constant dense<0.000000e+00> : vector<48x128xf32>
    %219 = tpu.matmul %87, %218, %cst_66 {dimension_numbers = #tpu.dot_dimension_numbers<[1], [0], [0], [1], [0, 0, 1, 1], [], []>} : vector<48x16xbf16>, vector<16x128xbf16>, vector<48x128xf32> -> vector<48x128xf32>
    %220 = arith.truncf %219 : vector<48x128xf32> to vector<48x128xbf16>
    %221 = tpu.concatenate %220, %79 in 1 : vector<48x128xbf16>, vector<48x128xbf16> -> vector<48x256xbf16>
    %c1_67 = arith.constant 1 : index
    %c0_68 = arith.constant 0 : index
    %c0_69 = arith.constant 0 : index
    %222 = vector.load %arg8[%c1_67, %c0_68, %c0_69] : memref<5x256x128xbf16, #tpu.memory_space<vmem>>, vector<1x256x128xbf16>
    %223 = vector.shape_cast %222 : vector<1x256x128xbf16> to vector<256x128xbf16>
    %cst_70 = arith.constant dense<0.000000e+00> : vector<48x128xf32>
    %224 = tpu.matmul %221, %223, %cst_70 {dimension_numbers = #tpu.dot_dimension_numbers<[1], [0], [0], [1], [0, 0, 1, 1], [], []>} : vector<48x256xbf16>, vector<256x128xbf16>, vector<48x128xf32> -> vector<48x128xf32>
    %225 = vector.broadcast %206 : vector<1x128xf32> to vector<48x128xf32>
    %226 = arith.addf %224, %225 : vector<48x128xf32>
    %cst_71 = arith.constant dense<0.000000e+00> : vector<48xf32>
    %227 = vector.multi_reduction <add>, %226, %cst_71 [1] : vector<48x128xf32> to vector<48xf32>
    %228 = vector.shape_cast %227 : vector<48xf32> to vector<48x1xf32>
    %cst_72 = arith.constant 3.125000e-02 : f32
    %229 = vector.broadcast %cst_72 : f32 to vector<48x1xf32>
    %230 = arith.mulf %228, %229 : vector<48x1xf32>
    %231 = vector.broadcast %230 : vector<48x1xf32> to vector<48x128xf32>
    %232 = arith.subf %226, %231 : vector<48x128xf32>
    %233 = vector.broadcast %4 : vector<1x128xf32> to vector<48x128xf32>
    %234 = arith.mulf %232, %233 : vector<48x128xf32>
    %235 = arith.mulf %234, %234 : vector<48x128xf32>
    %cst_73 = arith.constant dense<0.000000e+00> : vector<48xf32>
    %236 = vector.multi_reduction <add>, %235, %cst_73 [1] : vector<48x128xf32> to vector<48xf32>
    %237 = vector.shape_cast %236 : vector<48xf32> to vector<48x1xf32>
    %cst_74 = arith.constant 3.125000e-02 : f32
    %238 = vector.broadcast %cst_74 : f32 to vector<48x1xf32>
    %239 = arith.mulf %237, %238 : vector<48x1xf32>
    %cst_75 = arith.constant 9.99999974E-6 : f32
    %240 = vector.broadcast %cst_75 : f32 to vector<48x1xf32>
    %241 = arith.addf %239, %240 : vector<48x1xf32>
    %242 = math.rsqrt %241 : vector<48x1xf32>
    %243 = vector.broadcast %242 : vector<48x1xf32> to vector<48x128xf32>
    %244 = arith.mulf %234, %243 : vector<48x128xf32>
    %245 = vector.broadcast %207 : vector<1x128xf32> to vector<48x128xf32>
    %246 = arith.mulf %244, %245 : vector<48x128xf32>
    %247 = vector.broadcast %208 : vector<1x128xf32> to vector<48x128xf32>
    %248 = arith.addf %246, %247 : vector<48x128xf32>
    %cst_76 = arith.constant 0.000000e+00 : f32
    %249 = vector.broadcast %cst_76 : f32 to vector<48x128xf32>
    %250 = arith.maximumf %248, %249 : vector<48x128xf32>
    %cst_77 = arith.constant 1.000000e+00 : f32
    %251 = vector.broadcast %cst_77 : f32 to vector<1x128xf32>
    %252 = arith.addf %251, %217 : vector<1x128xf32>
    %253 = vector.broadcast %252 : vector<1x128xf32> to vector<16x128xf32>
    %254 = arith.mulf %253, %202 : vector<16x128xf32>
    %255 = arith.truncf %250 : vector<48x128xf32> to vector<48x128xbf16>
    %cst_78 = arith.constant dense<0.000000e+00> : vector<16x128xf32>
    %256 = tpu.matmul %95, %255, %cst_78 {dimension_numbers = #tpu.dot_dimension_numbers<[1], [0], [0], [1], [0, 0, 1, 1], [], []>} : vector<16x48xbf16>, vector<48x128xbf16>, vector<16x128xf32> -> vector<16x128xf32>
    %257 = arith.addf %254, %256 : vector<16x128xf32>
    %258 = arith.truncf %257 : vector<16x128xf32> to vector<16x128xbf16>
    %c1_79 = arith.constant 1 : index
    %c0_80 = arith.constant 0 : index
    %c0_81 = arith.constant 0 : index
    %259 = vector.load %arg9[%c1_79, %c0_80, %c0_81] : memref<5x128x128xbf16, #tpu.memory_space<vmem>>, vector<1x128x128xbf16>
    %260 = vector.shape_cast %259 : vector<1x128x128xbf16> to vector<128x128xbf16>
    %cst_82 = arith.constant dense<0.000000e+00> : vector<16x128xf32>
    %261 = tpu.matmul %258, %260, %cst_82 {dimension_numbers = #tpu.dot_dimension_numbers<[1], [0], [0], [1], [0, 0, 1, 1], [], []>} : vector<16x128xbf16>, vector<128x128xbf16>, vector<16x128xf32> -> vector<16x128xf32>
    %262 = vector.broadcast %209 : vector<1x128xf32> to vector<16x128xf32>
    %263 = arith.addf %261, %262 : vector<16x128xf32>
    %cst_83 = arith.constant dense<0.000000e+00> : vector<16xf32>
    %264 = vector.multi_reduction <add>, %263, %cst_83 [1] : vector<16x128xf32> to vector<16xf32>
    %265 = vector.shape_cast %264 : vector<16xf32> to vector<16x1xf32>
    %cst_84 = arith.constant 3.125000e-02 : f32
    %266 = vector.broadcast %cst_84 : f32 to vector<16x1xf32>
    %267 = arith.mulf %265, %266 : vector<16x1xf32>
    %268 = vector.broadcast %267 : vector<16x1xf32> to vector<16x128xf32>
    %269 = arith.subf %263, %268 : vector<16x128xf32>
    %270 = vector.broadcast %4 : vector<1x128xf32> to vector<16x128xf32>
    %271 = arith.mulf %269, %270 : vector<16x128xf32>
    %272 = arith.mulf %271, %271 : vector<16x128xf32>
    %cst_85 = arith.constant dense<0.000000e+00> : vector<16xf32>
    %273 = vector.multi_reduction <add>, %272, %cst_85 [1] : vector<16x128xf32> to vector<16xf32>
    %274 = vector.shape_cast %273 : vector<16xf32> to vector<16x1xf32>
    %cst_86 = arith.constant 3.125000e-02 : f32
    %275 = vector.broadcast %cst_86 : f32 to vector<16x1xf32>
    %276 = arith.mulf %274, %275 : vector<16x1xf32>
    %cst_87 = arith.constant 9.99999974E-6 : f32
    %277 = vector.broadcast %cst_87 : f32 to vector<16x1xf32>
    %278 = arith.addf %276, %277 : vector<16x1xf32>
    %279 = math.rsqrt %278 : vector<16x1xf32>
    %280 = vector.broadcast %279 : vector<16x1xf32> to vector<16x128xf32>
    %281 = arith.mulf %271, %280 : vector<16x128xf32>
    %282 = vector.broadcast %210 : vector<1x128xf32> to vector<16x128xf32>
    %283 = arith.mulf %281, %282 : vector<16x128xf32>
    %284 = vector.broadcast %211 : vector<1x128xf32> to vector<16x128xf32>
    %285 = arith.addf %283, %284 : vector<16x128xf32>
    %cst_88 = arith.constant 0.000000e+00 : f32
    %286 = vector.broadcast %cst_88 : f32 to vector<16x128xf32>
    %287 = arith.maximumf %285, %286 : vector<16x128xf32>
    %288 = arith.truncf %287 : vector<16x128xf32> to vector<16x128xbf16>
    %c1_89 = arith.constant 1 : index
    %c0_90 = arith.constant 0 : index
    %c0_91 = arith.constant 0 : index
    %289 = vector.load %arg10[%c1_89, %c0_90, %c0_91] : memref<5x128x128xbf16, #tpu.memory_space<vmem>>, vector<1x128x128xbf16>
    %290 = vector.shape_cast %289 : vector<1x128x128xbf16> to vector<128x128xbf16>
    %cst_92 = arith.constant dense<0.000000e+00> : vector<16x128xf32>
    %291 = tpu.matmul %288, %290, %cst_92 {dimension_numbers = #tpu.dot_dimension_numbers<[1], [0], [0], [1], [0, 0, 1, 1], [], []>} : vector<16x128xbf16>, vector<128x128xbf16>, vector<16x128xf32> -> vector<16x128xf32>
    %292 = vector.broadcast %212 : vector<1x128xf32> to vector<16x128xf32>
    %293 = arith.addf %291, %292 : vector<16x128xf32>
    %cst_93 = arith.constant 2.000000e+00 : f32
    %294 = vector.broadcast %cst_93 : f32 to vector<16x128xf32>
    %295 = arith.mulf %294, %202 : vector<16x128xf32>
    %296 = arith.addf %293, %295 : vector<16x128xf32>
    %297 = vector.broadcast %213 : vector<1x128xf32> to vector<16x128xf32>
    %298 = arith.subf %296, %297 : vector<16x128xf32>
    %cst_94 = arith.constant 9.99999974E-6 : f32
    %299 = vector.broadcast %cst_94 : f32 to vector<1x128xf32>
    %300 = arith.addf %214, %299 : vector<1x128xf32>
    %301 = math.rsqrt %300 : vector<1x128xf32>
    %302 = vector.broadcast %301 : vector<1x128xf32> to vector<16x128xf32>
    %303 = arith.mulf %298, %302 : vector<16x128xf32>
    %304 = vector.broadcast %215 : vector<1x128xf32> to vector<16x128xf32>
    %305 = arith.mulf %303, %304 : vector<16x128xf32>
    %306 = vector.broadcast %216 : vector<1x128xf32> to vector<16x128xf32>
    %307 = arith.addf %305, %306 : vector<16x128xf32>
    %cst_95 = arith.constant 0.000000e+00 : f32
    %308 = vector.broadcast %cst_95 : f32 to vector<16x128xf32>
    %309 = arith.maximumf %307, %308 : vector<16x128xf32>
    %310 = arith.addf %203, %309 : vector<16x128xf32>
    %c2 = arith.constant 2 : index
    %c0_96 = arith.constant 0 : index
    %c0_97 = arith.constant 0 : index
    %311 = vector.load %arg11[%c2, %c0_96, %c0_97] : memref<5x12x128xf32, #tpu.memory_space<vmem>>, vector<1x12x128xf32>
    %312 = vector.shape_cast %311 : vector<1x12x128xf32> to vector<12x128xf32>
    %313 = vector.extract_strided_slice %312 {offsets = [0, 0], sizes = [1, 128], strides = [1, 1]} : vector<12x128xf32> to vector<1x128xf32>
    %314 = vector.extract_strided_slice %312 {offsets = [1, 0], sizes = [1, 128], strides = [1, 1]} : vector<12x128xf32> to vector<1x128xf32>
    %315 = vector.extract_strided_slice %312 {offsets = [2, 0], sizes = [1, 128], strides = [1, 1]} : vector<12x128xf32> to vector<1x128xf32>
    %316 = vector.extract_strided_slice %312 {offsets = [3, 0], sizes = [1, 128], strides = [1, 1]} : vector<12x128xf32> to vector<1x128xf32>
    %317 = vector.extract_strided_slice %312 {offsets = [4, 0], sizes = [1, 128], strides = [1, 1]} : vector<12x128xf32> to vector<1x128xf32>
    %318 = vector.extract_strided_slice %312 {offsets = [5, 0], sizes = [1, 128], strides = [1, 1]} : vector<12x128xf32> to vector<1x128xf32>
    %319 = vector.extract_strided_slice %312 {offsets = [6, 0], sizes = [1, 128], strides = [1, 1]} : vector<12x128xf32> to vector<1x128xf32>
    %320 = vector.extract_strided_slice %312 {offsets = [7, 0], sizes = [1, 128], strides = [1, 1]} : vector<12x128xf32> to vector<1x128xf32>
    %321 = vector.extract_strided_slice %312 {offsets = [8, 0], sizes = [1, 128], strides = [1, 1]} : vector<12x128xf32> to vector<1x128xf32>
    %322 = vector.extract_strided_slice %312 {offsets = [9, 0], sizes = [1, 128], strides = [1, 1]} : vector<12x128xf32> to vector<1x128xf32>
    %323 = vector.extract_strided_slice %312 {offsets = [10, 0], sizes = [1, 128], strides = [1, 1]} : vector<12x128xf32> to vector<1x128xf32>
    %324 = vector.extract_strided_slice %312 {offsets = [11, 0], sizes = [1, 128], strides = [1, 1]} : vector<12x128xf32> to vector<1x128xf32>
    %325 = arith.truncf %309 : vector<16x128xf32> to vector<16x128xbf16>
    %cst_98 = arith.constant dense<0.000000e+00> : vector<48x128xf32>
    %326 = tpu.matmul %87, %325, %cst_98 {dimension_numbers = #tpu.dot_dimension_numbers<[1], [0], [0], [1], [0, 0, 1, 1], [], []>} : vector<48x16xbf16>, vector<16x128xbf16>, vector<48x128xf32> -> vector<48x128xf32>
    %327 = arith.truncf %326 : vector<48x128xf32> to vector<48x128xbf16>
    %328 = tpu.concatenate %327, %79 in 1 : vector<48x128xbf16>, vector<48x128xbf16> -> vector<48x256xbf16>
    %c2_99 = arith.constant 2 : index
    %c0_100 = arith.constant 0 : index
    %c0_101 = arith.constant 0 : index
    %329 = vector.load %arg8[%c2_99, %c0_100, %c0_101] : memref<5x256x128xbf16, #tpu.memory_space<vmem>>, vector<1x256x128xbf16>
    %330 = vector.shape_cast %329 : vector<1x256x128xbf16> to vector<256x128xbf16>
    %cst_102 = arith.constant dense<0.000000e+00> : vector<48x128xf32>
    %331 = tpu.matmul %328, %330, %cst_102 {dimension_numbers = #tpu.dot_dimension_numbers<[1], [0], [0], [1], [0, 0, 1, 1], [], []>} : vector<48x256xbf16>, vector<256x128xbf16>, vector<48x128xf32> -> vector<48x128xf32>
    %332 = vector.broadcast %313 : vector<1x128xf32> to vector<48x128xf32>
    %333 = arith.addf %331, %332 : vector<48x128xf32>
    %cst_103 = arith.constant dense<0.000000e+00> : vector<48xf32>
    %334 = vector.multi_reduction <add>, %333, %cst_103 [1] : vector<48x128xf32> to vector<48xf32>
    %335 = vector.shape_cast %334 : vector<48xf32> to vector<48x1xf32>
    %cst_104 = arith.constant 3.125000e-02 : f32
    %336 = vector.broadcast %cst_104 : f32 to vector<48x1xf32>
    %337 = arith.mulf %335, %336 : vector<48x1xf32>
    %338 = vector.broadcast %337 : vector<48x1xf32> to vector<48x128xf32>
    %339 = arith.subf %333, %338 : vector<48x128xf32>
    %340 = vector.broadcast %4 : vector<1x128xf32> to vector<48x128xf32>
    %341 = arith.mulf %339, %340 : vector<48x128xf32>
    %342 = arith.mulf %341, %341 : vector<48x128xf32>
    %cst_105 = arith.constant dense<0.000000e+00> : vector<48xf32>
    %343 = vector.multi_reduction <add>, %342, %cst_105 [1] : vector<48x128xf32> to vector<48xf32>
    %344 = vector.shape_cast %343 : vector<48xf32> to vector<48x1xf32>
    %cst_106 = arith.constant 3.125000e-02 : f32
    %345 = vector.broadcast %cst_106 : f32 to vector<48x1xf32>
    %346 = arith.mulf %344, %345 : vector<48x1xf32>
    %cst_107 = arith.constant 9.99999974E-6 : f32
    %347 = vector.broadcast %cst_107 : f32 to vector<48x1xf32>
    %348 = arith.addf %346, %347 : vector<48x1xf32>
    %349 = math.rsqrt %348 : vector<48x1xf32>
    %350 = vector.broadcast %349 : vector<48x1xf32> to vector<48x128xf32>
    %351 = arith.mulf %341, %350 : vector<48x128xf32>
    %352 = vector.broadcast %314 : vector<1x128xf32> to vector<48x128xf32>
    %353 = arith.mulf %351, %352 : vector<48x128xf32>
    %354 = vector.broadcast %315 : vector<1x128xf32> to vector<48x128xf32>
    %355 = arith.addf %353, %354 : vector<48x128xf32>
    %cst_108 = arith.constant 0.000000e+00 : f32
    %356 = vector.broadcast %cst_108 : f32 to vector<48x128xf32>
    %357 = arith.maximumf %355, %356 : vector<48x128xf32>
    %cst_109 = arith.constant 1.000000e+00 : f32
    %358 = vector.broadcast %cst_109 : f32 to vector<1x128xf32>
    %359 = arith.addf %358, %324 : vector<1x128xf32>
    %360 = vector.broadcast %359 : vector<1x128xf32> to vector<16x128xf32>
    %361 = arith.mulf %360, %309 : vector<16x128xf32>
    %362 = arith.truncf %357 : vector<48x128xf32> to vector<48x128xbf16>
    %cst_110 = arith.constant dense<0.000000e+00> : vector<16x128xf32>
    %363 = tpu.matmul %95, %362, %cst_110 {dimension_numbers = #tpu.dot_dimension_numbers<[1], [0], [0], [1], [0, 0, 1, 1], [], []>} : vector<16x48xbf16>, vector<48x128xbf16>, vector<16x128xf32> -> vector<16x128xf32>
    %364 = arith.addf %361, %363 : vector<16x128xf32>
    %365 = arith.truncf %364 : vector<16x128xf32> to vector<16x128xbf16>
    %c2_111 = arith.constant 2 : index
    %c0_112 = arith.constant 0 : index
    %c0_113 = arith.constant 0 : index
    %366 = vector.load %arg9[%c2_111, %c0_112, %c0_113] : memref<5x128x128xbf16, #tpu.memory_space<vmem>>, vector<1x128x128xbf16>
    %367 = vector.shape_cast %366 : vector<1x128x128xbf16> to vector<128x128xbf16>
    %cst_114 = arith.constant dense<0.000000e+00> : vector<16x128xf32>
    %368 = tpu.matmul %365, %367, %cst_114 {dimension_numbers = #tpu.dot_dimension_numbers<[1], [0], [0], [1], [0, 0, 1, 1], [], []>} : vector<16x128xbf16>, vector<128x128xbf16>, vector<16x128xf32> -> vector<16x128xf32>
    %369 = vector.broadcast %316 : vector<1x128xf32> to vector<16x128xf32>
    %370 = arith.addf %368, %369 : vector<16x128xf32>
    %cst_115 = arith.constant dense<0.000000e+00> : vector<16xf32>
    %371 = vector.multi_reduction <add>, %370, %cst_115 [1] : vector<16x128xf32> to vector<16xf32>
    %372 = vector.shape_cast %371 : vector<16xf32> to vector<16x1xf32>
    %cst_116 = arith.constant 3.125000e-02 : f32
    %373 = vector.broadcast %cst_116 : f32 to vector<16x1xf32>
    %374 = arith.mulf %372, %373 : vector<16x1xf32>
    %375 = vector.broadcast %374 : vector<16x1xf32> to vector<16x128xf32>
    %376 = arith.subf %370, %375 : vector<16x128xf32>
    %377 = vector.broadcast %4 : vector<1x128xf32> to vector<16x128xf32>
    %378 = arith.mulf %376, %377 : vector<16x128xf32>
    %379 = arith.mulf %378, %378 : vector<16x128xf32>
    %cst_117 = arith.constant dense<0.000000e+00> : vector<16xf32>
    %380 = vector.multi_reduction <add>, %379, %cst_117 [1] : vector<16x128xf32> to vector<16xf32>
    %381 = vector.shape_cast %380 : vector<16xf32> to vector<16x1xf32>
    %cst_118 = arith.constant 3.125000e-02 : f32
    %382 = vector.broadcast %cst_118 : f32 to vector<16x1xf32>
    %383 = arith.mulf %381, %382 : vector<16x1xf32>
    %cst_119 = arith.constant 9.99999974E-6 : f32
    %384 = vector.broadcast %cst_119 : f32 to vector<16x1xf32>
    %385 = arith.addf %383, %384 : vector<16x1xf32>
    %386 = math.rsqrt %385 : vector<16x1xf32>
    %387 = vector.broadcast %386 : vector<16x1xf32> to vector<16x128xf32>
    %388 = arith.mulf %378, %387 : vector<16x128xf32>
    %389 = vector.broadcast %317 : vector<1x128xf32> to vector<16x128xf32>
    %390 = arith.mulf %388, %389 : vector<16x128xf32>
    %391 = vector.broadcast %318 : vector<1x128xf32> to vector<16x128xf32>
    %392 = arith.addf %390, %391 : vector<16x128xf32>
    %cst_120 = arith.constant 0.000000e+00 : f32
    %393 = vector.broadcast %cst_120 : f32 to vector<16x128xf32>
    %394 = arith.maximumf %392, %393 : vector<16x128xf32>
    %395 = arith.truncf %394 : vector<16x128xf32> to vector<16x128xbf16>
    %c2_121 = arith.constant 2 : index
    %c0_122 = arith.constant 0 : index
    %c0_123 = arith.constant 0 : index
    %396 = vector.load %arg10[%c2_121, %c0_122, %c0_123] : memref<5x128x128xbf16, #tpu.memory_space<vmem>>, vector<1x128x128xbf16>
    %397 = vector.shape_cast %396 : vector<1x128x128xbf16> to vector<128x128xbf16>
    %cst_124 = arith.constant dense<0.000000e+00> : vector<16x128xf32>
    %398 = tpu.matmul %395, %397, %cst_124 {dimension_numbers = #tpu.dot_dimension_numbers<[1], [0], [0], [1], [0, 0, 1, 1], [], []>} : vector<16x128xbf16>, vector<128x128xbf16>, vector<16x128xf32> -> vector<16x128xf32>
    %399 = vector.broadcast %319 : vector<1x128xf32> to vector<16x128xf32>
    %400 = arith.addf %398, %399 : vector<16x128xf32>
    %cst_125 = arith.constant 2.000000e+00 : f32
    %401 = vector.broadcast %cst_125 : f32 to vector<16x128xf32>
    %402 = arith.mulf %401, %309 : vector<16x128xf32>
    %403 = arith.addf %400, %402 : vector<16x128xf32>
    %404 = vector.broadcast %320 : vector<1x128xf32> to vector<16x128xf32>
    %405 = arith.subf %403, %404 : vector<16x128xf32>
    %cst_126 = arith.constant 9.99999974E-6 : f32
    %406 = vector.broadcast %cst_126 : f32 to vector<1x128xf32>
    %407 = arith.addf %321, %406 : vector<1x128xf32>
    %408 = math.rsqrt %407 : vector<1x128xf32>
    %409 = vector.broadcast %408 : vector<1x128xf32> to vector<16x128xf32>
    %410 = arith.mulf %405, %409 : vector<16x128xf32>
    %411 = vector.broadcast %322 : vector<1x128xf32> to vector<16x128xf32>
    %412 = arith.mulf %410, %411 : vector<16x128xf32>
    %413 = vector.broadcast %323 : vector<1x128xf32> to vector<16x128xf32>
    %414 = arith.addf %412, %413 : vector<16x128xf32>
    %cst_127 = arith.constant 0.000000e+00 : f32
    %415 = vector.broadcast %cst_127 : f32 to vector<16x128xf32>
    %416 = arith.maximumf %414, %415 : vector<16x128xf32>
    %417 = arith.addf %310, %416 : vector<16x128xf32>
    %c3 = arith.constant 3 : index
    %c0_128 = arith.constant 0 : index
    %c0_129 = arith.constant 0 : index
    %418 = vector.load %arg11[%c3, %c0_128, %c0_129] : memref<5x12x128xf32, #tpu.memory_space<vmem>>, vector<1x12x128xf32>
    %419 = vector.shape_cast %418 : vector<1x12x128xf32> to vector<12x128xf32>
    %420 = vector.extract_strided_slice %419 {offsets = [0, 0], sizes = [1, 128], strides = [1, 1]} : vector<12x128xf32> to vector<1x128xf32>
    %421 = vector.extract_strided_slice %419 {offsets = [1, 0], sizes = [1, 128], strides = [1, 1]} : vector<12x128xf32> to vector<1x128xf32>
    %422 = vector.extract_strided_slice %419 {offsets = [2, 0], sizes = [1, 128], strides = [1, 1]} : vector<12x128xf32> to vector<1x128xf32>
    %423 = vector.extract_strided_slice %419 {offsets = [3, 0], sizes = [1, 128], strides = [1, 1]} : vector<12x128xf32> to vector<1x128xf32>
    %424 = vector.extract_strided_slice %419 {offsets = [4, 0], sizes = [1, 128], strides = [1, 1]} : vector<12x128xf32> to vector<1x128xf32>
    %425 = vector.extract_strided_slice %419 {offsets = [5, 0], sizes = [1, 128], strides = [1, 1]} : vector<12x128xf32> to vector<1x128xf32>
    %426 = vector.extract_strided_slice %419 {offsets = [6, 0], sizes = [1, 128], strides = [1, 1]} : vector<12x128xf32> to vector<1x128xf32>
    %427 = vector.extract_strided_slice %419 {offsets = [7, 0], sizes = [1, 128], strides = [1, 1]} : vector<12x128xf32> to vector<1x128xf32>
    %428 = vector.extract_strided_slice %419 {offsets = [8, 0], sizes = [1, 128], strides = [1, 1]} : vector<12x128xf32> to vector<1x128xf32>
    %429 = vector.extract_strided_slice %419 {offsets = [9, 0], sizes = [1, 128], strides = [1, 1]} : vector<12x128xf32> to vector<1x128xf32>
    %430 = vector.extract_strided_slice %419 {offsets = [10, 0], sizes = [1, 128], strides = [1, 1]} : vector<12x128xf32> to vector<1x128xf32>
    %431 = vector.extract_strided_slice %419 {offsets = [11, 0], sizes = [1, 128], strides = [1, 1]} : vector<12x128xf32> to vector<1x128xf32>
    %432 = arith.truncf %416 : vector<16x128xf32> to vector<16x128xbf16>
    %cst_130 = arith.constant dense<0.000000e+00> : vector<48x128xf32>
    %433 = tpu.matmul %87, %432, %cst_130 {dimension_numbers = #tpu.dot_dimension_numbers<[1], [0], [0], [1], [0, 0, 1, 1], [], []>} : vector<48x16xbf16>, vector<16x128xbf16>, vector<48x128xf32> -> vector<48x128xf32>
    %434 = arith.truncf %433 : vector<48x128xf32> to vector<48x128xbf16>
    %435 = tpu.concatenate %434, %79 in 1 : vector<48x128xbf16>, vector<48x128xbf16> -> vector<48x256xbf16>
    %c3_131 = arith.constant 3 : index
    %c0_132 = arith.constant 0 : index
    %c0_133 = arith.constant 0 : index
    %436 = vector.load %arg8[%c3_131, %c0_132, %c0_133] : memref<5x256x128xbf16, #tpu.memory_space<vmem>>, vector<1x256x128xbf16>
    %437 = vector.shape_cast %436 : vector<1x256x128xbf16> to vector<256x128xbf16>
    %cst_134 = arith.constant dense<0.000000e+00> : vector<48x128xf32>
    %438 = tpu.matmul %435, %437, %cst_134 {dimension_numbers = #tpu.dot_dimension_numbers<[1], [0], [0], [1], [0, 0, 1, 1], [], []>} : vector<48x256xbf16>, vector<256x128xbf16>, vector<48x128xf32> -> vector<48x128xf32>
    %439 = vector.broadcast %420 : vector<1x128xf32> to vector<48x128xf32>
    %440 = arith.addf %438, %439 : vector<48x128xf32>
    %cst_135 = arith.constant dense<0.000000e+00> : vector<48xf32>
    %441 = vector.multi_reduction <add>, %440, %cst_135 [1] : vector<48x128xf32> to vector<48xf32>
    %442 = vector.shape_cast %441 : vector<48xf32> to vector<48x1xf32>
    %cst_136 = arith.constant 3.125000e-02 : f32
    %443 = vector.broadcast %cst_136 : f32 to vector<48x1xf32>
    %444 = arith.mulf %442, %443 : vector<48x1xf32>
    %445 = vector.broadcast %444 : vector<48x1xf32> to vector<48x128xf32>
    %446 = arith.subf %440, %445 : vector<48x128xf32>
    %447 = vector.broadcast %4 : vector<1x128xf32> to vector<48x128xf32>
    %448 = arith.mulf %446, %447 : vector<48x128xf32>
    %449 = arith.mulf %448, %448 : vector<48x128xf32>
    %cst_137 = arith.constant dense<0.000000e+00> : vector<48xf32>
    %450 = vector.multi_reduction <add>, %449, %cst_137 [1] : vector<48x128xf32> to vector<48xf32>
    %451 = vector.shape_cast %450 : vector<48xf32> to vector<48x1xf32>
    %cst_138 = arith.constant 3.125000e-02 : f32
    %452 = vector.broadcast %cst_138 : f32 to vector<48x1xf32>
    %453 = arith.mulf %451, %452 : vector<48x1xf32>
    %cst_139 = arith.constant 9.99999974E-6 : f32
    %454 = vector.broadcast %cst_139 : f32 to vector<48x1xf32>
    %455 = arith.addf %453, %454 : vector<48x1xf32>
    %456 = math.rsqrt %455 : vector<48x1xf32>
    %457 = vector.broadcast %456 : vector<48x1xf32> to vector<48x128xf32>
    %458 = arith.mulf %448, %457 : vector<48x128xf32>
    %459 = vector.broadcast %421 : vector<1x128xf32> to vector<48x128xf32>
    %460 = arith.mulf %458, %459 : vector<48x128xf32>
    %461 = vector.broadcast %422 : vector<1x128xf32> to vector<48x128xf32>
    %462 = arith.addf %460, %461 : vector<48x128xf32>
    %cst_140 = arith.constant 0.000000e+00 : f32
    %463 = vector.broadcast %cst_140 : f32 to vector<48x128xf32>
    %464 = arith.maximumf %462, %463 : vector<48x128xf32>
    %cst_141 = arith.constant 1.000000e+00 : f32
    %465 = vector.broadcast %cst_141 : f32 to vector<1x128xf32>
    %466 = arith.addf %465, %431 : vector<1x128xf32>
    %467 = vector.broadcast %466 : vector<1x128xf32> to vector<16x128xf32>
    %468 = arith.mulf %467, %416 : vector<16x128xf32>
    %469 = arith.truncf %464 : vector<48x128xf32> to vector<48x128xbf16>
    %cst_142 = arith.constant dense<0.000000e+00> : vector<16x128xf32>
    %470 = tpu.matmul %95, %469, %cst_142 {dimension_numbers = #tpu.dot_dimension_numbers<[1], [0], [0], [1], [0, 0, 1, 1], [], []>} : vector<16x48xbf16>, vector<48x128xbf16>, vector<16x128xf32> -> vector<16x128xf32>
    %471 = arith.addf %468, %470 : vector<16x128xf32>
    %472 = arith.truncf %471 : vector<16x128xf32> to vector<16x128xbf16>
    %c3_143 = arith.constant 3 : index
    %c0_144 = arith.constant 0 : index
    %c0_145 = arith.constant 0 : index
    %473 = vector.load %arg9[%c3_143, %c0_144, %c0_145] : memref<5x128x128xbf16, #tpu.memory_space<vmem>>, vector<1x128x128xbf16>
    %474 = vector.shape_cast %473 : vector<1x128x128xbf16> to vector<128x128xbf16>
    %cst_146 = arith.constant dense<0.000000e+00> : vector<16x128xf32>
    %475 = tpu.matmul %472, %474, %cst_146 {dimension_numbers = #tpu.dot_dimension_numbers<[1], [0], [0], [1], [0, 0, 1, 1], [], []>} : vector<16x128xbf16>, vector<128x128xbf16>, vector<16x128xf32> -> vector<16x128xf32>
    %476 = vector.broadcast %423 : vector<1x128xf32> to vector<16x128xf32>
    %477 = arith.addf %475, %476 : vector<16x128xf32>
    %cst_147 = arith.constant dense<0.000000e+00> : vector<16xf32>
    %478 = vector.multi_reduction <add>, %477, %cst_147 [1] : vector<16x128xf32> to vector<16xf32>
    %479 = vector.shape_cast %478 : vector<16xf32> to vector<16x1xf32>
    %cst_148 = arith.constant 3.125000e-02 : f32
    %480 = vector.broadcast %cst_148 : f32 to vector<16x1xf32>
    %481 = arith.mulf %479, %480 : vector<16x1xf32>
    %482 = vector.broadcast %481 : vector<16x1xf32> to vector<16x128xf32>
    %483 = arith.subf %477, %482 : vector<16x128xf32>
    %484 = vector.broadcast %4 : vector<1x128xf32> to vector<16x128xf32>
    %485 = arith.mulf %483, %484 : vector<16x128xf32>
    %486 = arith.mulf %485, %485 : vector<16x128xf32>
    %cst_149 = arith.constant dense<0.000000e+00> : vector<16xf32>
    %487 = vector.multi_reduction <add>, %486, %cst_149 [1] : vector<16x128xf32> to vector<16xf32>
    %488 = vector.shape_cast %487 : vector<16xf32> to vector<16x1xf32>
    %cst_150 = arith.constant 3.125000e-02 : f32
    %489 = vector.broadcast %cst_150 : f32 to vector<16x1xf32>
    %490 = arith.mulf %488, %489 : vector<16x1xf32>
    %cst_151 = arith.constant 9.99999974E-6 : f32
    %491 = vector.broadcast %cst_151 : f32 to vector<16x1xf32>
    %492 = arith.addf %490, %491 : vector<16x1xf32>
    %493 = math.rsqrt %492 : vector<16x1xf32>
    %494 = vector.broadcast %493 : vector<16x1xf32> to vector<16x128xf32>
    %495 = arith.mulf %485, %494 : vector<16x128xf32>
    %496 = vector.broadcast %424 : vector<1x128xf32> to vector<16x128xf32>
    %497 = arith.mulf %495, %496 : vector<16x128xf32>
    %498 = vector.broadcast %425 : vector<1x128xf32> to vector<16x128xf32>
    %499 = arith.addf %497, %498 : vector<16x128xf32>
    %cst_152 = arith.constant 0.000000e+00 : f32
    %500 = vector.broadcast %cst_152 : f32 to vector<16x128xf32>
    %501 = arith.maximumf %499, %500 : vector<16x128xf32>
    %502 = arith.truncf %501 : vector<16x128xf32> to vector<16x128xbf16>
    %c3_153 = arith.constant 3 : index
    %c0_154 = arith.constant 0 : index
    %c0_155 = arith.constant 0 : index
    %503 = vector.load %arg10[%c3_153, %c0_154, %c0_155] : memref<5x128x128xbf16, #tpu.memory_space<vmem>>, vector<1x128x128xbf16>
    %504 = vector.shape_cast %503 : vector<1x128x128xbf16> to vector<128x128xbf16>
    %cst_156 = arith.constant dense<0.000000e+00> : vector<16x128xf32>
    %505 = tpu.matmul %502, %504, %cst_156 {dimension_numbers = #tpu.dot_dimension_numbers<[1], [0], [0], [1], [0, 0, 1, 1], [], []>} : vector<16x128xbf16>, vector<128x128xbf16>, vector<16x128xf32> -> vector<16x128xf32>
    %506 = vector.broadcast %426 : vector<1x128xf32> to vector<16x128xf32>
    %507 = arith.addf %505, %506 : vector<16x128xf32>
    %cst_157 = arith.constant 2.000000e+00 : f32
    %508 = vector.broadcast %cst_157 : f32 to vector<16x128xf32>
    %509 = arith.mulf %508, %416 : vector<16x128xf32>
    %510 = arith.addf %507, %509 : vector<16x128xf32>
    %511 = vector.broadcast %427 : vector<1x128xf32> to vector<16x128xf32>
    %512 = arith.subf %510, %511 : vector<16x128xf32>
    %cst_158 = arith.constant 9.99999974E-6 : f32
    %513 = vector.broadcast %cst_158 : f32 to vector<1x128xf32>
    %514 = arith.addf %428, %513 : vector<1x128xf32>
    %515 = math.rsqrt %514 : vector<1x128xf32>
    %516 = vector.broadcast %515 : vector<1x128xf32> to vector<16x128xf32>
    %517 = arith.mulf %512, %516 : vector<16x128xf32>
    %518 = vector.broadcast %429 : vector<1x128xf32> to vector<16x128xf32>
    %519 = arith.mulf %517, %518 : vector<16x128xf32>
    %520 = vector.broadcast %430 : vector<1x128xf32> to vector<16x128xf32>
    %521 = arith.addf %519, %520 : vector<16x128xf32>
    %cst_159 = arith.constant 0.000000e+00 : f32
    %522 = vector.broadcast %cst_159 : f32 to vector<16x128xf32>
    %523 = arith.maximumf %521, %522 : vector<16x128xf32>
    %524 = arith.addf %417, %523 : vector<16x128xf32>
    %c4 = arith.constant 4 : index
    %c0_160 = arith.constant 0 : index
    %c0_161 = arith.constant 0 : index
    %525 = vector.load %arg11[%c4, %c0_160, %c0_161] : memref<5x12x128xf32, #tpu.memory_space<vmem>>, vector<1x12x128xf32>
    %526 = vector.shape_cast %525 : vector<1x12x128xf32> to vector<12x128xf32>
    %527 = vector.extract_strided_slice %526 {offsets = [0, 0], sizes = [1, 128], strides = [1, 1]} : vector<12x128xf32> to vector<1x128xf32>
    %528 = vector.extract_strided_slice %526 {offsets = [1, 0], sizes = [1, 128], strides = [1, 1]} : vector<12x128xf32> to vector<1x128xf32>
    %529 = vector.extract_strided_slice %526 {offsets = [2, 0], sizes = [1, 128], strides = [1, 1]} : vector<12x128xf32> to vector<1x128xf32>
    %530 = vector.extract_strided_slice %526 {offsets = [3, 0], sizes = [1, 128], strides = [1, 1]} : vector<12x128xf32> to vector<1x128xf32>
    %531 = vector.extract_strided_slice %526 {offsets = [4, 0], sizes = [1, 128], strides = [1, 1]} : vector<12x128xf32> to vector<1x128xf32>
    %532 = vector.extract_strided_slice %526 {offsets = [5, 0], sizes = [1, 128], strides = [1, 1]} : vector<12x128xf32> to vector<1x128xf32>
    %533 = vector.extract_strided_slice %526 {offsets = [6, 0], sizes = [1, 128], strides = [1, 1]} : vector<12x128xf32> to vector<1x128xf32>
    %534 = vector.extract_strided_slice %526 {offsets = [7, 0], sizes = [1, 128], strides = [1, 1]} : vector<12x128xf32> to vector<1x128xf32>
    %535 = vector.extract_strided_slice %526 {offsets = [8, 0], sizes = [1, 128], strides = [1, 1]} : vector<12x128xf32> to vector<1x128xf32>
    %536 = vector.extract_strided_slice %526 {offsets = [9, 0], sizes = [1, 128], strides = [1, 1]} : vector<12x128xf32> to vector<1x128xf32>
    %537 = vector.extract_strided_slice %526 {offsets = [10, 0], sizes = [1, 128], strides = [1, 1]} : vector<12x128xf32> to vector<1x128xf32>
    %538 = vector.extract_strided_slice %526 {offsets = [11, 0], sizes = [1, 128], strides = [1, 1]} : vector<12x128xf32> to vector<1x128xf32>
    %539 = arith.truncf %523 : vector<16x128xf32> to vector<16x128xbf16>
    %cst_162 = arith.constant dense<0.000000e+00> : vector<48x128xf32>
    %540 = tpu.matmul %87, %539, %cst_162 {dimension_numbers = #tpu.dot_dimension_numbers<[1], [0], [0], [1], [0, 0, 1, 1], [], []>} : vector<48x16xbf16>, vector<16x128xbf16>, vector<48x128xf32> -> vector<48x128xf32>
    %541 = arith.truncf %540 : vector<48x128xf32> to vector<48x128xbf16>
    %542 = tpu.concatenate %541, %79 in 1 : vector<48x128xbf16>, vector<48x128xbf16> -> vector<48x256xbf16>
    %c4_163 = arith.constant 4 : index
    %c0_164 = arith.constant 0 : index
    %c0_165 = arith.constant 0 : index
    %543 = vector.load %arg8[%c4_163, %c0_164, %c0_165] : memref<5x256x128xbf16, #tpu.memory_space<vmem>>, vector<1x256x128xbf16>
    %544 = vector.shape_cast %543 : vector<1x256x128xbf16> to vector<256x128xbf16>
    %cst_166 = arith.constant dense<0.000000e+00> : vector<48x128xf32>
    %545 = tpu.matmul %542, %544, %cst_166 {dimension_numbers = #tpu.dot_dimension_numbers<[1], [0], [0], [1], [0, 0, 1, 1], [], []>} : vector<48x256xbf16>, vector<256x128xbf16>, vector<48x128xf32> -> vector<48x128xf32>
    %546 = vector.broadcast %527 : vector<1x128xf32> to vector<48x128xf32>
    %547 = arith.addf %545, %546 : vector<48x128xf32>
    %cst_167 = arith.constant dense<0.000000e+00> : vector<48xf32>
    %548 = vector.multi_reduction <add>, %547, %cst_167 [1] : vector<48x128xf32> to vector<48xf32>
    %549 = vector.shape_cast %548 : vector<48xf32> to vector<48x1xf32>
    %cst_168 = arith.constant 3.125000e-02 : f32
    %550 = vector.broadcast %cst_168 : f32 to vector<48x1xf32>
    %551 = arith.mulf %549, %550 : vector<48x1xf32>
    %552 = vector.broadcast %551 : vector<48x1xf32> to vector<48x128xf32>
    %553 = arith.subf %547, %552 : vector<48x128xf32>
    %554 = vector.broadcast %4 : vector<1x128xf32> to vector<48x128xf32>
    %555 = arith.mulf %553, %554 : vector<48x128xf32>
    %556 = arith.mulf %555, %555 : vector<48x128xf32>
    %cst_169 = arith.constant dense<0.000000e+00> : vector<48xf32>
    %557 = vector.multi_reduction <add>, %556, %cst_169 [1] : vector<48x128xf32> to vector<48xf32>
    %558 = vector.shape_cast %557 : vector<48xf32> to vector<48x1xf32>
    %cst_170 = arith.constant 3.125000e-02 : f32
    %559 = vector.broadcast %cst_170 : f32 to vector<48x1xf32>
    %560 = arith.mulf %558, %559 : vector<48x1xf32>
    %cst_171 = arith.constant 9.99999974E-6 : f32
    %561 = vector.broadcast %cst_171 : f32 to vector<48x1xf32>
    %562 = arith.addf %560, %561 : vector<48x1xf32>
    %563 = math.rsqrt %562 : vector<48x1xf32>
    %564 = vector.broadcast %563 : vector<48x1xf32> to vector<48x128xf32>
    %565 = arith.mulf %555, %564 : vector<48x128xf32>
    %566 = vector.broadcast %528 : vector<1x128xf32> to vector<48x128xf32>
    %567 = arith.mulf %565, %566 : vector<48x128xf32>
    %568 = vector.broadcast %529 : vector<1x128xf32> to vector<48x128xf32>
    %569 = arith.addf %567, %568 : vector<48x128xf32>
    %cst_172 = arith.constant 0.000000e+00 : f32
    %570 = vector.broadcast %cst_172 : f32 to vector<48x128xf32>
    %571 = arith.maximumf %569, %570 : vector<48x128xf32>
    %cst_173 = arith.constant 1.000000e+00 : f32
    %572 = vector.broadcast %cst_173 : f32 to vector<1x128xf32>
    %573 = arith.addf %572, %538 : vector<1x128xf32>
    %574 = vector.broadcast %573 : vector<1x128xf32> to vector<16x128xf32>
    %575 = arith.mulf %574, %523 : vector<16x128xf32>
    %576 = arith.truncf %571 : vector<48x128xf32> to vector<48x128xbf16>
    %cst_174 = arith.constant dense<0.000000e+00> : vector<16x128xf32>
    %577 = tpu.matmul %95, %576, %cst_174 {dimension_numbers = #tpu.dot_dimension_numbers<[1], [0], [0], [1], [0, 0, 1, 1], [], []>} : vector<16x48xbf16>, vector<48x128xbf16>, vector<16x128xf32> -> vector<16x128xf32>
    %578 = arith.addf %575, %577 : vector<16x128xf32>
    %579 = arith.truncf %578 : vector<16x128xf32> to vector<16x128xbf16>
    %c4_175 = arith.constant 4 : index
    %c0_176 = arith.constant 0 : index
    %c0_177 = arith.constant 0 : index
    %580 = vector.load %arg9[%c4_175, %c0_176, %c0_177] : memref<5x128x128xbf16, #tpu.memory_space<vmem>>, vector<1x128x128xbf16>
    %581 = vector.shape_cast %580 : vector<1x128x128xbf16> to vector<128x128xbf16>
    %cst_178 = arith.constant dense<0.000000e+00> : vector<16x128xf32>
    %582 = tpu.matmul %579, %581, %cst_178 {dimension_numbers = #tpu.dot_dimension_numbers<[1], [0], [0], [1], [0, 0, 1, 1], [], []>} : vector<16x128xbf16>, vector<128x128xbf16>, vector<16x128xf32> -> vector<16x128xf32>
    %583 = vector.broadcast %530 : vector<1x128xf32> to vector<16x128xf32>
    %584 = arith.addf %582, %583 : vector<16x128xf32>
    %cst_179 = arith.constant dense<0.000000e+00> : vector<16xf32>
    %585 = vector.multi_reduction <add>, %584, %cst_179 [1] : vector<16x128xf32> to vector<16xf32>
    %586 = vector.shape_cast %585 : vector<16xf32> to vector<16x1xf32>
    %cst_180 = arith.constant 3.125000e-02 : f32
    %587 = vector.broadcast %cst_180 : f32 to vector<16x1xf32>
    %588 = arith.mulf %586, %587 : vector<16x1xf32>
    %589 = vector.broadcast %588 : vector<16x1xf32> to vector<16x128xf32>
    %590 = arith.subf %584, %589 : vector<16x128xf32>
    %591 = vector.broadcast %4 : vector<1x128xf32> to vector<16x128xf32>
    %592 = arith.mulf %590, %591 : vector<16x128xf32>
    %593 = arith.mulf %592, %592 : vector<16x128xf32>
    %cst_181 = arith.constant dense<0.000000e+00> : vector<16xf32>
    %594 = vector.multi_reduction <add>, %593, %cst_181 [1] : vector<16x128xf32> to vector<16xf32>
    %595 = vector.shape_cast %594 : vector<16xf32> to vector<16x1xf32>
    %cst_182 = arith.constant 3.125000e-02 : f32
    %596 = vector.broadcast %cst_182 : f32 to vector<16x1xf32>
    %597 = arith.mulf %595, %596 : vector<16x1xf32>
    %cst_183 = arith.constant 9.99999974E-6 : f32
    %598 = vector.broadcast %cst_183 : f32 to vector<16x1xf32>
    %599 = arith.addf %597, %598 : vector<16x1xf32>
    %600 = math.rsqrt %599 : vector<16x1xf32>
    %601 = vector.broadcast %600 : vector<16x1xf32> to vector<16x128xf32>
    %602 = arith.mulf %592, %601 : vector<16x128xf32>
    %603 = vector.broadcast %531 : vector<1x128xf32> to vector<16x128xf32>
    %604 = arith.mulf %602, %603 : vector<16x128xf32>
    %605 = vector.broadcast %532 : vector<1x128xf32> to vector<16x128xf32>
    %606 = arith.addf %604, %605 : vector<16x128xf32>
    %cst_184 = arith.constant 0.000000e+00 : f32
    %607 = vector.broadcast %cst_184 : f32 to vector<16x128xf32>
    %608 = arith.maximumf %606, %607 : vector<16x128xf32>
    %609 = arith.truncf %608 : vector<16x128xf32> to vector<16x128xbf16>
    %c4_185 = arith.constant 4 : index
    %c0_186 = arith.constant 0 : index
    %c0_187 = arith.constant 0 : index
    %610 = vector.load %arg10[%c4_185, %c0_186, %c0_187] : memref<5x128x128xbf16, #tpu.memory_space<vmem>>, vector<1x128x128xbf16>
    %611 = vector.shape_cast %610 : vector<1x128x128xbf16> to vector<128x128xbf16>
    %cst_188 = arith.constant dense<0.000000e+00> : vector<16x128xf32>
    %612 = tpu.matmul %609, %611, %cst_188 {dimension_numbers = #tpu.dot_dimension_numbers<[1], [0], [0], [1], [0, 0, 1, 1], [], []>} : vector<16x128xbf16>, vector<128x128xbf16>, vector<16x128xf32> -> vector<16x128xf32>
    %613 = vector.broadcast %533 : vector<1x128xf32> to vector<16x128xf32>
    %614 = arith.addf %612, %613 : vector<16x128xf32>
    %cst_189 = arith.constant 2.000000e+00 : f32
    %615 = vector.broadcast %cst_189 : f32 to vector<16x128xf32>
    %616 = arith.mulf %615, %523 : vector<16x128xf32>
    %617 = arith.addf %614, %616 : vector<16x128xf32>
    %618 = vector.broadcast %534 : vector<1x128xf32> to vector<16x128xf32>
    %619 = arith.subf %617, %618 : vector<16x128xf32>
    %cst_190 = arith.constant 9.99999974E-6 : f32
    %620 = vector.broadcast %cst_190 : f32 to vector<1x128xf32>
    %621 = arith.addf %535, %620 : vector<1x128xf32>
    %622 = math.rsqrt %621 : vector<1x128xf32>
    %623 = vector.broadcast %622 : vector<1x128xf32> to vector<16x128xf32>
    %624 = arith.mulf %619, %623 : vector<16x128xf32>
    %625 = vector.broadcast %536 : vector<1x128xf32> to vector<16x128xf32>
    %626 = arith.mulf %624, %625 : vector<16x128xf32>
    %627 = vector.broadcast %537 : vector<1x128xf32> to vector<16x128xf32>
    %628 = arith.addf %626, %627 : vector<16x128xf32>
    %cst_191 = arith.constant 0.000000e+00 : f32
    %629 = vector.broadcast %cst_191 : f32 to vector<16x128xf32>
    %630 = arith.maximumf %628, %629 : vector<16x128xf32>
    %631 = arith.addf %524, %630 : vector<16x128xf32>
    %c0_192 = arith.constant 0 : index
    %c0_193 = arith.constant 0 : index
    %632 = vector.load %arg16[%c0_192, %c0_193] : memref<4x128xf32, #tpu.memory_space<vmem>>, vector<4x128xf32>
    %633 = vector.extract_strided_slice %632 {offsets = [0, 0], sizes = [1, 128], strides = [1, 1]} : vector<4x128xf32> to vector<1x128xf32>
    %634 = vector.extract_strided_slice %632 {offsets = [1, 0], sizes = [1, 128], strides = [1, 1]} : vector<4x128xf32> to vector<1x128xf32>
    %635 = vector.extract_strided_slice %632 {offsets = [2, 0], sizes = [1, 128], strides = [1, 1]} : vector<4x128xf32> to vector<1x128xf32>
    %636 = vector.extract_strided_slice %632 {offsets = [3, 0], sizes = [1, 128], strides = [1, 1]} : vector<4x128xf32> to vector<1x128xf32>
    %cst_194 = arith.constant dense<0.000000e+00> : vector<128xf32>
    %637 = vector.multi_reduction <add>, %631, %cst_194 [0] : vector<16x128xf32> to vector<128xf32>
    %638 = vector.shape_cast %637 : vector<128xf32> to vector<1x128xf32>
    %cst_195 = arith.constant 6.250000e-02 : f32
    %639 = vector.broadcast %cst_195 : f32 to vector<1x128xf32>
    %640 = arith.mulf %638, %639 : vector<1x128xf32>
    %641 = arith.truncf %640 : vector<1x128xf32> to vector<1x128xbf16>
    %c0_196 = arith.constant 0 : index
    %c0_197 = arith.constant 0 : index
    %642 = vector.load %arg12[%c0_196, %c0_197] : memref<128x128xbf16, #tpu.memory_space<vmem>>, vector<128x128xbf16>
    %cst_198 = arith.constant dense<0.000000e+00> : vector<1x128xf32>
    %643 = tpu.matmul %641, %642, %cst_198 {dimension_numbers = #tpu.dot_dimension_numbers<[1], [0], [0], [1], [0, 0, 1, 1], [], []>} : vector<1x128xbf16>, vector<128x128xbf16>, vector<1x128xf32> -> vector<1x128xf32>
    %c0_199 = arith.constant 0 : index
    %c0_200 = arith.constant 0 : index
    %644 = vector.load %arg15[%c0_199, %c0_200] : memref<1x128xf32, #tpu.memory_space<vmem>>, vector<1x128xf32>
    %645 = arith.addf %643, %644 : vector<1x128xf32>
    %cst_201 = arith.constant 0.000000e+00 : f32
    %646 = vector.broadcast %cst_201 : f32 to vector<1x128xf32>
    %647 = arith.maximumf %645, %646 : vector<1x128xf32>
    %648 = arith.truncf %647 : vector<1x128xf32> to vector<1x128xbf16>
    %c0_202 = arith.constant 0 : index
    %c0_203 = arith.constant 0 : index
    %649 = vector.load %arg13[%c0_202, %c0_203] : memref<128x128xbf16, #tpu.memory_space<vmem>>, vector<128x128xbf16>
    %cst_204 = arith.constant dense<0.000000e+00> : vector<1x128xf32>
    %650 = tpu.matmul %648, %649, %cst_204 {dimension_numbers = #tpu.dot_dimension_numbers<[1], [0], [0], [1], [0, 0, 1, 1], [], []>} : vector<1x128xbf16>, vector<128x128xbf16>, vector<1x128xf32> -> vector<1x128xf32>
    %651 = arith.addf %650, %633 : vector<1x128xf32>
    %652 = arith.truncf %651 : vector<1x128xf32> to vector<1x128xbf16>
    %c0_205 = arith.constant 0 : index
    %c0_206 = arith.constant 0 : index
    %653 = vector.load %arg14[%c0_205, %c0_206] : memref<128x128xbf16, #tpu.memory_space<vmem>>, vector<128x128xbf16>
    %cst_207 = arith.constant dense<0.000000e+00> : vector<1x128xf32>
    %654 = tpu.matmul %652, %653, %cst_207 {dimension_numbers = #tpu.dot_dimension_numbers<[1], [0], [0], [1], [0, 0, 1, 1], [], []>} : vector<1x128xbf16>, vector<128x128xbf16>, vector<1x128xf32> -> vector<1x128xf32>
    %655 = arith.addf %654, %634 : vector<1x128xf32>
    %cst_208 = arith.constant dense<0.000000e+00> : vector<1xf32>
    %656 = vector.multi_reduction <add>, %655, %cst_208 [1] : vector<1x128xf32> to vector<1xf32>
    %657 = vector.shape_cast %656 : vector<1xf32> to vector<1x1xf32>
    %cst_209 = arith.constant 1.562500e-02 : f32
    %658 = vector.broadcast %cst_209 : f32 to vector<1x1xf32>
    %659 = arith.mulf %657, %658 : vector<1x1xf32>
    %660 = vector.broadcast %659 : vector<1x1xf32> to vector<1x128xf32>
    %661 = arith.subf %655, %660 : vector<1x128xf32>
    %662 = arith.mulf %661, %9 : vector<1x128xf32>
    %663 = arith.mulf %662, %662 : vector<1x128xf32>
    %cst_210 = arith.constant dense<0.000000e+00> : vector<1xf32>
    %664 = vector.multi_reduction <add>, %663, %cst_210 [1] : vector<1x128xf32> to vector<1xf32>
    %665 = vector.shape_cast %664 : vector<1xf32> to vector<1x1xf32>
    %cst_211 = arith.constant 1.562500e-02 : f32
    %666 = vector.broadcast %cst_211 : f32 to vector<1x1xf32>
    %667 = arith.mulf %665, %666 : vector<1x1xf32>
    %cst_212 = arith.constant 9.99999974E-6 : f32
    %668 = vector.broadcast %cst_212 : f32 to vector<1x1xf32>
    %669 = arith.addf %667, %668 : vector<1x1xf32>
    %670 = math.rsqrt %669 : vector<1x1xf32>
    %671 = vector.broadcast %670 : vector<1x1xf32> to vector<1x128xf32>
    %672 = arith.mulf %662, %671 : vector<1x128xf32>
    %673 = arith.mulf %672, %635 : vector<1x128xf32>
    %674 = arith.addf %673, %636 : vector<1x128xf32>
    %cst_213 = arith.constant 0.000000e+00 : f32
    %675 = vector.broadcast %cst_213 : f32 to vector<1x128xf32>
    %676 = arith.maximumf %674, %675 : vector<1x128xf32>
    %c0_214 = arith.constant 0 : index
    %c0_215 = arith.constant 0 : index
    %c0_216 = arith.constant 0 : index
    %677 = vector.load %arg17[%c0_214, %c0_215, %c0_216] : memref<1x1x128xf32, #tpu.memory_space<vmem>>, vector<1x1x128xf32>
    %678 = vector.shape_cast %677 : vector<1x1x128xf32> to vector<1x128xf32>
    %679 = vector.shape_cast %676 : vector<1x128xf32> to vector<1x1x128xf32>
    tpu.vector_store %arg17[%c0_214, %c0_215, %c0_216], %679 {strides = array<i32>} : memref<1x1x128xf32, #tpu.memory_space<vmem>>, vector<1x1x128xf32>,
    return
  }
  func.func @transform_0(%arg0: i32) -> (i32, i32, i32) {
    %c0_i32 = arith.constant 0 : i32
    %c0_i32_0 = arith.constant 0 : i32
    %c0_i32_1 = arith.constant 0 : i32
    return %arg0, %c0_i32, %c0_i32_0 : i32, i32, i32
  }
  func.func @transform_1(%arg0: i32) -> (i32, i32, i32) {
    %c0_i32 = arith.constant 0 : i32
    %c0_i32_0 = arith.constant 0 : i32
    %c0_i32_1 = arith.constant 0 : i32
    return %arg0, %c0_i32, %c0_i32_0 : i32, i32, i32
  }
  func.func @transform_2(%arg0: i32) -> (i32, i32, i32) {
    %c0_i32 = arith.constant 0 : i32
    %c0_i32_0 = arith.constant 0 : i32
    %c0_i32_1 = arith.constant 0 : i32
    return %arg0, %c0_i32, %c0_i32_0 : i32, i32, i32
  }
  func.func @transform_3(%arg0: i32) -> (i32, i32, i32) {
    %c0_i32 = arith.constant 0 : i32
    %c0_i32_0 = arith.constant 0 : i32
    %c0_i32_1 = arith.constant 0 : i32
    return %arg0, %c0_i32, %c0_i32_0 : i32, i32, i32
  }
  func.func @transform_4(%arg0: i32) -> (i32, i32) {
    %c0_i32 = arith.constant 0 : i32
    %c0_i32_0 = arith.constant 0 : i32
    %c0_i32_1 = arith.constant 0 : i32
    return %c0_i32, %c0_i32_0 : i32, i32
  }
  func.func @transform_5(%arg0: i32) -> (i32, i32) {
    %c0_i32 = arith.constant 0 : i32
    %c0_i32_0 = arith.constant 0 : i32
    %c0_i32_1 = arith.constant 0 : i32
    return %c0_i32, %c0_i32_0 : i32, i32
  }
  func.func @transform_6(%arg0: i32) -> (i32, i32) {
    %c0_i32 = arith.constant 0 : i32
    %c0_i32_0 = arith.constant 0 : i32
    %c0_i32_1 = arith.constant 0 : i32
    return %c0_i32, %c0_i32_0 : i32, i32
  }
  func.func @transform_7(%arg0: i32) -> (i32, i32, i32) {
    %c0_i32 = arith.constant 0 : i32
    %c0_i32_0 = arith.constant 0 : i32
    %c0_i32_1 = arith.constant 0 : i32
    %c0_i32_2 = arith.constant 0 : i32
    return %c0_i32, %c0_i32_0, %c0_i32_1 : i32, i32, i32
  }
  func.func @transform_8(%arg0: i32) -> (i32, i32, i32) {
    %c0_i32 = arith.constant 0 : i32
    %c0_i32_0 = arith.constant 0 : i32
    %c0_i32_1 = arith.constant 0 : i32
    %c0_i32_2 = arith.constant 0 : i32
    return %c0_i32, %c0_i32_0, %c0_i32_1 : i32, i32, i32
  }
  func.func @transform_9(%arg0: i32) -> (i32, i32, i32) {
    %c0_i32 = arith.constant 0 : i32
    %c0_i32_0 = arith.constant 0 : i32
    %c0_i32_1 = arith.constant 0 : i32
    %c0_i32_2 = arith.constant 0 : i32
    return %c0_i32, %c0_i32_0, %c0_i32_1 : i32, i32, i32
  }
  func.func @transform_10(%arg0: i32) -> (i32, i32, i32) {
    %c0_i32 = arith.constant 0 : i32
    %c0_i32_0 = arith.constant 0 : i32
    %c0_i32_1 = arith.constant 0 : i32
    %c0_i32_2 = arith.constant 0 : i32
    return %c0_i32, %c0_i32_0, %c0_i32_1 : i32, i32, i32
  }
  func.func @transform_11(%arg0: i32) -> (i32, i32) {
    %c0_i32 = arith.constant 0 : i32
    %c0_i32_0 = arith.constant 0 : i32
    %c0_i32_1 = arith.constant 0 : i32
    return %c0_i32, %c0_i32_0 : i32, i32
  }
  func.func @transform_12(%arg0: i32) -> (i32, i32) {
    %c0_i32 = arith.constant 0 : i32
    %c0_i32_0 = arith.constant 0 : i32
    %c0_i32_1 = arith.constant 0 : i32
    return %c0_i32, %c0_i32_0 : i32, i32
  }
  func.func @transform_13(%arg0: i32) -> (i32, i32) {
    %c0_i32 = arith.constant 0 : i32
    %c0_i32_0 = arith.constant 0 : i32
    %c0_i32_1 = arith.constant 0 : i32
    return %c0_i32, %c0_i32_0 : i32, i32
  }
  func.func @transform_14(%arg0: i32) -> (i32, i32) {
    %c0_i32 = arith.constant 0 : i32
    %c0_i32_0 = arith.constant 0 : i32
    %c0_i32_1 = arith.constant 0 : i32
    return %c0_i32, %c0_i32_0 : i32, i32
  }
  func.func @transform_15(%arg0: i32) -> (i32, i32) {
    %c0_i32 = arith.constant 0 : i32
    %c0_i32_0 = arith.constant 0 : i32
    %c0_i32_1 = arith.constant 0 : i32
    return %c0_i32, %c0_i32_0 : i32, i32
  }
  func.func @transform_16(%arg0: i32) -> (i32, i32, i32) {
    %c0_i32 = arith.constant 0 : i32
    %c0_i32_0 = arith.constant 0 : i32
    %c0_i32_1 = arith.constant 0 : i32
    return %arg0, %c0_i32, %c0_i32_0 : i32, i32, i32
  }
}

</mosaic_0001>

<llo_original>
// kernel: gin_forward.1
$region0: #{gin_forward.1}
  #allocation0 [shape = 'u32[]', space=smem, size = 0x4, offset = 0x4, fixed_abs, tag = 'smem constant byte address 0x4 - core index']
  #allocation1 [shape = 'u32[144,128]{1,0:T(1,128)}', space=vmem, size = 0x12000, scoped, tag = 'internal scratch']
  %s0 = inlined_call_operand.vmem [shape: s32[8,48,1], index: 0, kind: input, shape index: {}]
  %s1 = inlined_call_operand.vmem [shape: s32[8,1,48], index: 1, kind: input, shape index: {}]
  %s2 = inlined_call_operand.vmem [shape: f32[8,16,128], index: 2, kind: input, shape index: {}]
  %s3 = inlined_call_operand.vmem [shape: f32[8,48,128], index: 3, kind: input, shape index: {}]
  %s4 = inlined_call_operand.vmem [shape: bf16[128,128], index: 4, kind: input, shape index: {}]
  %s5 = inlined_call_operand.vmem [shape: bf16[128,128], index: 5, kind: input, shape index: {}]
  %s6 = inlined_call_operand.vmem [shape: f32[6,128], index: 6, kind: input, shape index: {}]
  %s7 = inlined_call_operand.vmem [shape: bf16[5,256,128], index: 7, kind: input, shape index: {}]
  %s8 = inlined_call_operand.vmem [shape: bf16[5,128,128], index: 8, kind: input, shape index: {}]
  %s9 = inlined_call_operand.vmem [shape: bf16[5,128,128], index: 9, kind: input, shape index: {}]
  %s10 = inlined_call_operand.vmem [shape: f32[5,12,128], index: 10, kind: input, shape index: {}]
  %s11 = inlined_call_operand.vmem [shape: bf16[128,128], index: 11, kind: input, shape index: {}]
  %s12 = inlined_call_operand.vmem [shape: bf16[128,128], index: 12, kind: input, shape index: {}]
  %s13 = inlined_call_operand.vmem [shape: bf16[128,128], index: 13, kind: input, shape index: {}]
  %s14 = inlined_call_operand.vmem [shape: f32[1,128], index: 14, kind: input, shape index: {}]
  %s15 = inlined_call_operand.vmem [shape: f32[4,128], index: 15, kind: input, shape index: {}]
  %s16 = inlined_call_operand.hbm [shape: f32[8,1,128], index: 16, kind: output, shape index: {}]
  %s17 = sld [smem:[#allocation0]]
  $region97: #{gin_forward.1} parent=0
    _
  %s19 = ssub.s32 1, %s17
  %s20 = scalar_select 0, %s19, %s17
  $region1: #{gin_forward.1} parent=0
    #allocation2 [shape = 'u8[1024]{0}', space=vmem, size = 0x400, scoped, tag = 'output window, operand 0']
    #allocation3 [shape = 's32[2]{0}', space=sflag, size = 0x8, scoped, tag = 'scoped memory for gin_forward.1']
    %21 = vsyncpa [#allocation3], 0
    %s22 = scalar_lea.sflag [#allocation3], 1
    %23 = vsyncpa %s22, 0
    loop: start=0, step=1, limit=10
    $region2: #{gin_forward.1} parent=1 // loop_pre_header
      _
    $region3: #{gin_forward.1} parent=1 // loop_header
      %s25 = sphi 0, %s29
      %p26 = scmp.ge.s32.totalorder %s25, 10
      %s35 = sphi 0, %s37
      %s38 = sphi 0, %s35
      %s39 = sphi 0, %s38
      %s55 = sphi 0, %s39
      %s61 = sphi 0, %s63
      %s64 = sphi 0, %s61
      %s65 = sphi 0, %s64
      %s81 = sphi 0, %s65
      %s87 = sphi 0, %s89
      %s90 = sphi 0, %s87
      %s91 = sphi 0, %s90
      %s107 = sphi 0, %s91
      %s113 = sphi 0, %s115
      %s116 = sphi 0, %s113
      %s117 = sphi 0, %s116
      %s133 = sphi 0, %s117
      %s137 = sphi 0, %s137
      %s139 = sphi 0, %s137
      %s140 = sphi 0, %s139
      %s154 = sphi 0, %s140
      %s158 = sphi 0, %s158
      %s160 = sphi 0, %s158
      %s161 = sphi 0, %s160
      %s175 = sphi 0, %s161
      %s179 = sphi 0, %s179
      %s181 = sphi 0, %s179
      %s182 = sphi 0, %s181
      %s196 = sphi 0, %s182
      %s200 = sphi 0, %s200
      %s202 = sphi 0, %s200
      %s203 = sphi 0, %s202
      %s217 = sphi 0, %s203
      %s221 = sphi 0, %s221
      %s223 = sphi 0, %s221
      %s224 = sphi 0, %s223
      %s238 = sphi 0, %s224
      %s242 = sphi 0, %s242
      %s244 = sphi 0, %s242
      %s245 = sphi 0, %s244
      %s259 = sphi 0, %s245
      %s263 = sphi 0, %s263
      %s265 = sphi 0, %s263
      %s266 = sphi 0, %s265
      %s280 = sphi 0, %s266
      %s284 = sphi 0, %s284
      %s286 = sphi 0, %s284
      %s287 = sphi 0, %s286
      %s301 = sphi 0, %s287
      %s305 = sphi 0, %s305
      %s307 = sphi 0, %s305
      %s308 = sphi 0, %s307
      %s322 = sphi 0, %s308
      %s326 = sphi 0, %s326
      %s328 = sphi 0, %s326
      %s329 = sphi 0, %s328
      %s343 = sphi 0, %s329
      %s347 = sphi 0, %s347
      %s349 = sphi 0, %s347
      %s350 = sphi 0, %s349
      %s364 = sphi 0, %s350
      %s368 = sphi 0, %s368
      %s370 = sphi 0, %s368
      %s371 = sphi 0, %s370
      %s385 = sphi 0, %s371
      %s391 = sphi 0, %s393
      %s394 = sphi 0, %s391
      %s395 = sphi 0, %s394
      %s411 = sphi 0, %s395
    $region4: #{gin_forward.1} parent=1 // loop_header_branch
      %28 = sbr.rel (%p26) target = $region8
    $region5: #{gin_forward.1} parent=1 // loop_body
      %s30 = ssub.s32 %s25, 1
      %s31 = ssub.s32 %s25, 2
      %s32 = sadd.s32 %s25, 1
      %s33 = ssub.s32 %s25, %s32
      %p34 = scmp.eq.s32.totalorder %s33, 0
      %s36 = sadd.s32 %s35, 1
      %s37 = scalar_select %p34, %s35, %s36
      %p40 = pneg %p34
      %p41 = scmp.eq.s32.totalorder %s25, 7
      %p42 = por %p40, %p41
      %p43 = scmp.ne.s32.totalorder %s35, %s38
      %p44 = scmp.eq.s32.totalorder %s25, 0
      %p45 = por %p43, %p44
      %p46 = scmp.ne.s32.totalorder %s35, %s38
      %p47 = scmp.eq.s32.totalorder %s30, 7
      %p48 = por %p46, %p47
      %p49 = scmp.ne.s32.totalorder %s38, %s39
      %p50 = scmp.eq.s32.totalorder %s30, 0
      %p51 = por %p49, %p50
      %p52 = scmp.ne.s32.totalorder %s38, %s39
      %p53 = scmp.eq.s32.totalorder %s31, 7
      %p54 = por %p52, %p53
      %p56 = scmp.ne.s32.totalorder %s39, %s55
      %p57 = scmp.eq.s32.totalorder %s31, 0
      %p58 = por %p56, %p57
      %s59 = ssub.s32 %s25, %s32
      %p60 = scmp.eq.s32.totalorder %s59, 0
      %s62 = sadd.s32 %s61, 1
      %s63 = scalar_select %p60, %s61, %s62
      %p66 = pneg %p60
      %p67 = scmp.eq.s32.totalorder %s25, 7
      %p68 = por %p66, %p67
      %p69 = scmp.ne.s32.totalorder %s61, %s64
      %p70 = scmp.eq.s32.totalorder %s25, 0
      %p71 = por %p69, %p70
      %p72 = scmp.ne.s32.totalorder %s61, %s64
      %p73 = scmp.eq.s32.totalorder %s30, 7
      %p74 = por %p72, %p73
      %p75 = scmp.ne.s32.totalorder %s64, %s65
      %p76 = scmp.eq.s32.totalorder %s30, 0
      %p77 = por %p75, %p76
      %p78 = scmp.ne.s32.totalorder %s64, %s65
      %p79 = scmp.eq.s32.totalorder %s31, 7
      %p80 = por %p78, %p79
      %p82 = scmp.ne.s32.totalorder %s65, %s81
      %p83 = scmp.eq.s32.totalorder %s31, 0
      %p84 = por %p82, %p83
      %s85 = ssub.s32 %s25, %s32
      %p86 = scmp.eq.s32.totalorder %s85, 0
      %s88 = sadd.s32 %s87, 1
      %s89 = scalar_select %p86, %s87, %s88
      %p92 = pneg %p86
      %p93 = scmp.eq.s32.totalorder %s25, 7
      %p94 = por %p92, %p93
      %p95 = scmp.ne.s32.totalorder %s87, %s90
      %p96 = scmp.eq.s32.totalorder %s25, 0
      %p97 = por %p95, %p96
      %p98 = scmp.ne.s32.totalorder %s87, %s90
      %p99 = scmp.eq.s32.totalorder %s30, 7
      %p100 = por %p98, %p99
      %p101 = scmp.ne.s32.totalorder %s90, %s91
      %p102 = scmp.eq.s32.totalorder %s30, 0
      %p103 = por %p101, %p102
      %p104 = scmp.ne.s32.totalorder %s90, %s91
      %p105 = scmp.eq.s32.totalorder %s31, 7
      %p106 = por %p104, %p105
      %p108 = scmp.ne.s32.totalorder %s91, %s107
      %p109 = scmp.eq.s32.totalorder %s31, 0
      %p110 = por %p108, %p109
      %s111 = ssub.s32 %s25, %s32
      %p112 = scmp.eq.s32.totalorder %s111, 0
      %s114 = sadd.s32 %s113, 1
      %s115 = scalar_select %p112, %s113, %s114
      %p118 = pneg %p112
      %p119 = scmp.eq.s32.totalorder %s25, 7
      %p120 = por %p118, %p119
      %p121 = scmp.ne.s32.totalorder %s113, %s116
      %p122 = scmp.eq.s32.totalorder %s25, 0
      %p123 = por %p121, %p122
      %p124 = scmp.ne.s32.totalorder %s113, %s116
      %p125 = scmp.eq.s32.totalorder %s30, 7
      %p126 = por %p124, %p125
      %p127 = scmp.ne.s32.totalorder %s116, %s117
      %p128 = scmp.eq.s32.totalorder %s30, 0
      %p129 = por %p127, %p128
      %p130 = scmp.ne.s32.totalorder %s116, %s117
      %p131 = scmp.eq.s32.totalorder %s31, 7
      %p132 = por %p130, %p131
      %p134 = scmp.ne.s32.totalorder %s117, %s133
      %p135 = scmp.eq.s32.totalorder %s31, 0
      %p136 = por %p134, %p135
      %s138 = sadd.s32 %s137, 1
      %p141 = scmp.eq.s32.totalorder %s25, 7
      %p142 = scmp.ne.s32.totalorder %s137, %s139
      %p143 = scmp.eq.s32.totalorder %s25, 0
      %p144 = por %p142, %p143
      %p145 = scmp.ne.s32.totalorder %s137, %s139
      %p146 = scmp.eq.s32.totalorder %s30, 7
      %p147 = por %p145, %p146
      %p148 = scmp.ne.s32.totalorder %s139, %s140
      %p149 = scmp.eq.s32.totalorder %s30, 0
      %p150 = por %p148, %p149
      %p151 = scmp.ne.s32.totalorder %s139, %s140
      %p152 = scmp.eq.s32.totalorder %s31, 7
      %p153 = por %p151, %p152
      %p155 = scmp.ne.s32.totalorder %s140, %s154
      %p156 = scmp.eq.s32.totalorder %s31, 0
      %p157 = por %p155, %p156
      %s159 = sadd.s32 %s158, 1
      %p162 = scmp.eq.s32.totalorder %s25, 7
      %p163 = scmp.ne.s32.totalorder %s158, %s160
      %p164 = scmp.eq.s32.totalorder %s25, 0
      %p165 = por %p163, %p164
      %p166 = scmp.ne.s32.totalorder %s158, %s160
      %p167 = scmp.eq.s32.totalorder %s30, 7
      %p168 = por %p166, %p167
      %p169 = scmp.ne.s32.totalorder %s160, %s161
      %p170 = scmp.eq.s32.totalorder %s30, 0
      %p171 = por %p169, %p170
      %p172 = scmp.ne.s32.totalorder %s160, %s161
      %p173 = scmp.eq.s32.totalorder %s31, 7
      %p174 = por %p172, %p173
      %p176 = scmp.ne.s32.totalorder %s161, %s175
      %p177 = scmp.eq.s32.totalorder %s31, 0
      %p178 = por %p176, %p177
      %s180 = sadd.s32 %s179, 1
      %p183 = scmp.eq.s32.totalorder %s25, 7
      %p184 = scmp.ne.s32.totalorder %s179, %s181
      %p185 = scmp.eq.s32.totalorder %s25, 0
      %p186 = por %p184, %p185
      %p187 = scmp.ne.s32.totalorder %s179, %s181
      %p188 = scmp.eq.s32.totalorder %s30, 7
      %p189 = por %p187, %p188
      %p190 = scmp.ne.s32.totalorder %s181, %s182
      %p191 = scmp.eq.s32.totalorder %s30, 0
      %p192 = por %p190, %p191
      %p193 = scmp.ne.s32.totalorder %s181, %s182
      %p194 = scmp.eq.s32.totalorder %s31, 7
      %p195 = por %p193, %p194
      %p197 = scmp.ne.s32.totalorder %s182, %s196
      %p198 = scmp.eq.s32.totalorder %s31, 0
      %p199 = por %p197, %p198
      %s201 = sadd.s32 %s200, 1
      %p204 = scmp.eq.s32.totalorder %s25, 7
      %p205 = scmp.ne.s32.totalorder %s200, %s202
      %p206 = scmp.eq.s32.totalorder %s25, 0
      %p207 = por %p205, %p206
      %p208 = scmp.ne.s32.totalorder %s200, %s202
      %p209 = scmp.eq.s32.totalorder %s30, 7
      %p210 = por %p208, %p209
      %p211 = scmp.ne.s32.totalorder %s202, %s203
      %p212 = scmp.eq.s32.totalorder %s30, 0
      %p213 = por %p211, %p212
      %p214 = scmp.ne.s32.totalorder %s202, %s203
      %p215 = scmp.eq.s32.totalorder %s31, 7
      %p216 = por %p214, %p215
      %p218 = scmp.ne.s32.totalorder %s203, %s217
      %p219 = scmp.eq.s32.totalorder %s31, 0
      %p220 = por %p218, %p219
      %s222 = sadd.s32 %s221, 1
      %p225 = scmp.eq.s32.totalorder %s25, 7
      %p226 = scmp.ne.s32.totalorder %s221, %s223
      %p227 = scmp.eq.s32.totalorder %s25, 0
      %p228 = por %p226, %p227
      %p229 = scmp.ne.s32.totalorder %s221, %s223
      %p230 = scmp.eq.s32.totalorder %s30, 7
      %p231 = por %p229, %p230
      %p232 = scmp.ne.s32.totalorder %s223, %s224
      %p233 = scmp.eq.s32.totalorder %s30, 0
      %p234 = por %p232, %p233
      %p235 = scmp.ne.s32.totalorder %s223, %s224
      %p236 = scmp.eq.s32.totalorder %s31, 7
      %p237 = por %p235, %p236
      %p239 = scmp.ne.s32.totalorder %s224, %s238
      %p240 = scmp.eq.s32.totalorder %s31, 0
      %p241 = por %p239, %p240
      %s243 = sadd.s32 %s242, 1
      %p246 = scmp.eq.s32.totalorder %s25, 7
      %p247 = scmp.ne.s32.totalorder %s242, %s244
      %p248 = scmp.eq.s32.totalorder %s25, 0
      %p249 = por %p247, %p248
      %p250 = scmp.ne.s32.totalorder %s242, %s244
      %p251 = scmp.eq.s32.totalorder %s30, 7
      %p252 = por %p250, %p251
      %p253 = scmp.ne.s32.totalorder %s244, %s245
      %p254 = scmp.eq.s32.totalorder %s30, 0
      %p255 = por %p253, %p254
      %p256 = scmp.ne.s32.totalorder %s244, %s245
      %p257 = scmp.eq.s32.totalorder %s31, 7
      %p258 = por %p256, %p257
      %p260 = scmp.ne.s32.totalorder %s245, %s259
      %p261 = scmp.eq.s32.totalorder %s31, 0
      %p262 = por %p260, %p261
      %s264 = sadd.s32 %s263, 1
      %p267 = scmp.eq.s32.totalorder %s25, 7
      %p268 = scmp.ne.s32.totalorder %s263, %s265
      %p269 = scmp.eq.s32.totalorder %s25, 0
      %p270 = por %p268, %p269
      %p271 = scmp.ne.s32.totalorder %s263, %s265
      %p272 = scmp.eq.s32.totalorder %s30, 7
      %p273 = por %p271, %p272
      %p274 = scmp.ne.s32.totalorder %s265, %s266
      %p275 = scmp.eq.s32.totalorder %s30, 0
      %p276 = por %p274, %p275
      %p277 = scmp.ne.s32.totalorder %s265, %s266
      %p278 = scmp.eq.s32.totalorder %s31, 7
      %p279 = por %p277, %p278
      %p281 = scmp.ne.s32.totalorder %s266, %s280
      %p282 = scmp.eq.s32.totalorder %s31, 0
      %p283 = por %p281, %p282
      %s285 = sadd.s32 %s284, 1
      %p288 = scmp.eq.s32.totalorder %s25, 7
      %p289 = scmp.ne.s32.totalorder %s284, %s286
      %p290 = scmp.eq.s32.totalorder %s25, 0
      %p291 = por %p289, %p290
      %p292 = scmp.ne.s32.totalorder %s284, %s286
      %p293 = scmp.eq.s32.totalorder %s30, 7
      %p294 = por %p292, %p293
      %p295 = scmp.ne.s32.totalorder %s286, %s287
      %p296 = scmp.eq.s32.totalorder %s30, 0
      %p297 = por %p295, %p296
      %p298 = scmp.ne.s32.totalorder %s286, %s287
      %p299 = scmp.eq.s32.totalorder %s31, 7
      %p300 = por %p298, %p299
      %p302 = scmp.ne.s32.totalorder %s287, %s301
      %p303 = scmp.eq.s32.totalorder %s31, 0
      %p304 = por %p302, %p303
      %s306 = sadd.s32 %s305, 1
      %p309 = scmp.eq.s32.totalorder %s25, 7
      %p310 = scmp.ne.s32.totalorder %s305, %s307
      %p311 = scmp.eq.s32.totalorder %s25, 0
      %p312 = por %p310, %p311
      %p313 = scmp.ne.s32.totalorder %s305, %s307
      %p314 = scmp.eq.s32.totalorder %s30, 7
      %p315 = por %p313, %p314
      %p316 = scmp.ne.s32.totalorder %s307, %s308
      %p317 = scmp.eq.s32.totalorder %s30, 0
      %p318 = por %p316, %p317
      %p319 = scmp.ne.s32.totalorder %s307, %s308
      %p320 = scmp.eq.s32.totalorder %s31, 7
      %p321 = por %p319, %p320
      %p323 = scmp.ne.s32.totalorder %s308, %s322
      %p324 = scmp.eq.s32.totalorder %s31, 0
      %p325 = por %p323, %p324
      %s327 = sadd.s32 %s326, 1
      %p330 = scmp.eq.s32.totalorder %s25, 7
      %p331 = scmp.ne.s32.totalorder %s326, %s328
      %p332 = scmp.eq.s32.totalorder %s25, 0
      %p333 = por %p331, %p332
      %p334 = scmp.ne.s32.totalorder %s326, %s328
      %p335 = scmp.eq.s32.totalorder %s30, 7
      %p336 = por %p334, %p335
      %p337 = scmp.ne.s32.totalorder %s328, %s329
      %p338 = scmp.eq.s32.totalorder %s30, 0
      %p339 = por %p337, %p338
      %p340 = scmp.ne.s32.totalorder %s328, %s329
      %p341 = scmp.eq.s32.totalorder %s31, 7
      %p342 = por %p340, %p341
      %p344 = scmp.ne.s32.totalorder %s329, %s343
      %p345 = scmp.eq.s32.totalorder %s31, 0
      %p346 = por %p344, %p345
      %s348 = sadd.s32 %s347, 1
      %p351 = scmp.eq.s32.totalorder %s25, 7
      %p352 = scmp.ne.s32.totalorder %s347, %s349
      %p353 = scmp.eq.s32.totalorder %s25, 0
      %p354 = por %p352, %p353
      %p355 = scmp.ne.s32.totalorder %s347, %s349
      %p356 = scmp.eq.s32.totalorder %s30, 7
      %p357 = por %p355, %p356
      %p358 = scmp.ne.s32.totalorder %s349, %s350
      %p359 = scmp.eq.s32.totalorder %s30, 0
      %p360 = por %p358, %p359
      %p361 = scmp.ne.s32.totalorder %s349, %s350
      %p362 = scmp.eq.s32.totalorder %s31, 7
      %p363 = por %p361, %p362
      %p365 = scmp.ne.s32.totalorder %s350, %s364
      %p366 = scmp.eq.s32.totalorder %s31, 0
      %p367 = por %p365, %p366
      %s369 = sadd.s32 %s368, 1
      %p372 = scmp.eq.s32.totalorder %s25, 7
      %p373 = scmp.ne.s32.totalorder %s368, %s370
      %p374 = scmp.eq.s32.totalorder %s25, 0
      %p375 = por %p373, %p374
      %p376 = scmp.ne.s32.totalorder %s368, %s370
      %p377 = scmp.eq.s32.totalorder %s30, 7
      %p378 = por %p376, %p377
      %p379 = scmp.ne.s32.totalorder %s370, %s371
      %p380 = scmp.eq.s32.totalorder %s30, 0
      %p381 = por %p379, %p380
      %p382 = scmp.ne.s32.totalorder %s370, %s371
      %p383 = scmp.eq.s32.totalorder %s31, 7
      %p384 = por %p382, %p383
      %p386 = scmp.ne.s32.totalorder %s371, %s385
      %p387 = scmp.eq.s32.totalorder %s31, 0
      %p388 = por %p386, %p387
      %s389 = ssub.s32 %s25, %s32
      %p390 = scmp.eq.s32.totalorder %s389, 0
      %s392 = sadd.s32 %s391, 1
      %s393 = scalar_select %p390, %s391, %s392
      %p396 = pneg %p390
      %p397 = scmp.eq.s32.totalorder %s25, 7
      %p398 = por %p396, %p397
      %p399 = scmp.ne.s32.totalorder %s391, %s394
      %p400 = scmp.eq.s32.totalorder %s25, 0
      %p401 = por %p399, %p400
      %p402 = scmp.ne.s32.totalorder %s391, %s394
      %p403 = scmp.eq.s32.totalorder %s30, 7
      %p404 = por %p402, %p403
      %p405 = scmp.ne.s32.totalorder %s394, %s395
      %p406 = scmp.eq.s32.totalorder %s30, 0
      %p407 = por %p405, %p406
      %p408 = scmp.ne.s32.totalorder %s394, %s395
      %p409 = scmp.eq.s32.totalorder %s31, 7
      %p410 = por %p408, %p409
      %p412 = scmp.ne.s32.totalorder %s395, %s411
      %p413 = scmp.eq.s32.totalorder %s31, 0
      %p414 = por %p412, %p413
      %p415 = scmp.le.s32.totalorder 1, %s25
      %p416 = scmp.lt.s32.totalorder %s25, 9
      %p417 = pnand %p415, %p416
      %p418 = pneg %p417
      // Predicated region
      $region9: #{gin_forward.1} parent=5 // pred_check
        _
      $region10: #{gin_forward.1} parent=5 // pred_check_branch
        %420 = sbr.rel (%p417) target = $region12
      $region11: #{gin_forward.1} parent=5 // pred_region
        %s421 = ssub.s32 %s25, 1
        // Predicated region
        $region13: #{gin_forward.1} parent=11 // pred_check
          %p422 = pneg %p150
        $region14: #{gin_forward.1} parent=11 // pred_check_branch
          %424 = sbr.rel (%p422) target = $region16
        $region15: #{gin_forward.1} parent=11 // pred_region
          _
        $region16: #{gin_forward.1} parent=11 // pred_fallthru
          _
        // Predicated region
        $region17: #{gin_forward.1} parent=11 // pred_check
          %p425 = pneg %p171
        $region18: #{gin_forward.1} parent=11 // pred_check_branch
          %427 = sbr.rel (%p425) target = $region20
        $region19: #{gin_forward.1} parent=11 // pred_region
          _
        $region20: #{gin_forward.1} parent=11 // pred_fallthru
          _
        // Predicated region
        $region21: #{gin_forward.1} parent=11 // pred_check
          %p428 = pneg %p192
        $region22: #{gin_forward.1} parent=11 // pred_check_branch
          %430 = sbr.rel (%p428) target = $region24
        $region23: #{gin_forward.1} parent=11 // pred_region
          _
        $region24: #{gin_forward.1} parent=11 // pred_fallthru
          _
        // Predicated region
        $region25: #{gin_forward.1} parent=11 // pred_check
          %p431 = pneg %p213
        $region26: #{gin_forward.1} parent=11 // pred_check_branch
          %433 = sbr.rel (%p431) target = $region28
        $region27: #{gin_forward.1} parent=11 // pred_region
          _
        $region28: #{gin_forward.1} parent=11 // pred_fallthru
          _
        // Predicated region
        $region29: #{gin_forward.1} parent=11 // pred_check
          %p434 = pneg %p234
        $region30: #{gin_forward.1} parent=11 // pred_check_branch
          %436 = sbr.rel (%p434) target = $region32
        $region31: #{gin_forward.1} parent=11 // pred_region
          _
        $region32: #{gin_forward.1} parent=11 // pred_fallthru
          _
        // Predicated region
        $region33: #{gin_forward.1} parent=11 // pred_check
          %p437 = pneg %p255
        $region34: #{gin_forward.1} parent=11 // pred_check_branch
          %439 = sbr.rel (%p437) target = $region36
        $region35: #{gin_forward.1} parent=11 // pred_region
          _
        $region36: #{gin_forward.1} parent=11 // pred_fallthru
          _
        // Predicated region
        $region37: #{gin_forward.1} parent=11 // pred_check
          %p440 = pneg %p276
        $region38: #{gin_forward.1} parent=11 // pred_check_branch
          %442 = sbr.rel (%p440) target = $region40
        $region39: #{gin_forward.1} parent=11 // pred_region
          _
        $region40: #{gin_forward.1} parent=11 // pred_fallthru
          _
        // Predicated region
        $region41: #{gin_forward.1} parent=11 // pred_check
          %p443 = pneg %p297
        $region42: #{gin_forward.1} parent=11 // pred_check_branch
          %445 = sbr.rel (%p443) target = $region44
        $region43: #{gin_forward.1} parent=11 // pred_region
          _
        $region44: #{gin_forward.1} parent=11 // pred_fallthru
          _
        // Predicated region
        $region45: #{gin_forward.1} parent=11 // pred_check
          %p446 = pneg %p318
        $region46: #{gin_forward.1} parent=11 // pred_check_branch
          %448 = sbr.rel (%p446) target = $region48
        $region47: #{gin_forward.1} parent=11 // pred_region
          _
        $region48: #{gin_forward.1} parent=11 // pred_fallthru
          _
        // Predicated region
        $region49: #{gin_forward.1} parent=11 // pred_check
          %p449 = pneg %p339
        $region50: #{gin_forward.1} parent=11 // pred_check_branch
          %451 = sbr.rel (%p449) target = $region52
        $region51: #{gin_forward.1} parent=11 // pred_region
          _
        $region52: #{gin_forward.1} parent=11 // pred_fallthru
          _
        // Predicated region
        $region53: #{gin_forward.1} parent=11 // pred_check
          %p452 = pneg %p360
        $region54: #{gin_forward.1} parent=11 // pred_check_branch
          %454 = sbr.rel (%p452) target = $region56
        $region55: #{gin_forward.1} parent=11 // pred_region
          _
        $region56: #{gin_forward.1} parent=11 // pred_fallthru
          _
        // Predicated region
        $region57: #{gin_forward.1} parent=11 // pred_check
          %p455 = pneg %p381
        $region58: #{gin_forward.1} parent=11 // pred_check_branch
          %457 = sbr.rel (%p455) target = $region60
        $region59: #{gin_forward.1} parent=11 // pred_region
          _
        $region60: #{gin_forward.1} parent=11 // pred_fallthru
          _
      $region12: #{gin_forward.1} parent=5 // pred_fallthru
        _
      %p458 = scmp.lt.s32.totalorder %s25, 8
      // Predicated region
      $region61: #{gin_forward.1} parent=5 // pred_check
        %p459 = pneg %p458
      $region62: #{gin_forward.1} parent=5 // pred_check_branch
        %461 = sbr.rel (%p459) target = $region64
      $region63: #{gin_forward.1} parent=5 // pred_region
        // Predicated region
        $region65: #{gin_forward.1} parent=63 // pred_check
          %p462 = pneg %p45
        $region66: #{gin_forward.1} parent=63 // pred_check_branch
          %464 = sbr.rel (%p462) target = $region68
        $region67: #{gin_forward.1} parent=63 // pred_region
          %p465 = scmp.lt.s32.totalorder %s25, 7
          %s466 = scalar_select %p465, %s25, 7
          %s467 = smul.addr %s466, 6
          %s468 = smul.addr %s467, 8
          %s469 = scalar_lea.vmem %s0, %s468
        $region68: #{gin_forward.1} parent=63 // pred_fallthru
          _
        // Predicated region
        $region69: #{gin_forward.1} parent=63 // pred_check
          %p470 = pneg %p71
        $region70: #{gin_forward.1} parent=63 // pred_check_branch
          %472 = sbr.rel (%p470) target = $region72
        $region71: #{gin_forward.1} parent=63 // pred_region
          %p473 = scmp.lt.s32.totalorder %s25, 7
          %s474 = scalar_select %p473, %s25, 7
          %s475 = scalar_lea.vmem %s1, %s474
        $region72: #{gin_forward.1} parent=63 // pred_fallthru
          _
        // Predicated region
        $region73: #{gin_forward.1} parent=63 // pred_check
          %p476 = pneg %p97
        $region74: #{gin_forward.1} parent=63 // pred_check_branch
          %478 = sbr.rel (%p476) target = $region76
        $region75: #{gin_forward.1} parent=63 // pred_region
          %p479 = scmp.lt.s32.totalorder %s25, 7
          %s480 = scalar_select %p479, %s25, 7
          %s481 = smul.addr %s480, 2
          %s482 = smul.addr %s481, 8
          %s483 = scalar_lea.vmem %s2, %s482
        $region76: #{gin_forward.1} parent=63 // pred_fallthru
          _
        // Predicated region
        $region77: #{gin_forward.1} parent=63 // pred_check
          %p484 = pneg %p123
        $region78: #{gin_forward.1} parent=63 // pred_check_branch
          %486 = sbr.rel (%p484) target = $region80
        $region79: #{gin_forward.1} parent=63 // pred_region
          %p487 = scmp.lt.s32.totalorder %s25, 7
          %s488 = scalar_select %p487, %s25, 7
          %s489 = smul.addr %s488, 6
          %s490 = smul.addr %s489, 8
          %s491 = scalar_lea.vmem %s3, %s490
        $region80: #{gin_forward.1} parent=63 // pred_fallthru
          _
      $region64: #{gin_forward.1} parent=5 // pred_fallthru
        _
      %p492 = scmp.le.s32.totalorder 1, %s25
      %p493 = scmp.lt.s32.totalorder %s25, 9
      %p494 = pnand %p492, %p493
      %p495 = pneg %p494
      // Predicated region
      $region81: #{gin_forward.1} parent=5 // pred_check
        _
      $region82: #{gin_forward.1} parent=5 // pred_check_branch
        %497 = sbr.rel (%p494) target = $region84
      $region83: #{gin_forward.1} parent=5 // pred_region
        %s498 = ssub.s32 %s25, 1
        %p499 = scmp.lt.s32.totalorder %s30, 7
        %s500 = scalar_select %p499, %s30, 7
        %s501 = smul.addr %s500, 6
        %s502 = smul.addr %s501, 8
        %s503 = scalar_lea.vmem %s0, %s502
        %p504 = pneg %p51
        %p505 = pneg %p48
        %p506 = scmp.lt.s32.totalorder %s30, 7
        %s507 = scalar_select %p506, %s30, 7
        %s508 = scalar_lea.vmem %s1, %s507
        %p509 = pneg %p77
        %p510 = pneg %p74
        %p511 = scmp.lt.s32.totalorder %s30, 7
        %s512 = scalar_select %p511, %s30, 7
        %s513 = smul.addr %s512, 2
        %s514 = smul.addr %s513, 8
        %s515 = scalar_lea.vmem %s2, %s514
        %p516 = pneg %p103
        %p517 = pneg %p100
        %p518 = scmp.lt.s32.totalorder %s30, 7
        %s519 = scalar_select %p518, %s30, 7
        %s520 = smul.addr %s519, 6
        %s521 = smul.addr %s520, 8
        %s522 = scalar_lea.vmem %s3, %s521
        %p523 = pneg %p129
        %p524 = pneg %p126
        %p525 = pneg %p150
        %p526 = pneg %p147
        %p527 = pneg %p171
        %p528 = pneg %p168
        %p529 = pneg %p192
        %p530 = pneg %p189
        %p531 = pneg %p213
        %p532 = pneg %p210
        %p533 = pneg %p234
        %p534 = pneg %p231
        %p535 = pneg %p255
        %p536 = pneg %p252
        %p537 = pneg %p276
        %p538 = pneg %p273
        %p539 = pneg %p297
        %p540 = pneg %p294
        %p541 = pneg %p318
        %p542 = pneg %p315
        %p543 = pneg %p339
        %p544 = pneg %p336
        %p545 = pneg %p360
        %p546 = pneg %p357
        %p547 = pneg %p381
        %p548 = pneg %p378
        %p549 = pneg %p407
        %p550 = pneg %p404
        %s551 = sand.u32 %s394, 1
        %s552 = scalar_lea.sflag [#allocation3], %s551
        %s553 = sand.u32 %s394, 1
        %s554 = scalar_lea.vmem [#allocation2], %s553
        %p555 = scmp.lt.s32.totalorder %s30, 7
        %s556 = scalar_select %p555, %s30, 7
        %s557 = smul.addr %s556, 6
        %s558 = smul.addr %s557, 8
        %s559 = scalar_lea.vmem %s0, %s558
        %p560 = scmp.lt.s32.totalorder %s30, 7
        %s561 = scalar_select %p560, %s30, 7
        %s562 = scalar_lea.vmem %s1, %s561
        %p563 = scmp.lt.s32.totalorder %s30, 7
        %s564 = scalar_select %p563, %s30, 7
        %s565 = smul.addr %s564, 2
        %s566 = smul.addr %s565, 8
        %s567 = scalar_lea.vmem %s2, %s566
        %p568 = scmp.lt.s32.totalorder %s30, 7
        %s569 = scalar_select %p568, %s30, 7
        %s570 = smul.addr %s569, 6
        %s571 = smul.addr %s570, 8
        %s572 = scalar_lea.vmem %s3, %s571
        %v574 = vlaneseq
        %v575 = vand.u32 %v574, 127
        %vm576 = vcmp.lt.s32.totalorder %v575, 32
        %v577 = vsel %vm576, 1, 0
        %v578 = vcvt.s32.f32 %v577
        %vm579 = vcmp.lt.s32.totalorder %v575, 64
        %v580 = vsel %vm579, 1, 0
        %v581 = vcvt.s32.f32 %v580
        %v582 = vld [vmem:[%s6] sm:$0x3f]
        %v583 = vld [vmem:[%s567] sm:$0xff]
        %v584 = vld [vmem:[%s567 + $0x8] sm:$0xff]
        %v585 = vpack.c.bf16 %v584, %v583
        %v586 = vld [vmem:[%s4] sm:$0xf]
        %v587 = vld [vmem:[%s4 + $0x4] sm:$0xf]
        %v588 = vld [vmem:[%s4 + $0x8] sm:$0xf]
        %v589 = vld [vmem:[%s4 + $0xc] sm:$0xf]
        %v590 = vld [vmem:[%s4 + $0x10] sm:$0xf]
        %v591 = vld [vmem:[%s4 + $0x14] sm:$0xf]
        %v592 = vld [vmem:[%s4 + $0x18] sm:$0xf]
        %v593 = vld [vmem:[%s4 + $0x1c] sm:$0xf]
        %v594 = vld [vmem:[%s4 + $0x20] sm:$0xf]
        %v595 = vld [vmem:[%s4 + $0x24] sm:$0xf]
        %v596 = vld [vmem:[%s4 + $0x28] sm:$0xf]
        %v597 = vld [vmem:[%s4 + $0x2c] sm:$0xf]
        %v598 = vld [vmem:[%s4 + $0x30] sm:$0xf]
        %v599 = vld [vmem:[%s4 + $0x34] sm:$0xf]
        %v600 = vld [vmem:[%s4 + $0x38] sm:$0xf]
        %v601 = vld [vmem:[%s4 + $0x3c] sm:$0xf]
        %v602 = vlaneseq
        %v603 = vshrl.u32 %v602, 7
        %v604 = vsub.s32 0, %v603
        %v605 = vrot.slane %v582, %v604
        %v622 = vunpack.c.l.b16 %v586
        %v623 = vunpack.c.l.b16 %v587
        %v624 = vunpack.c.l.b16 %v588
        %v625 = vunpack.c.l.b16 %v589
        %v626 = vunpack.c.l.b16 %v590
        %v627 = vunpack.c.l.b16 %v591
        %v628 = vunpack.c.l.b16 %v592
        %v629 = vunpack.c.l.b16 %v593
        %v630 = vunpack.c.l.b16 %v594
        %v631 = vunpack.c.l.b16 %v595
        %v632 = vunpack.c.l.b16 %v596
        %v633 = vunpack.c.l.b16 %v597
        %v634 = vunpack.c.l.b16 %v598
        %v635 = vunpack.c.l.b16 %v599
        %v636 = vunpack.c.l.b16 %v600
        %v637 = vunpack.c.l.b16 %v601
        %v638 = vpack.c.b16 %v623, %v622
        %v639 = vpack.c.b16 %v625, %v624
        %v640 = vpack.c.b16 %v627, %v626
        %v641 = vpack.c.b16 %v629, %v628
        %v642 = vpack.c.b16 %v631, %v630
        %v643 = vpack.c.b16 %v633, %v632
        %v644 = vpack.c.b16 %v635, %v634
        %v645 = vpack.c.b16 %v637, %v636
        %654 = vmatprep.subr.bf16.mxu0 0
        %655 = vmatpush1.bf16.msra.mxu0 %v638
        %656 = vmatprep.subr.bf16.mxu0 0
        %657 = vmatpush1.bf16.msra.mxu0 %v639
        %658 = vmatprep.subr.bf16.mxu0 0
        %659 = vmatpush1.bf16.msra.mxu0 %v640
        %660 = vmatprep.subr.bf16.mxu0 0
        %661 = vmatpush1.bf16.msra.mxu0 %v641
        %662 = vmatprep.subr.bf16.mxu0 0
        %663 = vmatpush1.bf16.msra.mxu0 %v642
        %664 = vmatprep.subr.bf16.mxu0 0
        %665 = vmatpush1.bf16.msra.mxu0 %v643
        %666 = vmatprep.subr.bf16.mxu0 0
        %667 = vmatpush1.bf16.msra.mxu0 %v644
        %668 = vmatprep.subr.bf16.mxu0 0
        %669 = vmatpush1.bf16.msra.mxu0 %v645
        %670 = vmatprep.subr.bf16.mxu0 0
        %671 = vmatpush1.bf16.msra.mxu0 0
        %672 = vmatprep.subr.bf16.mxu0 0
        %673 = vmatpush1.bf16.msra.mxu0 0
        %674 = vmatprep.subr.bf16.mxu0 0
        %675 = vmatpush1.bf16.msra.mxu0 0
        %676 = vmatprep.subr.bf16.mxu0 0
        %677 = vmatpush1.bf16.msra.mxu0 0
        %678 = vmatprep.subr.bf16.mxu0 0
        %679 = vmatpush1.bf16.msra.mxu0 0
        %680 = vmatprep.subr.bf16.mxu0 0
        %681 = vmatpush1.bf16.msra.mxu0 0
        %682 = vmatprep.subr.bf16.mxu0 0
        %683 = vmatpush1.bf16.msra.mxu0 0
        %684 = vmatprep.subr.bf16.mxu0 0
        %685 = vmatpush1.bf16.msra.mxu0 0
        %686 = vmatprep.mubr.bf16.mxu0 0
        %687 = vmatmul.mubr.bf16.gmra.mrb[0].mxu0 %v585
        %v688 = vpop.f32.mrb[0].mxu0
        %v689 = vadd.f32 %v605, %v688
        %v690 = vpop.f32.mrb[0].mxu0
        %v691 = vpop.f32.mrb[0].mxu0
        %v692 = vadd.f32 %v605, %v691
        %v693 = vpop.f32.mrb[0].mxu0
        %694 = vdwg.mxu0
        %695 = vadd.xlane.f32.xlu0 %v689
        %v696 = vpop.xlane.xlu0 %695
        %697 = vadd.xlane.f32.xlu0 %v692
        %v698 = vpop.xlane.xlu0 %697
        %v699 = vmul.f32 %v696, 0.03125
        %v700 = vmul.f32 %v698, 0.03125
        %v701 = vsub.f32 %v689, %v699
        %v702 = vsub.f32 %v692, %v700
        %v703 = vmul.f32 %v701, %v578
        %v704 = vmul.f32 %v702, %v578
        %v705 = vmul.f32 %v703, %v703
        %v706 = vmul.f32 %v704, %v704
        %707 = vadd.xlane.f32.xlu0 %v705
        %v708 = vpop.xlane.xlu0 %707
        %709 = vadd.xlane.f32.xlu0 %v706
        %v710 = vpop.xlane.xlu0 %709
        %v711 = vmul.f32 %v708, 0.03125
        %v712 = vmul.f32 %v710, 0.03125
        %v713 = vadd.f32 %v711, 1e-05
        %v714 = vadd.f32 %v712, 1e-05
        %v715 = vrsqrt.pop %v713
        %v716 = vrsqrt.pop %v714
        %v717 = vmul.f32 %v703, %v715
        %v718 = vmul.f32 %v704, %v716
        %v719 = vlaneseq
        %v720 = vshrl.u32 %v719, 7
        %v721 = vsub.s32 1, %v720
        %v722 = vrot.slane %v582, %v721
        %v723 = vmul.f32 %v717, %v722
        %v724 = vmul.f32 %v718, %v722
        %v725 = vlaneseq
        %v726 = vshrl.u32 %v725, 7
        %v727 = vsub.s32 2, %v726
        %v728 = vrot.slane %v582, %v727
        %v729 = vadd.f32 %v723, %v728
        %v730 = vadd.f32 %v724, %v728
        %v731 = vmax.f32 %v729, 0.0
        %v732 = vmax.f32 %v730, 0.0
        %v733 = vld [vmem:[%s572] sm:$0xff]
        %v734 = vld [vmem:[%s572 + $0x8] sm:$0xff]
        %v735 = vld [vmem:[%s572 + $0x10] sm:$0xff]
        %v736 = vld [vmem:[%s572 + $0x18] sm:$0xff]
        %v737 = vld [vmem:[%s572 + $0x20] sm:$0xff]
        %v738 = vld [vmem:[%s572 + $0x28] sm:$0xff]
        %v739 = vpack.c.bf16 %v734, %v733
        %v740 = vpack.c.bf16 %v736, %v735
        %v741 = vpack.c.bf16 %v738, %v737
        %v742 = vld [vmem:[%s5] sm:$0xf]
        %v743 = vld [vmem:[%s5 + $0x4] sm:$0xf]
        %v744 = vld [vmem:[%s5 + $0x8] sm:$0xf]
        %v745 = vld [vmem:[%s5 + $0xc] sm:$0xf]
        %v746 = vld [vmem:[%s5 + $0x10] sm:$0xf]
        %v747 = vld [vmem:[%s5 + $0x14] sm:$0xf]
        %v748 = vld [vmem:[%s5 + $0x18] sm:$0xf]
        %v749 = vld [vmem:[%s5 + $0x1c] sm:$0xf]
        %v750 = vld [vmem:[%s5 + $0x20] sm:$0xf]
        %v751 = vld [vmem:[%s5 + $0x24] sm:$0xf]
        %v752 = vld [vmem:[%s5 + $0x28] sm:$0xf]
        %v753 = vld [vmem:[%s5 + $0x2c] sm:$0xf]
        %v754 = vld [vmem:[%s5 + $0x30] sm:$0xf]
        %v755 = vld [vmem:[%s5 + $0x34] sm:$0xf]
        %v756 = vld [vmem:[%s5 + $0x38] sm:$0xf]
        %v757 = vld [vmem:[%s5 + $0x3c] sm:$0xf]
        %v758 = vlaneseq
        %v759 = vshrl.u32 %v758, 7
        %v760 = vsub.s32 3, %v759
        %v761 = vrot.slane %v582, %v760
        %v778 = vunpack.c.l.b16 %v742
        %v779 = vunpack.c.l.b16 %v743
        %v780 = vunpack.c.l.b16 %v744
        %v781 = vunpack.c.l.b16 %v745
        %v782 = vunpack.c.l.b16 %v746
        %v783 = vunpack.c.l.b16 %v747
        %v784 = vunpack.c.l.b16 %v748
        %v785 = vunpack.c.l.b16 %v749
        %v786 = vunpack.c.l.b16 %v750
        %v787 = vunpack.c.l.b16 %v751
        %v788 = vunpack.c.l.b16 %v752
        %v789 = vunpack.c.l.b16 %v753
        %v790 = vunpack.c.l.b16 %v754
        %v791 = vunpack.c.l.b16 %v755
        %v792 = vunpack.c.l.b16 %v756
        %v793 = vunpack.c.l.b16 %v757
        %v794 = vpack.c.b16 %v779, %v778
        %v795 = vpack.c.b16 %v781, %v780
        %v796 = vpack.c.b16 %v783, %v782
        %v797 = vpack.c.b16 %v785, %v784
        %v798 = vpack.c.b16 %v787, %v786
        %v799 = vpack.c.b16 %v789, %v788
        %v800 = vpack.c.b16 %v791, %v790
        %v801 = vpack.c.b16 %v793, %v792
        %810 = vmatprep.subr.bf16.mxu0 0
        %811 = vmatpush1.bf16.msra.mxu0 %v794
        %812 = vmatprep.subr.bf16.mxu0 0
        %813 = vmatpush1.bf16.msra.mxu0 %v795
        %814 = vmatprep.subr.bf16.mxu0 0
        %815 = vmatpush1.bf16.msra.mxu0 %v796
        %816 = vmatprep.subr.bf16.mxu0 0
        %817 = vmatpush1.bf16.msra.mxu0 %v797
        %818 = vmatprep.subr.bf16.mxu0 0
        %819 = vmatpush1.bf16.msra.mxu0 %v798
        %820 = vmatprep.subr.bf16.mxu0 0
        %821 = vmatpush1.bf16.msra.mxu0 %v799
        %822 = vmatprep.subr.bf16.mxu0 0
        %823 = vmatpush1.bf16.msra.mxu0 %v800
        %824 = vmatprep.subr.bf16.mxu0 0
        %825 = vmatpush1.bf16.msra.mxu0 %v801
        %826 = vmatprep.subr.bf16.mxu0 0
        %827 = vmatpush1.bf16.msra.mxu0 0
        %828 = vmatprep.subr.bf16.mxu0 0
        %829 = vmatpush1.bf16.msra.mxu0 0
        %830 = vmatprep.subr.bf16.mxu0 0
        %831 = vmatpush1.bf16.msra.mxu0 0
        %832 = vmatprep.subr.bf16.mxu0 0
        %833 = vmatpush1.bf16.msra.mxu0 0
        %834 = vmatprep.subr.bf16.mxu0 0
        %835 = vmatpush1.bf16.msra.mxu0 0
        %836 = vmatprep.subr.bf16.mxu0 0
        %837 = vmatpush1.bf16.msra.mxu0 0
        %838 = vmatprep.subr.bf16.mxu0 0
        %839 = vmatpush1.bf16.msra.mxu0 0
        %840 = vmatprep.subr.bf16.mxu0 0
        %841 = vmatpush1.bf16.msra.mxu0 0
        %842 = vmatprep.mubr.bf16.mxu0 0
        %843 = vmatmul.mubr.bf16.gmra.mrb[0].mxu0 %v739
        %v844 = vpop.f32.mrb[0].mxu0
        %v845 = vadd.f32 %v761, %v844
        %v846 = vpop.f32.mrb[0].mxu0
        %v847 = vpop.f32.mrb[0].mxu0
        %v848 = vadd.f32 %v761, %v847
        %v849 = vpop.f32.mrb[0].mxu0
        %850 = vmatprep.mubr.bf16.mxu0 0
        %851 = vmatmul.mubr.bf16.gmra.mrb[0].mxu0 %v740
        %v852 = vpop.f32.mrb[0].mxu0
        %v853 = vadd.f32 %v761, %v852
        %v854 = vpop.f32.mrb[0].mxu0
        %v855 = vpop.f32.mrb[0].mxu0
        %v856 = vadd.f32 %v761, %v855
        %v857 = vpop.f32.mrb[0].mxu0
        %858 = vmatprep.mubr.bf16.mxu0 0
        %859 = vmatmul.mubr.bf16.gmra.mrb[0].mxu0 %v741
        %v860 = vpop.f32.mrb[0].mxu0
        %v861 = vadd.f32 %v761, %v860
        %v862 = vpop.f32.mrb[0].mxu0
        %v863 = vpop.f32.mrb[0].mxu0
        %v864 = vadd.f32 %v761, %v863
        %v865 = vpop.f32.mrb[0].mxu0
        %866 = vdwg.mxu0
        %867 = vadd.xlane.f32.xlu0 %v845
        %v868 = vpop.xlane.xlu0 %867
        %869 = vadd.xlane.f32.xlu0 %v848
        %v870 = vpop.xlane.xlu0 %869
        %871 = vadd.xlane.f32.xlu0 %v853
        %v872 = vpop.xlane.xlu0 %871
        %873 = vadd.xlane.f32.xlu0 %v856
        %v874 = vpop.xlane.xlu0 %873
        %875 = vadd.xlane.f32.xlu0 %v861
        %v876 = vpop.xlane.xlu0 %875
        %877 = vadd.xlane.f32.xlu0 %v864
        %v878 = vpop.xlane.xlu0 %877
        %v879 = vmul.f32 %v868, 0.03125
        %v880 = vmul.f32 %v870, 0.03125
        %v881 = vmul.f32 %v872, 0.03125
        %v882 = vmul.f32 %v874, 0.03125
        %v883 = vmul.f32 %v876, 0.03125
        %v884 = vmul.f32 %v878, 0.03125
        %v885 = vsub.f32 %v845, %v879
        %v886 = vsub.f32 %v848, %v880
        %v887 = vsub.f32 %v853, %v881
        %v888 = vsub.f32 %v856, %v882
        %v889 = vsub.f32 %v861, %v883
        %v890 = vsub.f32 %v864, %v884
        %v891 = vmul.f32 %v885, %v578
        %v892 = vmul.f32 %v886, %v578
        %v893 = vmul.f32 %v887, %v578
        %v894 = vmul.f32 %v888, %v578
        %v895 = vmul.f32 %v889, %v578
        %v896 = vmul.f32 %v890, %v578
        %v897 = vmul.f32 %v891, %v891
        %v898 = vmul.f32 %v892, %v892
        %v899 = vmul.f32 %v893, %v893
        %v900 = vmul.f32 %v894, %v894
        %v901 = vmul.f32 %v895, %v895
        %v902 = vmul.f32 %v896, %v896
        %903 = vadd.xlane.f32.xlu0 %v897
        %v904 = vpop.xlane.xlu0 %903
        %905 = vadd.xlane.f32.xlu0 %v898
        %v906 = vpop.xlane.xlu0 %905
        %907 = vadd.xlane.f32.xlu0 %v899
        %v908 = vpop.xlane.xlu0 %907
        %909 = vadd.xlane.f32.xlu0 %v900
        %v910 = vpop.xlane.xlu0 %909
        %911 = vadd.xlane.f32.xlu0 %v901
        %v912 = vpop.xlane.xlu0 %911
        %913 = vadd.xlane.f32.xlu0 %v902
        %v914 = vpop.xlane.xlu0 %913
        %v915 = vmul.f32 %v904, 0.03125
        %v916 = vmul.f32 %v906, 0.03125
        %v917 = vmul.f32 %v908, 0.03125
        %v918 = vmul.f32 %v910, 0.03125
        %v919 = vmul.f32 %v912, 0.03125
        %v920 = vmul.f32 %v914, 0.03125
        %v921 = vadd.f32 %v915, 1e-05
        %v922 = vadd.f32 %v916, 1e-05
        %v923 = vadd.f32 %v917, 1e-05
        %v924 = vadd.f32 %v918, 1e-05
        %v925 = vadd.f32 %v919, 1e-05
        %v926 = vadd.f32 %v920, 1e-05
        %v927 = vrsqrt.pop %v921
        %v928 = vrsqrt.pop %v922
        %v929 = vrsqrt.pop %v923
        %v930 = vrsqrt.pop %v924
        %v931 = vrsqrt.pop %v925
        %v932 = vrsqrt.pop %v926
        %v933 = vmul.f32 %v891, %v927
        %v934 = vmul.f32 %v892, %v928
        %v935 = vmul.f32 %v893, %v929
        %v936 = vmul.f32 %v894, %v930
        %v937 = vmul.f32 %v895, %v931
        %v938 = vmul.f32 %v896, %v932
        %v939 = vlaneseq
        %v940 = vshrl.u32 %v939, 7
        %v941 = vsub.s32 4, %v940
        %v942 = vrot.slane %v582, %v941
        %v943 = vmul.f32 %v933, %v942
        %v944 = vmul.f32 %v934, %v942
        %v945 = vmul.f32 %v935, %v942
        %v946 = vmul.f32 %v936, %v942
        %v947 = vmul.f32 %v937, %v942
        %v948 = vmul.f32 %v938, %v942
        %v949 = vlaneseq
        %v950 = vshrl.u32 %v949, 7
        %v951 = vsub.s32 5, %v950
        %v952 = vrot.slane %v582, %v951
        %v953 = vadd.f32 %v943, %v952
        %v954 = vadd.f32 %v944, %v952
        %v955 = vadd.f32 %v945, %v952
        %v956 = vadd.f32 %v946, %v952
        %v957 = vadd.f32 %v947, %v952
        %v958 = vadd.f32 %v948, %v952
        %v959 = vmax.f32 %v953, 0.0
        %v960 = vmax.f32 %v954, 0.0
        %v961 = vmax.f32 %v955, 0.0
        %v962 = vmax.f32 %v956, 0.0
        %v963 = vmax.f32 %v957, 0.0
        %v964 = vmax.f32 %v958, 0.0
        %v965 = vpack.c.bf16 %v960, %v959
        %v966 = vpack.c.bf16 %v962, %v961
        %v967 = vpack.c.bf16 %v964, %v963
        %v968 = vld [vmem:[%s559] sm:$0xff]
        %v969 = vld [vmem:[%s559 + $0x8] sm:$0xff]
        %v970 = vld [vmem:[%s559 + $0x10] sm:$0xff]
        %v971 = vld [vmem:[%s559 + $0x18] sm:$0xff]
        %v972 = vld [vmem:[%s559 + $0x20] sm:$0xff]
        %v973 = vld [vmem:[%s559 + $0x28] sm:$0xff]
        %974 = vset.pattern.permute.xlu0 0
        %975 = vperm.xlu0 %974, %v968
        %v976 = vpop.permute.xlu0 %975
        %977 = vset.pattern.permute.xlu0 0
        %978 = vperm.xlu0 %977, %v969
        %v979 = vpop.permute.xlu0 %978
        %980 = vset.pattern.permute.xlu0 0
        %981 = vperm.xlu0 %980, %v970
        %v982 = vpop.permute.xlu0 %981
        %983 = vset.pattern.permute.xlu0 0
        %984 = vperm.xlu0 %983, %v971
        %v985 = vpop.permute.xlu0 %984
        %986 = vset.pattern.permute.xlu0 0
        %987 = vperm.xlu0 %986, %v972
        %v988 = vpop.permute.xlu0 %987
        %989 = vset.pattern.permute.xlu0 0
        %990 = vperm.xlu0 %989, %v973
        %v991 = vpop.permute.xlu0 %990
        %vm992 = vcmp.eq.s32.totalorder %v575, %v976
        %vm993 = vcmp.eq.s32.totalorder %v575, %v979
        %vm994 = vcmp.eq.s32.totalorder %v575, %v982
        %vm995 = vcmp.eq.s32.totalorder %v575, %v985
        %vm996 = vcmp.eq.s32.totalorder %v575, %v988
        %vm997 = vcmp.eq.s32.totalorder %v575, %v991
        %v998 = vsel %vm992, 1, 0
        %v999 = vsel %vm993, 1, 0
        %v1000 = vsel %vm994, 1, 0
        %v1001 = vsel %vm995, 1, 0
        %v1002 = vsel %vm996, 1, 0
        %v1003 = vsel %vm997, 1, 0
        %v1004 = vcvt.s32.f32 %v998
        %v1005 = vcvt.s32.f32 %v999
        %v1006 = vcvt.s32.f32 %v1000
        %v1007 = vcvt.s32.f32 %v1001
        %v1008 = vcvt.s32.f32 %v1002
        %v1009 = vcvt.s32.f32 %v1003
        %v1010 = vpack.c.bf16 %v1005, %v1004
        %v1011 = vpack.c.bf16 %v1007, %v1006
        %v1012 = vpack.c.bf16 %v1009, %v1008
        %v1013 = vlaneseq
        %v1014 = vshrl.u32 %v1013, 7
        %v1015 = vadd.s32 %v1014, 8
        %v1016 = vld [vmem:[%s562] sm:$0x1]
        %v1017 = vlaneseq
        %v1018 = vshrl.u32 %v1017, 7
        %v1019 = vsub.s32 0, %v1018
        %v1020 = vrot.slane %v1016, %v1019
        %vm1021 = vcmp.eq.s32.totalorder %v1014, %v1020
        %vm1022 = vcmp.eq.s32.totalorder %v1015, %v1020
        %v1023 = vsel %vm1021, 1, 0
        %v1024 = vsel %vm1022, 1, 0
        %v1025 = vcvt.s32.f32 %v1023
        %v1026 = vcvt.s32.f32 %v1024
        %v1027 = vpack.c.bf16 %v1026, %v1025
        %v1028 = vld [vmem:[%s10] sm:$0xff]
        %v1029 = vld [vmem:[%s10 + $0x8] sm:$0xf]
        %v1030 = vpack.c.bf16 %v732, %v731
        %vm1031 = vcmask 130048
        %v1033 = vsel %vm1031, %v1010, 0
        %v1036 = vsel %vm1031, %v1011, 0
        %v1039 = vsel %vm1031, %v1012, 0
        %1041 = vmatprep.subr.bf16.mxu0 0
        %1042 = vmatpush1.bf16.msra.mxu0 %v1030
        %1043 = vmatprep.subr.bf16.mxu0 0
        %1044 = vmatpush1.bf16.msra.mxu0 0
        %1045 = vmatprep.subr.bf16.mxu0 0
        %1046 = vmatpush1.bf16.msra.mxu0 0
        %1047 = vmatprep.subr.bf16.mxu0 0
        %1048 = vmatpush1.bf16.msra.mxu0 0
        %1049 = vmatprep.subr.bf16.mxu0 0
        %1050 = vmatpush1.bf16.msra.mxu0 0
        %1051 = vmatprep.subr.bf16.mxu0 0
        %1052 = vmatpush1.bf16.msra.mxu0 0
        %1053 = vmatprep.subr.bf16.mxu0 0
        %1054 = vmatpush1.bf16.msra.mxu0 0
        %1055 = vmatprep.subr.bf16.mxu0 0
        %1056 = vmatpush1.bf16.msra.mxu0 0
        %1057 = vmatprep.subr.bf16.mxu0 0
        %1058 = vmatpush1.bf16.msra.mxu0 0
        %1059 = vmatprep.subr.bf16.mxu0 0
        %1060 = vmatpush1.bf16.msra.mxu0 0
        %1061 = vmatprep.subr.bf16.mxu0 0
        %1062 = vmatpush1.bf16.msra.mxu0 0
        %1063 = vmatprep.subr.bf16.mxu0 0
        %1064 = vmatpush1.bf16.msra.mxu0 0
        %1065 = vmatprep.subr.bf16.mxu0 0
        %1066 = vmatpush1.bf16.msra.mxu0 0
        %1067 = vmatprep.subr.bf16.mxu0 0
        %1068 = vmatpush1.bf16.msra.mxu0 0
        %1069 = vmatprep.subr.bf16.mxu0 0
        %1070 = vmatpush1.bf16.msra.mxu0 0
        %1071 = vmatprep.subr.bf16.mxu0 0
        %1072 = vmatpush1.bf16.msra.mxu0 0
        %1073 = vmatprep.mubr.bf16.mxu0 0
        %1074 = vmatmul.mubr.bf16.gmra.mrb[0].mxu0 %v1033
        %v1075 = vpop.f32.mrb[0].mxu0
        %v1076 = vadd.f32 0.0, %v1075
        %v1077 = vpop.f32.mrb[0].mxu0
        %v1078 = vpop.f32.mrb[0].mxu0
        %v1079 = vadd.f32 0.0, %v1078
        %v1080 = vpop.f32.mrb[0].mxu0
        %1081 = vmatprep.mubr.bf16.mxu0 0
        %1082 = vmatmul.mubr.bf16.gmra.mrb[0].mxu0 %v1036
        %v1083 = vpop.f32.mrb[0].mxu0
        %v1084 = vadd.f32 0.0, %v1083
        %v1085 = vpop.f32.mrb[0].mxu0
        %v1086 = vpop.f32.mrb[0].mxu0
        %v1087 = vadd.f32 0.0, %v1086
        %v1088 = vpop.f32.mrb[0].mxu0
        %1089 = vmatprep.mubr.bf16.mxu0 0
        %1090 = vmatmul.mubr.bf16.gmra.mrb[0].mxu0 %v1039
        %v1091 = vpop.f32.mrb[0].mxu0
        %v1092 = vadd.f32 0.0, %v1091
        %v1093 = vpop.f32.mrb[0].mxu0
        %v1094 = vpop.f32.mrb[0].mxu0
        %v1095 = vadd.f32 0.0, %v1094
        %v1096 = vpop.f32.mrb[0].mxu0
        %1097 = vdwg.mxu0
        %v1098 = vpack.c.bf16 %v1079, %v1076
        %v1099 = vpack.c.bf16 %v1087, %v1084
        %v1100 = vpack.c.bf16 %v1095, %v1092
        %v1101 = vld [vmem:[%s7] sm:$0xf]
        %v1102 = vld [vmem:[%s7 + $0x4] sm:$0xf]
        %v1103 = vld [vmem:[%s7 + $0x8] sm:$0xf]
        %v1104 = vld [vmem:[%s7 + $0xc] sm:$0xf]
        %v1105 = vld [vmem:[%s7 + $0x10] sm:$0xf]
        %v1106 = vld [vmem:[%s7 + $0x14] sm:$0xf]
        %v1107 = vld [vmem:[%s7 + $0x18] sm:$0xf]
        %v1108 = vld [vmem:[%s7 + $0x1c] sm:$0xf]
        %v1109 = vld [vmem:[%s7 + $0x20] sm:$0xf]
        %v1110 = vld [vmem:[%s7 + $0x24] sm:$0xf]
        %v1111 = vld [vmem:[%s7 + $0x28] sm:$0xf]
        %v1112 = vld [vmem:[%s7 + $0x2c] sm:$0xf]
        %v1113 = vld [vmem:[%s7 + $0x30] sm:$0xf]
        %v1114 = vld [vmem:[%s7 + $0x34] sm:$0xf]
        %v1115 = vld [vmem:[%s7 + $0x38] sm:$0xf]
        %v1116 = vld [vmem:[%s7 + $0x3c] sm:$0xf]
        %v1117 = vld [vmem:[%s7 + $0x40] sm:$0xf]
        %v1118 = vld [vmem:[%s7 + $0x44] sm:$0xf]
        %v1119 = vld [vmem:[%s7 + $0x48] sm:$0xf]
        %v1120 = vld [vmem:[%s7 + $0x4c] sm:$0xf]
        %v1121 = vld [vmem:[%s7 + $0x50] sm:$0xf]
        %v1122 = vld [vmem:[%s7 + $0x54] sm:$0xf]
        %v1123 = vld [vmem:[%s7 + $0x58] sm:$0xf]
        %v1124 = vld [vmem:[%s7 + $0x5c] sm:$0xf]
        %v1125 = vld [vmem:[%s7 + $0x60] sm:$0xf]
        %v1126 = vld [vmem:[%s7 + $0x64] sm:$0xf]
        %v1127 = vld [vmem:[%s7 + $0x68] sm:$0xf]
        %v1128 = vld [vmem:[%s7 + $0x6c] sm:$0xf]
        %v1129 = vld [vmem:[%s7 + $0x70] sm:$0xf]
        %v1130 = vld [vmem:[%s7 + $0x74] sm:$0xf]
        %v1131 = vld [vmem:[%s7 + $0x78] sm:$0xf]
        %v1132 = vld [vmem:[%s7 + $0x7c] sm:$0xf]
        %v1133 = vlaneseq
        %v1134 = vshrl.u32 %v1133, 7
        %v1135 = vsub.s32 0, %v1134
        %v1136 = vrot.slane %v1028, %v1135
        %v1169 = vunpack.c.l.b16 %v1101
        %v1170 = vunpack.c.l.b16 %v1102
        %v1171 = vunpack.c.l.b16 %v1103
        %v1172 = vunpack.c.l.b16 %v1104
        %v1173 = vunpack.c.l.b16 %v1105
        %v1174 = vunpack.c.l.b16 %v1106
        %v1175 = vunpack.c.l.b16 %v1107
        %v1176 = vunpack.c.l.b16 %v1108
        %v1177 = vunpack.c.l.b16 %v1109
        %v1178 = vunpack.c.l.b16 %v1110
        %v1179 = vunpack.c.l.b16 %v1111
        %v1180 = vunpack.c.l.b16 %v1112
        %v1181 = vunpack.c.l.b16 %v1113
        %v1182 = vunpack.c.l.b16 %v1114
        %v1183 = vunpack.c.l.b16 %v1115
        %v1184 = vunpack.c.l.b16 %v1116
        %v1185 = vunpack.c.l.b16 %v1117
        %v1186 = vunpack.c.l.b16 %v1118
        %v1187 = vunpack.c.l.b16 %v1119
        %v1188 = vunpack.c.l.b16 %v1120
        %v1189 = vunpack.c.l.b16 %v1121
        %v1190 = vunpack.c.l.b16 %v1122
        %v1191 = vunpack.c.l.b16 %v1123
        %v1192 = vunpack.c.l.b16 %v1124
        %v1193 = vunpack.c.l.b16 %v1125
        %v1194 = vunpack.c.l.b16 %v1126
        %v1195 = vunpack.c.l.b16 %v1127
        %v1196 = vunpack.c.l.b16 %v1128
        %v1197 = vunpack.c.l.b16 %v1129
        %v1198 = vunpack.c.l.b16 %v1130
        %v1199 = vunpack.c.l.b16 %v1131
        %v1200 = vunpack.c.l.b16 %v1132
        %v1201 = vpack.c.b16 %v1170, %v1169
        %v1202 = vpack.c.b16 %v1172, %v1171
        %v1203 = vpack.c.b16 %v1174, %v1173
        %v1204 = vpack.c.b16 %v1176, %v1175
        %v1205 = vpack.c.b16 %v1178, %v1177
        %v1206 = vpack.c.b16 %v1180, %v1179
        %v1207 = vpack.c.b16 %v1182, %v1181
        %v1208 = vpack.c.b16 %v1184, %v1183
        %v1209 = vpack.c.b16 %v1186, %v1185
        %v1210 = vpack.c.b16 %v1188, %v1187
        %v1211 = vpack.c.b16 %v1190, %v1189
        %v1212 = vpack.c.b16 %v1192, %v1191
        %v1213 = vpack.c.b16 %v1194, %v1193
        %v1214 = vpack.c.b16 %v1196, %v1195
        %v1215 = vpack.c.b16 %v1198, %v1197
        %v1216 = vpack.c.b16 %v1200, %v1199
        %1233 = vmatprep.subr.bf16.mxu0 0
        %1234 = vmatpush1.bf16.msra.mxu0 %v1201
        %1235 = vmatprep.subr.bf16.mxu0 0
        %1236 = vmatpush1.bf16.msra.mxu0 %v1202
        %1237 = vmatprep.subr.bf16.mxu0 0
        %1238 = vmatpush1.bf16.msra.mxu0 %v1203
        %1239 = vmatprep.subr.bf16.mxu0 0
        %1240 = vmatpush1.bf16.msra.mxu0 %v1204
        %1241 = vmatprep.subr.bf16.mxu0 0
        %1242 = vmatpush1.bf16.msra.mxu0 %v1205
        %1243 = vmatprep.subr.bf16.mxu0 0
        %1244 = vmatpush1.bf16.msra.mxu0 %v1206
        %1245 = vmatprep.subr.bf16.mxu0 0
        %1246 = vmatpush1.bf16.msra.mxu0 %v1207
        %1247 = vmatprep.subr.bf16.mxu0 0
        %1248 = vmatpush1.bf16.msra.mxu0 %v1208
        %1249 = vmatprep.subr.bf16.mxu0 0
        %1250 = vmatpush1.bf16.msra.mxu0 %v1209
        %1251 = vmatprep.subr.bf16.mxu0 0
        %1252 = vmatpush1.bf16.msra.mxu0 %v1210
        %1253 = vmatprep.subr.bf16.mxu0 0
        %1254 = vmatpush1.bf16.msra.mxu0 %v1211
        %1255 = vmatprep.subr.bf16.mxu0 0
        %1256 = vmatpush1.bf16.msra.mxu0 %v1212
        %1257 = vmatprep.subr.bf16.mxu0 0
        %1258 = vmatpush1.bf16.msra.mxu0 %v1213
        %1259 = vmatprep.subr.bf16.mxu0 0
        %1260 = vmatpush1.bf16.msra.mxu0 %v1214
        %1261 = vmatprep.subr.bf16.mxu0 0
        %1262 = vmatpush1.bf16.msra.mxu0 %v1215
        %1263 = vmatprep.subr.bf16.mxu0 0
        %1264 = vmatpush1.bf16.msra.mxu0 %v1216
        %1265 = vmatprep.mubr.bf16.mxu0 %v965
        %1266 = vmatmul.mubr.bf16.gmra.mrb[0].mxu0 %v1098
        %v1267 = vpop.f32.mrb[0].mxu0
        %v1268 = vadd.f32 %v1136, %v1267
        %v1269 = vpop.f32.mrb[0].mxu0
        %v1270 = vpop.f32.mrb[0].mxu0
        %v1271 = vadd.f32 %v1136, %v1270
        %v1272 = vpop.f32.mrb[0].mxu0
        %1273 = vmatprep.mubr.bf16.mxu0 %v966
        %1274 = vmatmul.mubr.bf16.gmra.mrb[0].mxu0 %v1099
        %v1275 = vpop.f32.mrb[0].mxu0
        %v1276 = vadd.f32 %v1136, %v1275
        %v1277 = vpop.f32.mrb[0].mxu0
        %v1278 = vpop.f32.mrb[0].mxu0
        %v1279 = vadd.f32 %v1136, %v1278
        %v1280 = vpop.f32.mrb[0].mxu0
        %1281 = vmatprep.mubr.bf16.mxu0 %v967
        %1282 = vmatmul.mubr.bf16.gmra.mrb[0].mxu0 %v1100
        %v1283 = vpop.f32.mrb[0].mxu0
        %v1284 = vadd.f32 %v1136, %v1283
        %v1285 = vpop.f32.mrb[0].mxu0
        %v1286 = vpop.f32.mrb[0].mxu0
        %v1287 = vadd.f32 %v1136, %v1286
        %v1288 = vpop.f32.mrb[0].mxu0
        %1289 = vdwg.mxu0
        %1290 = vadd.xlane.f32.xlu0 %v1268
        %v1291 = vpop.xlane.xlu0 %1290
        %1292 = vadd.xlane.f32.xlu0 %v1271
        %v1293 = vpop.xlane.xlu0 %1292
        %1294 = vadd.xlane.f32.xlu0 %v1276
        %v1295 = vpop.xlane.xlu0 %1294
        %1296 = vadd.xlane.f32.xlu0 %v1279
        %v1297 = vpop.xlane.xlu0 %1296
        %1298 = vadd.xlane.f32.xlu0 %v1284
        %v1299 = vpop.xlane.xlu0 %1298
        %1300 = vadd.xlane.f32.xlu0 %v1287
        %v1301 = vpop.xlane.xlu0 %1300
        %v1302 = vmul.f32 %v1291, 0.03125
        %v1303 = vmul.f32 %v1293, 0.03125
        %v1304 = vmul.f32 %v1295, 0.03125
        %v1305 = vmul.f32 %v1297, 0.03125
        %v1306 = vmul.f32 %v1299, 0.03125
        %v1307 = vmul.f32 %v1301, 0.03125
        %v1308 = vsub.f32 %v1268, %v1302
        %v1309 = vsub.f32 %v1271, %v1303
        %v1310 = vsub.f32 %v1276, %v1304
        %v1311 = vsub.f32 %v1279, %v1305
        %v1312 = vsub.f32 %v1284, %v1306
        %v1313 = vsub.f32 %v1287, %v1307
        %v1314 = vmul.f32 %v1308, %v578
        %v1315 = vmul.f32 %v1309, %v578
        %v1316 = vmul.f32 %v1310, %v578
        %v1317 = vmul.f32 %v1311, %v578
        %v1318 = vmul.f32 %v1312, %v578
        %v1319 = vmul.f32 %v1313, %v578
        %v1320 = vmul.f32 %v1314, %v1314
        %v1321 = vmul.f32 %v1315, %v1315
        %v1322 = vmul.f32 %v1316, %v1316
        %v1323 = vmul.f32 %v1317, %v1317
        %v1324 = vmul.f32 %v1318, %v1318
        %v1325 = vmul.f32 %v1319, %v1319
        %1326 = vadd.xlane.f32.xlu0 %v1320
        %v1327 = vpop.xlane.xlu0 %1326
        %1328 = vadd.xlane.f32.xlu0 %v1321
        %v1329 = vpop.xlane.xlu0 %1328
        %1330 = vadd.xlane.f32.xlu0 %v1322
        %v1331 = vpop.xlane.xlu0 %1330
        %1332 = vadd.xlane.f32.xlu0 %v1323
        %v1333 = vpop.xlane.xlu0 %1332
        %1334 = vadd.xlane.f32.xlu0 %v1324
        %v1335 = vpop.xlane.xlu0 %1334
        %1336 = vadd.xlane.f32.xlu0 %v1325
        %v1337 = vpop.xlane.xlu0 %1336
        %v1338 = vmul.f32 %v1327, 0.03125
        %v1339 = vmul.f32 %v1329, 0.03125
        %v1340 = vmul.f32 %v1331, 0.03125
        %v1341 = vmul.f32 %v1333, 0.03125
        %v1342 = vmul.f32 %v1335, 0.03125
        %v1343 = vmul.f32 %v1337, 0.03125
        %v1344 = vadd.f32 %v1338, 1e-05
        %v1345 = vadd.f32 %v1339, 1e-05
        %v1346 = vadd.f32 %v1340, 1e-05
        %v1347 = vadd.f32 %v1341, 1e-05
        %v1348 = vadd.f32 %v1342, 1e-05
        %v1349 = vadd.f32 %v1343, 1e-05
        %v1350 = vrsqrt.pop %v1344
        %v1351 = vrsqrt.pop %v1345
        %v1352 = vrsqrt.pop %v1346
        %v1353 = vrsqrt.pop %v1347
        %v1354 = vrsqrt.pop %v1348
        %v1355 = vrsqrt.pop %v1349
        %v1356 = vmul.f32 %v1314, %v1350
        %v1357 = vmul.f32 %v1315, %v1351
        %v1358 = vmul.f32 %v1316, %v1352
        %v1359 = vmul.f32 %v1317, %v1353
        %v1360 = vmul.f32 %v1318, %v1354
        %v1361 = vmul.f32 %v1319, %v1355
        %v1362 = vlaneseq
        %v1363 = vshrl.u32 %v1362, 7
        %v1364 = vsub.s32 1, %v1363
        %v1365 = vrot.slane %v1028, %v1364
        %v1366 = vmul.f32 %v1356, %v1365
        %v1367 = vmul.f32 %v1357, %v1365
        %v1368 = vmul.f32 %v1358, %v1365
        %v1369 = vmul.f32 %v1359, %v1365
        %v1370 = vmul.f32 %v1360, %v1365
        %v1371 = vmul.f32 %v1361, %v1365
        %v1372 = vlaneseq
        %v1373 = vshrl.u32 %v1372, 7
        %v1374 = vsub.s32 2, %v1373
        %v1375 = vrot.slane %v1028, %v1374
        %v1376 = vadd.f32 %v1366, %v1375
        %v1377 = vadd.f32 %v1367, %v1375
        %v1378 = vadd.f32 %v1368, %v1375
        %v1379 = vadd.f32 %v1369, %v1375
        %v1380 = vadd.f32 %v1370, %v1375
        %v1381 = vadd.f32 %v1371, %v1375
        %v1382 = vmax.f32 %v1376, 0.0
        %v1383 = vmax.f32 %v1377, 0.0
        %v1384 = vmax.f32 %v1378, 0.0
        %v1385 = vmax.f32 %v1379, 0.0
        %v1386 = vmax.f32 %v1380, 0.0
        %v1387 = vmax.f32 %v1381, 0.0
        %v1388 = vadd.f32 %v1029, 1.0
        %v1389 = vlaneseq
        %v1390 = vshrl.u32 %v1389, 7
        %v1391 = vsub.s32 3, %v1390
        %v1392 = vrot.slane %v1388, %v1391
        %v1393 = vmul.f32 %v1392, %v731
        %v1394 = vmul.f32 %v1392, %v732
        %v1395 = vpack.c.bf16 %v1383, %v1382
        %v1396 = vpack.c.bf16 %v1385, %v1384
        %v1397 = vpack.c.bf16 %v1387, %v1386
        %vm1398 = vcmask 392192
        %v1400 = vsel %vm1398, %v1027, 0
        %1402 = vmatprep.subr.bf16.mxu0 0
        %1403 = vmatpush1.bf16.msra.mxu0 %v1395
        %1404 = vmatprep.subr.bf16.mxu0 0
        %1405 = vmatpush1.bf16.msra.mxu0 %v1396
        %1406 = vmatprep.subr.bf16.mxu0 0
        %1407 = vmatpush1.bf16.msra.mxu0 %v1397
        %1408 = vmatprep.subr.bf16.mxu0 0
        %1409 = vmatpush1.bf16.msra.mxu0 0
        %1410 = vmatprep.subr.bf16.mxu0 0
        %1411 = vmatpush1.bf16.msra.mxu0 0
        %1412 = vmatprep.subr.bf16.mxu0 0
        %1413 = vmatpush1.bf16.msra.mxu0 0
        %1414 = vmatprep.subr.bf16.mxu0 0
        %1415 = vmatpush1.bf16.msra.mxu0 0
        %1416 = vmatprep.subr.bf16.mxu0 0
        %1417 = vmatpush1.bf16.msra.mxu0 0
        %1418 = vmatprep.subr.bf16.mxu0 0
        %1419 = vmatpush1.bf16.msra.mxu0 0
        %1420 = vmatprep.subr.bf16.mxu0 0
        %1421 = vmatpush1.bf16.msra.mxu0 0
        %1422 = vmatprep.subr.bf16.mxu0 0
        %1423 = vmatpush1.bf16.msra.mxu0 0
        %1424 = vmatprep.subr.bf16.mxu0 0
        %1425 = vmatpush1.bf16.msra.mxu0 0
        %1426 = vmatprep.subr.bf16.mxu0 0
        %1427 = vmatpush1.bf16.msra.mxu0 0
        %1428 = vmatprep.subr.bf16.mxu0 0
        %1429 = vmatpush1.bf16.msra.mxu0 0
        %1430 = vmatprep.subr.bf16.mxu0 0
        %1431 = vmatpush1.bf16.msra.mxu0 0
        %1432 = vmatprep.subr.bf16.mxu0 0
        %1433 = vmatpush1.bf16.msra.mxu0 0
        %1434 = vmatprep.mubr.bf16.mxu0 0
        %1435 = vmatmul.mubr.bf16.gmra.mrb[0].mxu0 %v1400
        %v1436 = vpop.f32.mrb[0].mxu0
        %v1437 = vadd.f32 0.0, %v1436
        %v1438 = vpop.f32.mrb[0].mxu0
        %v1439 = vpop.f32.mrb[0].mxu0
        %v1440 = vadd.f32 0.0, %v1439
        %v1441 = vpop.f32.mrb[0].mxu0
        %1442 = vdwg.mxu0
        %v1443 = vadd.f32 %v1393, %v1437
        %v1444 = vadd.f32 %v1394, %v1440
        %v1445 = vpack.c.bf16 %v1444, %v1443
        %v1446 = vld [vmem:[%s8] sm:$0xf]
        %v1447 = vld [vmem:[%s8 + $0x4] sm:$0xf]
        %v1448 = vld [vmem:[%s8 + $0x8] sm:$0xf]
        %v1449 = vld [vmem:[%s8 + $0xc] sm:$0xf]
        %v1450 = vld [vmem:[%s8 + $0x10] sm:$0xf]
        %v1451 = vld [vmem:[%s8 + $0x14] sm:$0xf]
        %v1452 = vld [vmem:[%s8 + $0x18] sm:$0xf]
        %v1453 = vld [vmem:[%s8 + $0x1c] sm:$0xf]
        %v1454 = vld [vmem:[%s8 + $0x20] sm:$0xf]
        %v1455 = vld [vmem:[%s8 + $0x24] sm:$0xf]
        %v1456 = vld [vmem:[%s8 + $0x28] sm:$0xf]
        %v1457 = vld [vmem:[%s8 + $0x2c] sm:$0xf]
        %v1458 = vld [vmem:[%s8 + $0x30] sm:$0xf]
        %v1459 = vld [vmem:[%s8 + $0x34] sm:$0xf]
        %v1460 = vld [vmem:[%s8 + $0x38] sm:$0xf]
        %v1461 = vld [vmem:[%s8 + $0x3c] sm:$0xf]
        %v1462 = vlaneseq
        %v1463 = vshrl.u32 %v1462, 7
        %v1464 = vsub.s32 3, %v1463
        %v1465 = vrot.slane %v1028, %v1464
        %v1482 = vunpack.c.l.b16 %v1446
        %v1483 = vunpack.c.l.b16 %v1447
        %v1484 = vunpack.c.l.b16 %v1448
        %v1485 = vunpack.c.l.b16 %v1449
        %v1486 = vunpack.c.l.b16 %v1450
        %v1487 = vunpack.c.l.b16 %v1451
        %v1488 = vunpack.c.l.b16 %v1452
        %v1489 = vunpack.c.l.b16 %v1453
        %v1490 = vunpack.c.l.b16 %v1454
        %v1491 = vunpack.c.l.b16 %v1455
        %v1492 = vunpack.c.l.b16 %v1456
        %v1493 = vunpack.c.l.b16 %v1457
        %v1494 = vunpack.c.l.b16 %v1458
        %v1495 = vunpack.c.l.b16 %v1459
        %v1496 = vunpack.c.l.b16 %v1460
        %v1497 = vunpack.c.l.b16 %v1461
        %v1498 = vpack.c.b16 %v1483, %v1482
        %v1499 = vpack.c.b16 %v1485, %v1484
        %v1500 = vpack.c.b16 %v1487, %v1486
        %v1501 = vpack.c.b16 %v1489, %v1488
        %v1502 = vpack.c.b16 %v1491, %v1490
        %v1503 = vpack.c.b16 %v1493, %v1492
        %v1504 = vpack.c.b16 %v1495, %v1494
        %v1505 = vpack.c.b16 %v1497, %v1496
        %1514 = vmatprep.subr.bf16.mxu0 0
        %1515 = vmatpush1.bf16.msra.mxu0 %v1498
        %1516 = vmatprep.subr.bf16.mxu0 0
        %1517 = vmatpush1.bf16.msra.mxu0 %v1499
        %1518 = vmatprep.subr.bf16.mxu0 0
        %1519 = vmatpush1.bf16.msra.mxu0 %v1500
        %1520 = vmatprep.subr.bf16.mxu0 0
        %1521 = vmatpush1.bf16.msra.mxu0 %v1501
        %1522 = vmatprep.subr.bf16.mxu0 0
        %1523 = vmatpush1.bf16.msra.mxu0 %v1502
        %1524 = vmatprep.subr.bf16.mxu0 0
        %1525 = vmatpush1.bf16.msra.mxu0 %v1503
        %1526 = vmatprep.subr.bf16.mxu0 0
        %1527 = vmatpush1.bf16.msra.mxu0 %v1504
        %1528 = vmatprep.subr.bf16.mxu0 0
        %1529 = vmatpush1.bf16.msra.mxu0 %v1505
        %1530 = vmatprep.subr.bf16.mxu0 0
        %1531 = vmatpush1.bf16.msra.mxu0 0
        %1532 = vmatprep.subr.bf16.mxu0 0
        %1533 = vmatpush1.bf16.msra.mxu0 0
        %1534 = vmatprep.subr.bf16.mxu0 0
        %1535 = vmatpush1.bf16.msra.mxu0 0
        %1536 = vmatprep.subr.bf16.mxu0 0
        %1537 = vmatpush1.bf16.msra.mxu0 0
        %1538 = vmatprep.subr.bf16.mxu0 0
        %1539 = vmatpush1.bf16.msra.mxu0 0
        %1540 = vmatprep.subr.bf16.mxu0 0
        %1541 = vmatpush1.bf16.msra.mxu0 0
        %1542 = vmatprep.subr.bf16.mxu0 0
        %1543 = vmatpush1.bf16.msra.mxu0 0
        %1544 = vmatprep.subr.bf16.mxu0 0
        %1545 = vmatpush1.bf16.msra.mxu0 0
        %1546 = vmatprep.mubr.bf16.mxu0 0
        %1547 = vmatmul.mubr.bf16.gmra.mrb[0].mxu0 %v1445
        %v1548 = vpop.f32.mrb[0].mxu0
        %v1549 = vadd.f32 %v1465, %v1548
        %v1550 = vpop.f32.mrb[0].mxu0
        %v1551 = vpop.f32.mrb[0].mxu0
        %v1552 = vadd.f32 %v1465, %v1551
        %v1553 = vpop.f32.mrb[0].mxu0
        %1554 = vdwg.mxu0
        %1555 = vadd.xlane.f32.xlu0 %v1549
        %v1556 = vpop.xlane.xlu0 %1555
        %1557 = vadd.xlane.f32.xlu0 %v1552
        %v1558 = vpop.xlane.xlu0 %1557
        %v1559 = vmul.f32 %v1556, 0.03125
        %v1560 = vmul.f32 %v1558, 0.03125
        %v1561 = vsub.f32 %v1549, %v1559
        %v1562 = vsub.f32 %v1552, %v1560
        %v1563 = vmul.f32 %v1561, %v578
        %v1564 = vmul.f32 %v1562, %v578
        %v1565 = vmul.f32 %v1563, %v1563
        %v1566 = vmul.f32 %v1564, %v1564
        %1567 = vadd.xlane.f32.xlu0 %v1565
        %v1568 = vpop.xlane.xlu0 %1567
        %1569 = vadd.xlane.f32.xlu0 %v1566
        %v1570 = vpop.xlane.xlu0 %1569
        %v1571 = vmul.f32 %v1568, 0.03125
        %v1572 = vmul.f32 %v1570, 0.03125
        %v1573 = vadd.f32 %v1571, 1e-05
        %v1574 = vadd.f32 %v1572, 1e-05
        %v1575 = vrsqrt.pop %v1573
        %v1576 = vrsqrt.pop %v1574
        %v1577 = vmul.f32 %v1563, %v1575
        %v1578 = vmul.f32 %v1564, %v1576
        %v1579 = vlaneseq
        %v1580 = vshrl.u32 %v1579, 7
        %v1581 = vsub.s32 4, %v1580
        %v1582 = vrot.slane %v1028, %v1581
        %v1583 = vmul.f32 %v1577, %v1582
        %v1584 = vmul.f32 %v1578, %v1582
        %v1585 = vlaneseq
        %v1586 = vshrl.u32 %v1585, 7
        %v1587 = vsub.s32 5, %v1586
        %v1588 = vrot.slane %v1028, %v1587
        %v1589 = vadd.f32 %v1583, %v1588
        %v1590 = vadd.f32 %v1584, %v1588
        %v1591 = vmax.f32 %v1589, 0.0
        %v1592 = vmax.f32 %v1590, 0.0
        %v1593 = vpack.c.bf16 %v1592, %v1591
        %v1594 = vld [vmem:[%s9] sm:$0xf]
        %v1595 = vld [vmem:[%s9 + $0x4] sm:$0xf]
        %v1596 = vld [vmem:[%s9 + $0x8] sm:$0xf]
        %v1597 = vld [vmem:[%s9 + $0xc] sm:$0xf]
        %v1598 = vld [vmem:[%s9 + $0x10] sm:$0xf]
        %v1599 = vld [vmem:[%s9 + $0x14] sm:$0xf]
        %v1600 = vld [vmem:[%s9 + $0x18] sm:$0xf]
        %v1601 = vld [vmem:[%s9 + $0x1c] sm:$0xf]
        %v1602 = vld [vmem:[%s9 + $0x20] sm:$0xf]
        %v1603 = vld [vmem:[%s9 + $0x24] sm:$0xf]
        %v1604 = vld [vmem:[%s9 + $0x28] sm:$0xf]
        %v1605 = vld [vmem:[%s9 + $0x2c] sm:$0xf]
        %v1606 = vld [vmem:[%s9 + $0x30] sm:$0xf]
        %v1607 = vld [vmem:[%s9 + $0x34] sm:$0xf]
        %v1608 = vld [vmem:[%s9 + $0x38] sm:$0xf]
        %v1609 = vld [vmem:[%s9 + $0x3c] sm:$0xf]
        %v1610 = vlaneseq
        %v1611 = vshrl.u32 %v1610, 7
        %v1612 = vsub.s32 6, %v1611
        %v1613 = vrot.slane %v1028, %v1612
        %v1630 = vunpack.c.l.b16 %v1594
        %v1631 = vunpack.c.l.b16 %v1595
        %v1632 = vunpack.c.l.b16 %v1596
        %v1633 = vunpack.c.l.b16 %v1597
        %v1634 = vunpack.c.l.b16 %v1598
        %v1635 = vunpack.c.l.b16 %v1599
        %v1636 = vunpack.c.l.b16 %v1600
        %v1637 = vunpack.c.l.b16 %v1601
        %v1638 = vunpack.c.l.b16 %v1602
        %v1639 = vunpack.c.l.b16 %v1603
        %v1640 = vunpack.c.l.b16 %v1604
        %v1641 = vunpack.c.l.b16 %v1605
        %v1642 = vunpack.c.l.b16 %v1606
        %v1643 = vunpack.c.l.b16 %v1607
        %v1644 = vunpack.c.l.b16 %v1608
        %v1645 = vunpack.c.l.b16 %v1609
        %v1646 = vpack.c.b16 %v1631, %v1630
        %v1647 = vpack.c.b16 %v1633, %v1632
        %v1648 = vpack.c.b16 %v1635, %v1634
        %v1649 = vpack.c.b16 %v1637, %v1636
        %v1650 = vpack.c.b16 %v1639, %v1638
        %v1651 = vpack.c.b16 %v1641, %v1640
        %v1652 = vpack.c.b16 %v1643, %v1642
        %v1653 = vpack.c.b16 %v1645, %v1644
        %1662 = vmatprep.subr.bf16.mxu0 0
        %1663 = vmatpush1.bf16.msra.mxu0 %v1646
        %1664 = vmatprep.subr.bf16.mxu0 0
        %1665 = vmatpush1.bf16.msra.mxu0 %v1647
        %1666 = vmatprep.subr.bf16.mxu0 0
        %1667 = vmatpush1.bf16.msra.mxu0 %v1648
        %1668 = vmatprep.subr.bf16.mxu0 0
        %1669 = vmatpush1.bf16.msra.mxu0 %v1649
        %1670 = vmatprep.subr.bf16.mxu0 0
        %1671 = vmatpush1.bf16.msra.mxu0 %v1650
        %1672 = vmatprep.subr.bf16.mxu0 0
        %1673 = vmatpush1.bf16.msra.mxu0 %v1651
        %1674 = vmatprep.subr.bf16.mxu0 0
        %1675 = vmatpush1.bf16.msra.mxu0 %v1652
        %1676 = vmatprep.subr.bf16.mxu0 0
        %1677 = vmatpush1.bf16.msra.mxu0 %v1653
        %1678 = vmatprep.subr.bf16.mxu0 0
        %1679 = vmatpush1.bf16.msra.mxu0 0
        %1680 = vmatprep.subr.bf16.mxu0 0
        %1681 = vmatpush1.bf16.msra.mxu0 0
        %1682 = vmatprep.subr.bf16.mxu0 0
        %1683 = vmatpush1.bf16.msra.mxu0 0
        %1684 = vmatprep.subr.bf16.mxu0 0
        %1685 = vmatpush1.bf16.msra.mxu0 0
        %1686 = vmatprep.subr.bf16.mxu0 0
        %1687 = vmatpush1.bf16.msra.mxu0 0
        %1688 = vmatprep.subr.bf16.mxu0 0
        %1689 = vmatpush1.bf16.msra.mxu0 0
        %1690 = vmatprep.subr.bf16.mxu0 0
        %1691 = vmatpush1.bf16.msra.mxu0 0
        %1692 = vmatprep.subr.bf16.mxu0 0
        %1693 = vmatpush1.bf16.msra.mxu0 0
        %1694 = vmatprep.mubr.bf16.mxu0 0
        %1695 = vmatmul.mubr.bf16.gmra.mrb[0].mxu0 %v1593
        %v1696 = vpop.f32.mrb[0].mxu0
        %v1697 = vadd.f32 %v1613, %v1696
        %v1698 = vpop.f32.mrb[0].mxu0
        %v1699 = vpop.f32.mrb[0].mxu0
        %v1700 = vadd.f32 %v1613, %v1699
        %v1701 = vpop.f32.mrb[0].mxu0
        %1702 = vdwg.mxu0
        %v1703 = vmul.f32 %v731, 2.0
        %v1704 = vmul.f32 %v732, 2.0
        %v1705 = vadd.f32 %v1697, %v1703
        %v1706 = vadd.f32 %v1700, %v1704
        %v1707 = vlaneseq
        %v1708 = vshrl.u32 %v1707, 7
        %v1709 = vsub.s32 7, %v1708
        %v1710 = vrot.slane %v1028, %v1709
        %v1711 = vsub.f32 %v1705, %v1710
        %v1712 = vsub.f32 %v1706, %v1710
        %v1713 = vadd.f32 %v1029, 1e-05
        %v1714 = vrsqrt.pop %v1713
        %v1715 = vlaneseq
        %v1716 = vshrl.u32 %v1715, 7
        %v1717 = vsub.s32 0, %v1716
        %v1718 = vrot.slane %v1714, %v1717
        %v1719 = vmul.f32 %v1711, %v1718
        %v1720 = vmul.f32 %v1712, %v1718
        %v1721 = vlaneseq
        %v1722 = vshrl.u32 %v1721, 7
        %v1723 = vsub.s32 1, %v1722
        %v1724 = vrot.slane %v1029, %v1723
        %v1725 = vmul.f32 %v1719, %v1724
        %v1726 = vmul.f32 %v1720, %v1724
        %v1727 = vlaneseq
        %v1728 = vshrl.u32 %v1727, 7
        %v1729 = vsub.s32 2, %v1728
        %v1730 = vrot.slane %v1029, %v1729
        %v1731 = vadd.f32 %v1725, %v1730
        %v1732 = vadd.f32 %v1726, %v1730
        %v1733 = vmax.f32 %v1731, 0.0
        %v1734 = vmax.f32 %v1732, 0.0
        %v1735 = vadd.f32 %v1733, 0.0
        %v1736 = vadd.f32 %v1734, 0.0
        %s1737 = scalar_lea.vmem %s10, 16
        %v1738 = vld [vmem:[%s1737] sm:$0xff]
        %v1739 = vld [vmem:[%s1737 + $0x8] sm:$0xf]
        %v1740 = vpack.c.bf16 %v1734, %v1733
        %1741 = vmatprep.subr.bf16.mxu0 0
        %1742 = vmatpush1.bf16.msra.mxu0 %v1740
        %1743 = vmatprep.subr.bf16.mxu0 0
        %1744 = vmatpush1.bf16.msra.mxu0 0
        %1745 = vmatprep.subr.bf16.mxu0 0
        %1746 = vmatpush1.bf16.msra.mxu0 0
        %1747 = vmatprep.subr.bf16.mxu0 0
        %1748 = vmatpush1.bf16.msra.mxu0 0
        %1749 = vmatprep.subr.bf16.mxu0 0
        %1750 = vmatpush1.bf16.msra.mxu0 0
        %1751 = vmatprep.subr.bf16.mxu0 0
        %1752 = vmatpush1.bf16.msra.mxu0 0
        %1753 = vmatprep.subr.bf16.mxu0 0
        %1754 = vmatpush1.bf16.msra.mxu0 0
        %1755 = vmatprep.subr.bf16.mxu0 0
        %1756 = vmatpush1.bf16.msra.mxu0 0
        %1757 = vmatprep.subr.bf16.mxu0 0
        %1758 = vmatpush1.bf16.msra.mxu0 0
        %1759 = vmatprep.subr.bf16.mxu0 0
        %1760 = vmatpush1.bf16.msra.mxu0 0
        %1761 = vmatprep.subr.bf16.mxu0 0
        %1762 = vmatpush1.bf16.msra.mxu0 0
        %1763 = vmatprep.subr.bf16.mxu0 0
        %1764 = vmatpush1.bf16.msra.mxu0 0
        %1765 = vmatprep.subr.bf16.mxu0 0
        %1766 = vmatpush1.bf16.msra.mxu0 0
        %1767 = vmatprep.subr.bf16.mxu0 0
        %1768 = vmatpush1.bf16.msra.mxu0 0
        %1769 = vmatprep.subr.bf16.mxu0 0
        %1770 = vmatpush1.bf16.msra.mxu0 0
        %1771 = vmatprep.subr.bf16.mxu0 0
        %1772 = vmatpush1.bf16.msra.mxu0 0
        %1773 = vmatprep.mubr.bf16.mxu0 0
        %1774 = vmatmul.mubr.bf16.gmra.mrb[0].mxu0 %v1033
        %v1775 = vpop.f32.mrb[0].mxu0
        %v1776 = vadd.f32 0.0, %v1775
        %v1777 = vpop.f32.mrb[0].mxu0
        %v1778 = vpop.f32.mrb[0].mxu0
        %v1779 = vadd.f32 0.0, %v1778
        %v1780 = vpop.f32.mrb[0].mxu0
        %1781 = vmatprep.mubr.bf16.mxu0 0
        %1782 = vmatmul.mubr.bf16.gmra.mrb[0].mxu0 %v1036
        %v1783 = vpop.f32.mrb[0].mxu0
        %v1784 = vadd.f32 0.0, %v1783
        %v1785 = vpop.f32.mrb[0].mxu0
        %v1786 = vpop.f32.mrb[0].mxu0
        %v1787 = vadd.f32 0.0, %v1786
        %v1788 = vpop.f32.mrb[0].mxu0
        %1789 = vmatprep.mubr.bf16.mxu0 0
        %1790 = vmatmul.mubr.bf16.gmra.mrb[0].mxu0 %v1039
        %v1791 = vpop.f32.mrb[0].mxu0
        %v1792 = vadd.f32 0.0, %v1791
        %v1793 = vpop.f32.mrb[0].mxu0
        %v1794 = vpop.f32.mrb[0].mxu0
        %v1795 = vadd.f32 0.0, %v1794
        %v1796 = vpop.f32.mrb[0].mxu0
        %1797 = vdwg.mxu0
        %v1798 = vpack.c.bf16 %v1779, %v1776
        %v1799 = vpack.c.bf16 %v1787, %v1784
        %v1800 = vpack.c.bf16 %v1795, %v1792
        %s1801 = scalar_lea.vmem %s7, 128
        %v1802 = vld [vmem:[%s1801] sm:$0xf]
        %v1803 = vld [vmem:[%s1801 + $0x4] sm:$0xf]
        %v1804 = vld [vmem:[%s1801 + $0x8] sm:$0xf]
        %v1805 = vld [vmem:[%s1801 + $0xc] sm:$0xf]
        %v1806 = vld [vmem:[%s1801 + $0x10] sm:$0xf]
        %v1807 = vld [vmem:[%s1801 + $0x14] sm:$0xf]
        %v1808 = vld [vmem:[%s1801 + $0x18] sm:$0xf]
        %v1809 = vld [vmem:[%s1801 + $0x1c] sm:$0xf]
        %v1810 = vld [vmem:[%s1801 + $0x20] sm:$0xf]
        %v1811 = vld [vmem:[%s1801 + $0x24] sm:$0xf]
        %v1812 = vld [vmem:[%s1801 + $0x28] sm:$0xf]
        %v1813 = vld [vmem:[%s1801 + $0x2c] sm:$0xf]
        %v1814 = vld [vmem:[%s1801 + $0x30] sm:$0xf]
        %v1815 = vld [vmem:[%s1801 + $0x34] sm:$0xf]
        %v1816 = vld [vmem:[%s1801 + $0x38] sm:$0xf]
        %v1817 = vld [vmem:[%s1801 + $0x3c] sm:$0xf]
        %v1818 = vld [vmem:[%s1801 + $0x40] sm:$0xf]
        %v1819 = vld [vmem:[%s1801 + $0x44] sm:$0xf]
        %v1820 = vld [vmem:[%s1801 + $0x48] sm:$0xf]
        %v1821 = vld [vmem:[%s1801 + $0x4c] sm:$0xf]
        %v1822 = vld [vmem:[%s1801 + $0x50] sm:$0xf]
        %v1823 = vld [vmem:[%s1801 + $0x54] sm:$0xf]
        %v1824 = vld [vmem:[%s1801 + $0x58] sm:$0xf]
        %v1825 = vld [vmem:[%s1801 + $0x5c] sm:$0xf]
        %v1826 = vld [vmem:[%s1801 + $0x60] sm:$0xf]
        %v1827 = vld [vmem:[%s1801 + $0x64] sm:$0xf]
        %v1828 = vld [vmem:[%s1801 + $0x68] sm:$0xf]
        %v1829 = vld [vmem:[%s1801 + $0x6c] sm:$0xf]
        %v1830 = vld [vmem:[%s1801 + $0x70] sm:$0xf]
        %v1831 = vld [vmem:[%s1801 + $0x74] sm:$0xf]
        %v1832 = vld [vmem:[%s1801 + $0x78] sm:$0xf]
        %v1833 = vld [vmem:[%s1801 + $0x7c] sm:$0xf]
        %v1834 = vlaneseq
        %v1835 = vshrl.u32 %v1834, 7
        %v1836 = vsub.s32 0, %v1835
        %v1837 = vrot.slane %v1738, %v1836
        %v1870 = vunpack.c.l.b16 %v1802
        %v1871 = vunpack.c.l.b16 %v1803
        %v1872 = vunpack.c.l.b16 %v1804
        %v1873 = vunpack.c.l.b16 %v1805
        %v1874 = vunpack.c.l.b16 %v1806
        %v1875 = vunpack.c.l.b16 %v1807
        %v1876 = vunpack.c.l.b16 %v1808
        %v1877 = vunpack.c.l.b16 %v1809
        %v1878 = vunpack.c.l.b16 %v1810
        %v1879 = vunpack.c.l.b16 %v1811
        %v1880 = vunpack.c.l.b16 %v1812
        %v1881 = vunpack.c.l.b16 %v1813
        %v1882 = vunpack.c.l.b16 %v1814
        %v1883 = vunpack.c.l.b16 %v1815
        %v1884 = vunpack.c.l.b16 %v1816
        %v1885 = vunpack.c.l.b16 %v1817
        %v1886 = vunpack.c.l.b16 %v1818
        %v1887 = vunpack.c.l.b16 %v1819
        %v1888 = vunpack.c.l.b16 %v1820
        %v1889 = vunpack.c.l.b16 %v1821
        %v1890 = vunpack.c.l.b16 %v1822
        %v1891 = vunpack.c.l.b16 %v1823
        %v1892 = vunpack.c.l.b16 %v1824
        %v1893 = vunpack.c.l.b16 %v1825
        %v1894 = vunpack.c.l.b16 %v1826
        %v1895 = vunpack.c.l.b16 %v1827
        %v1896 = vunpack.c.l.b16 %v1828
        %v1897 = vunpack.c.l.b16 %v1829
        %v1898 = vunpack.c.l.b16 %v1830
        %v1899 = vunpack.c.l.b16 %v1831
        %v1900 = vunpack.c.l.b16 %v1832
        %v1901 = vunpack.c.l.b16 %v1833
        %v1902 = vpack.c.b16 %v1871, %v1870
        %v1903 = vpack.c.b16 %v1873, %v1872
        %v1904 = vpack.c.b16 %v1875, %v1874
        %v1905 = vpack.c.b16 %v1877, %v1876
        %v1906 = vpack.c.b16 %v1879, %v1878
        %v1907 = vpack.c.b16 %v1881, %v1880
        %v1908 = vpack.c.b16 %v1883, %v1882
        %v1909 = vpack.c.b16 %v1885, %v1884
        %v1910 = vpack.c.b16 %v1887, %v1886
        %v1911 = vpack.c.b16 %v1889, %v1888
        %v1912 = vpack.c.b16 %v1891, %v1890
        %v1913 = vpack.c.b16 %v1893, %v1892
        %v1914 = vpack.c.b16 %v1895, %v1894
        %v1915 = vpack.c.b16 %v1897, %v1896
        %v1916 = vpack.c.b16 %v1899, %v1898
        %v1917 = vpack.c.b16 %v1901, %v1900
        %1934 = vmatprep.subr.bf16.mxu0 0
        %1935 = vmatpush1.bf16.msra.mxu0 %v1902
        %1936 = vmatprep.subr.bf16.mxu0 0
        %1937 = vmatpush1.bf16.msra.mxu0 %v1903
        %1938 = vmatprep.subr.bf16.mxu0 0
        %1939 = vmatpush1.bf16.msra.mxu0 %v1904
        %1940 = vmatprep.subr.bf16.mxu0 0
        %1941 = vmatpush1.bf16.msra.mxu0 %v1905
        %1942 = vmatprep.subr.bf16.mxu0 0
        %1943 = vmatpush1.bf16.msra.mxu0 %v1906
        %1944 = vmatprep.subr.bf16.mxu0 0
        %1945 = vmatpush1.bf16.msra.mxu0 %v1907
        %1946 = vmatprep.subr.bf16.mxu0 0
        %1947 = vmatpush1.bf16.msra.mxu0 %v1908
        %1948 = vmatprep.subr.bf16.mxu0 0
        %1949 = vmatpush1.bf16.msra.mxu0 %v1909
        %1950 = vmatprep.subr.bf16.mxu0 0
        %1951 = vmatpush1.bf16.msra.mxu0 %v1910
        %1952 = vmatprep.subr.bf16.mxu0 0
        %1953 = vmatpush1.bf16.msra.mxu0 %v1911
        %1954 = vmatprep.subr.bf16.mxu0 0
        %1955 = vmatpush1.bf16.msra.mxu0 %v1912
        %1956 = vmatprep.subr.bf16.mxu0 0
        %1957 = vmatpush1.bf16.msra.mxu0 %v1913
        %1958 = vmatprep.subr.bf16.mxu0 0
        %1959 = vmatpush1.bf16.msra.mxu0 %v1914
        %1960 = vmatprep.subr.bf16.mxu0 0
        %1961 = vmatpush1.bf16.msra.mxu0 %v1915
        %1962 = vmatprep.subr.bf16.mxu0 0
        %1963 = vmatpush1.bf16.msra.mxu0 %v1916
        %1964 = vmatprep.subr.bf16.mxu0 0
        %1965 = vmatpush1.bf16.msra.mxu0 %v1917
        %1966 = vmatprep.mubr.bf16.mxu0 %v965
        %1967 = vmatmul.mubr.bf16.gmra.mrb[0].mxu0 %v1798
        %v1968 = vpop.f32.mrb[0].mxu0
        %v1969 = vadd.f32 %v1837, %v1968
        %v1970 = vpop.f32.mrb[0].mxu0
        %v1971 = vpop.f32.mrb[0].mxu0
        %v1972 = vadd.f32 %v1837, %v1971
        %v1973 = vpop.f32.mrb[0].mxu0
        %1974 = vmatprep.mubr.bf16.mxu0 %v966
        %1975 = vmatmul.mubr.bf16.gmra.mrb[0].mxu0 %v1799
        %v1976 = vpop.f32.mrb[0].mxu0
        %v1977 = vadd.f32 %v1837, %v1976
        %v1978 = vpop.f32.mrb[0].mxu0
        %v1979 = vpop.f32.mrb[0].mxu0
        %v1980 = vadd.f32 %v1837, %v1979
        %v1981 = vpop.f32.mrb[0].mxu0
        %1982 = vmatprep.mubr.bf16.mxu0 %v967
        %1983 = vmatmul.mubr.bf16.gmra.mrb[0].mxu0 %v1800
        %v1984 = vpop.f32.mrb[0].mxu0
        %v1985 = vadd.f32 %v1837, %v1984
        %v1986 = vpop.f32.mrb[0].mxu0
        %v1987 = vpop.f32.mrb[0].mxu0
        %v1988 = vadd.f32 %v1837, %v1987
        %v1989 = vpop.f32.mrb[0].mxu0
        %1990 = vdwg.mxu0
        %1991 = vadd.xlane.f32.xlu0 %v1969
        %v1992 = vpop.xlane.xlu0 %1991
        %1993 = vadd.xlane.f32.xlu0 %v1972
        %v1994 = vpop.xlane.xlu0 %1993
        %1995 = vadd.xlane.f32.xlu0 %v1977
        %v1996 = vpop.xlane.xlu0 %1995
        %1997 = vadd.xlane.f32.xlu0 %v1980
        %v1998 = vpop.xlane.xlu0 %1997
        %1999 = vadd.xlane.f32.xlu0 %v1985
        %v2000 = vpop.xlane.xlu0 %1999
        %2001 = vadd.xlane.f32.xlu0 %v1988
        %v2002 = vpop.xlane.xlu0 %2001
        %v2003 = vmul.f32 %v1992, 0.03125
        %v2004 = vmul.f32 %v1994, 0.03125
        %v2005 = vmul.f32 %v1996, 0.03125
        %v2006 = vmul.f32 %v1998, 0.03125
        %v2007 = vmul.f32 %v2000, 0.03125
        %v2008 = vmul.f32 %v2002, 0.03125
        %v2009 = vsub.f32 %v1969, %v2003
        %v2010 = vsub.f32 %v1972, %v2004
        %v2011 = vsub.f32 %v1977, %v2005
        %v2012 = vsub.f32 %v1980, %v2006
        %v2013 = vsub.f32 %v1985, %v2007
        %v2014 = vsub.f32 %v1988, %v2008
        %v2015 = vmul.f32 %v2009, %v578
        %v2016 = vmul.f32 %v2010, %v578
        %v2017 = vmul.f32 %v2011, %v578
        %v2018 = vmul.f32 %v2012, %v578
        %v2019 = vmul.f32 %v2013, %v578
        %v2020 = vmul.f32 %v2014, %v578
        %v2021 = vmul.f32 %v2015, %v2015
        %v2022 = vmul.f32 %v2016, %v2016
        %v2023 = vmul.f32 %v2017, %v2017
        %v2024 = vmul.f32 %v2018, %v2018
        %v2025 = vmul.f32 %v2019, %v2019
        %v2026 = vmul.f32 %v2020, %v2020
        %2027 = vadd.xlane.f32.xlu0 %v2021
        %v2028 = vpop.xlane.xlu0 %2027
        %2029 = vadd.xlane.f32.xlu0 %v2022
        %v2030 = vpop.xlane.xlu0 %2029
        %2031 = vadd.xlane.f32.xlu0 %v2023
        %v2032 = vpop.xlane.xlu0 %2031
        %2033 = vadd.xlane.f32.xlu0 %v2024
        %v2034 = vpop.xlane.xlu0 %2033
        %2035 = vadd.xlane.f32.xlu0 %v2025
        %v2036 = vpop.xlane.xlu0 %2035
        %2037 = vadd.xlane.f32.xlu0 %v2026
        %v2038 = vpop.xlane.xlu0 %2037
        %v2039 = vmul.f32 %v2028, 0.03125
        %v2040 = vmul.f32 %v2030, 0.03125
        %v2041 = vmul.f32 %v2032, 0.03125
        %v2042 = vmul.f32 %v2034, 0.03125
        %v2043 = vmul.f32 %v2036, 0.03125
        %v2044 = vmul.f32 %v2038, 0.03125
        %v2045 = vadd.f32 %v2039, 1e-05
        %v2046 = vadd.f32 %v2040, 1e-05
        %v2047 = vadd.f32 %v2041, 1e-05
        %v2048 = vadd.f32 %v2042, 1e-05
        %v2049 = vadd.f32 %v2043, 1e-05
        %v2050 = vadd.f32 %v2044, 1e-05
        %v2051 = vrsqrt.pop %v2045
        %v2052 = vrsqrt.pop %v2046
        %v2053 = vrsqrt.pop %v2047
        %v2054 = vrsqrt.pop %v2048
        %v2055 = vrsqrt.pop %v2049
        %v2056 = vrsqrt.pop %v2050
        %v2057 = vmul.f32 %v2015, %v2051
        %v2058 = vmul.f32 %v2016, %v2052
        %v2059 = vmul.f32 %v2017, %v2053
        %v2060 = vmul.f32 %v2018, %v2054
        %v2061 = vmul.f32 %v2019, %v2055
        %v2062 = vmul.f32 %v2020, %v2056
        %v2063 = vlaneseq
        %v2064 = vshrl.u32 %v2063, 7
        %v2065 = vsub.s32 1, %v2064
        %v2066 = vrot.slane %v1738, %v2065
        %v2067 = vmul.f32 %v2057, %v2066
        %v2068 = vmul.f32 %v2058, %v2066
        %v2069 = vmul.f32 %v2059, %v2066
        %v2070 = vmul.f32 %v2060, %v2066
        %v2071 = vmul.f32 %v2061, %v2066
        %v2072 = vmul.f32 %v2062, %v2066
        %v2073 = vlaneseq
        %v2074 = vshrl.u32 %v2073, 7
        %v2075 = vsub.s32 2, %v2074
        %v2076 = vrot.slane %v1738, %v2075
        %v2077 = vadd.f32 %v2067, %v2076
        %v2078 = vadd.f32 %v2068, %v2076
        %v2079 = vadd.f32 %v2069, %v2076
        %v2080 = vadd.f32 %v2070, %v2076
        %v2081 = vadd.f32 %v2071, %v2076
        %v2082 = vadd.f32 %v2072, %v2076
        %v2083 = vmax.f32 %v2077, 0.0
        %v2084 = vmax.f32 %v2078, 0.0
        %v2085 = vmax.f32 %v2079, 0.0
        %v2086 = vmax.f32 %v2080, 0.0
        %v2087 = vmax.f32 %v2081, 0.0
        %v2088 = vmax.f32 %v2082, 0.0
        %v2089 = vadd.f32 %v1739, 1.0
        %v2090 = vlaneseq
        %v2091 = vshrl.u32 %v2090, 7
        %v2092 = vsub.s32 3, %v2091
        %v2093 = vrot.slane %v2089, %v2092
        %v2094 = vmul.f32 %v2093, %v1733
        %v2095 = vmul.f32 %v2093, %v1734
        %v2096 = vpack.c.bf16 %v2084, %v2083
        %v2097 = vpack.c.bf16 %v2086, %v2085
        %v2098 = vpack.c.bf16 %v2088, %v2087
        %2099 = vmatprep.subr.bf16.mxu0 0
        %2100 = vmatpush1.bf16.msra.mxu0 %v2096
        %2101 = vmatprep.subr.bf16.mxu0 0
        %2102 = vmatpush1.bf16.msra.mxu0 %v2097
        %2103 = vmatprep.subr.bf16.mxu0 0
        %2104 = vmatpush1.bf16.msra.mxu0 %v2098
        %2105 = vmatprep.subr.bf16.mxu0 0
        %2106 = vmatpush1.bf16.msra.mxu0 0
        %2107 = vmatprep.subr.bf16.mxu0 0
        %2108 = vmatpush1.bf16.msra.mxu0 0
        %2109 = vmatprep.subr.bf16.mxu0 0
        %2110 = vmatpush1.bf16.msra.mxu0 0
        %2111 = vmatprep.subr.bf16.mxu0 0
        %2112 = vmatpush1.bf16.msra.mxu0 0
        %2113 = vmatprep.subr.bf16.mxu0 0
        %2114 = vmatpush1.bf16.msra.mxu0 0
        %2115 = vmatprep.subr.bf16.mxu0 0
        %2116 = vmatpush1.bf16.msra.mxu0 0
        %2117 = vmatprep.subr.bf16.mxu0 0
        %2118 = vmatpush1.bf16.msra.mxu0 0
        %2119 = vmatprep.subr.bf16.mxu0 0
        %2120 = vmatpush1.bf16.msra.mxu0 0
        %2121 = vmatprep.subr.bf16.mxu0 0
        %2122 = vmatpush1.bf16.msra.mxu0 0
        %2123 = vmatprep.subr.bf16.mxu0 0
        %2124 = vmatpush1.bf16.msra.mxu0 0
        %2125 = vmatprep.subr.bf16.mxu0 0
        %2126 = vmatpush1.bf16.msra.mxu0 0
        %2127 = vmatprep.subr.bf16.mxu0 0
        %2128 = vmatpush1.bf16.msra.mxu0 0
        %2129 = vmatprep.subr.bf16.mxu0 0
        %2130 = vmatpush1.bf16.msra.mxu0 0
        %2131 = vmatprep.mubr.bf16.mxu0 0
        %2132 = vmatmul.mubr.bf16.gmra.mrb[0].mxu0 %v1400
        %v2133 = vpop.f32.mrb[0].mxu0
        %v2134 = vadd.f32 0.0, %v2133
        %v2135 = vpop.f32.mrb[0].mxu0
        %v2136 = vpop.f32.mrb[0].mxu0
        %v2137 = vadd.f32 0.0, %v2136
        %v2138 = vpop.f32.mrb[0].mxu0
        %2139 = vdwg.mxu0
        %v2140 = vadd.f32 %v2094, %v2134
        %v2141 = vadd.f32 %v2095, %v2137
        %v2142 = vpack.c.bf16 %v2141, %v2140
        %s2143 = scalar_lea.vmem %s8, 64
        %v2144 = vld [vmem:[%s2143] sm:$0xf]
        %v2145 = vld [vmem:[%s2143 + $0x4] sm:$0xf]
        %v2146 = vld [vmem:[%s2143 + $0x8] sm:$0xf]
        %v2147 = vld [vmem:[%s2143 + $0xc] sm:$0xf]
        %v2148 = vld [vmem:[%s2143 + $0x10] sm:$0xf]
        %v2149 = vld [vmem:[%s2143 + $0x14] sm:$0xf]
        %v2150 = vld [vmem:[%s2143 + $0x18] sm:$0xf]
        %v2151 = vld [vmem:[%s2143 + $0x1c] sm:$0xf]
        %v2152 = vld [vmem:[%s2143 + $0x20] sm:$0xf]
        %v2153 = vld [vmem:[%s2143 + $0x24] sm:$0xf]
        %v2154 = vld [vmem:[%s2143 + $0x28] sm:$0xf]
        %v2155 = vld [vmem:[%s2143 + $0x2c] sm:$0xf]
        %v2156 = vld [vmem:[%s2143 + $0x30] sm:$0xf]
        %v2157 = vld [vmem:[%s2143 + $0x34] sm:$0xf]
        %v2158 = vld [vmem:[%s2143 + $0x38] sm:$0xf]
        %v2159 = vld [vmem:[%s2143 + $0x3c] sm:$0xf]
        %v2160 = vlaneseq
        %v2161 = vshrl.u32 %v2160, 7
        %v2162 = vsub.s32 3, %v2161
        %v2163 = vrot.slane %v1738, %v2162
        %v2180 = vunpack.c.l.b16 %v2144
        %v2181 = vunpack.c.l.b16 %v2145
        %v2182 = vunpack.c.l.b16 %v2146
        %v2183 = vunpack.c.l.b16 %v2147
        %v2184 = vunpack.c.l.b16 %v2148
        %v2185 = vunpack.c.l.b16 %v2149
        %v2186 = vunpack.c.l.b16 %v2150
        %v2187 = vunpack.c.l.b16 %v2151
        %v2188 = vunpack.c.l.b16 %v2152
        %v2189 = vunpack.c.l.b16 %v2153
        %v2190 = vunpack.c.l.b16 %v2154
        %v2191 = vunpack.c.l.b16 %v2155
        %v2192 = vunpack.c.l.b16 %v2156
        %v2193 = vunpack.c.l.b16 %v2157
        %v2194 = vunpack.c.l.b16 %v2158
        %v2195 = vunpack.c.l.b16 %v2159
        %v2196 = vpack.c.b16 %v2181, %v2180
        %v2197 = vpack.c.b16 %v2183, %v2182
        %v2198 = vpack.c.b16 %v2185, %v2184
        %v2199 = vpack.c.b16 %v2187, %v2186
        %v2200 = vpack.c.b16 %v2189, %v2188
        %v2201 = vpack.c.b16 %v2191, %v2190
        %v2202 = vpack.c.b16 %v2193, %v2192
        %v2203 = vpack.c.b16 %v2195, %v2194
        %2212 = vmatprep.subr.bf16.mxu0 0
        %2213 = vmatpush1.bf16.msra.mxu0 %v2196
        %2214 = vmatprep.subr.bf16.mxu0 0
        %2215 = vmatpush1.bf16.msra.mxu0 %v2197
        %2216 = vmatprep.subr.bf16.mxu0 0
        %2217 = vmatpush1.bf16.msra.mxu0 %v2198
        %2218 = vmatprep.subr.bf16.mxu0 0
        %2219 = vmatpush1.bf16.msra.mxu0 %v2199
        %2220 = vmatprep.subr.bf16.mxu0 0
        %2221 = vmatpush1.bf16.msra.mxu0 %v2200
        %2222 = vmatprep.subr.bf16.mxu0 0
        %2223 = vmatpush1.bf16.msra.mxu0 %v2201
        %2224 = vmatprep.subr.bf16.mxu0 0
        %2225 = vmatpush1.bf16.msra.mxu0 %v2202
        %2226 = vmatprep.subr.bf16.mxu0 0
        %2227 = vmatpush1.bf16.msra.mxu0 %v2203
        %2228 = vmatprep.subr.bf16.mxu0 0
        %2229 = vmatpush1.bf16.msra.mxu0 0
        %2230 = vmatprep.subr.bf16.mxu0 0
        %2231 = vmatpush1.bf16.msra.mxu0 0
        %2232 = vmatprep.subr.bf16.mxu0 0
        %2233 = vmatpush1.bf16.msra.mxu0 0
        %2234 = vmatprep.subr.bf16.mxu0 0
        %2235 = vmatpush1.bf16.msra.mxu0 0
        %2236 = vmatprep.subr.bf16.mxu0 0
        %2237 = vmatpush1.bf16.msra.mxu0 0
        %2238 = vmatprep.subr.bf16.mxu0 0
        %2239 = vmatpush1.bf16.msra.mxu0 0
        %2240 = vmatprep.subr.bf16.mxu0 0
        %2241 = vmatpush1.bf16.msra.mxu0 0
        %2242 = vmatprep.subr.bf16.mxu0 0
        %2243 = vmatpush1.bf16.msra.mxu0 0
        %2244 = vmatprep.mubr.bf16.mxu0 0
        %2245 = vmatmul.mubr.bf16.gmra.mrb[0].mxu0 %v2142
        %v2246 = vpop.f32.mrb[0].mxu0
        %v2247 = vadd.f32 %v2163, %v2246
        %v2248 = vpop.f32.mrb[0].mxu0
        %v2249 = vpop.f32.mrb[0].mxu0
        %v2250 = vadd.f32 %v2163, %v2249
        %v2251 = vpop.f32.mrb[0].mxu0
        %2252 = vdwg.mxu0
        %2253 = vadd.xlane.f32.xlu0 %v2247
        %v2254 = vpop.xlane.xlu0 %2253
        %2255 = vadd.xlane.f32.xlu0 %v2250
        %v2256 = vpop.xlane.xlu0 %2255
        %v2257 = vmul.f32 %v2254, 0.03125
        %v2258 = vmul.f32 %v2256, 0.03125
        %v2259 = vsub.f32 %v2247, %v2257
        %v2260 = vsub.f32 %v2250, %v2258
        %v2261 = vmul.f32 %v2259, %v578
        %v2262 = vmul.f32 %v2260, %v578
        %v2263 = vmul.f32 %v2261, %v2261
        %v2264 = vmul.f32 %v2262, %v2262
        %2265 = vadd.xlane.f32.xlu0 %v2263
        %v2266 = vpop.xlane.xlu0 %2265
        %2267 = vadd.xlane.f32.xlu0 %v2264
        %v2268 = vpop.xlane.xlu0 %2267
        %v2269 = vmul.f32 %v2266, 0.03125
        %v2270 = vmul.f32 %v2268, 0.03125
        %v2271 = vadd.f32 %v2269, 1e-05
        %v2272 = vadd.f32 %v2270, 1e-05
        %v2273 = vrsqrt.pop %v2271
        %v2274 = vrsqrt.pop %v2272
        %v2275 = vmul.f32 %v2261, %v2273
        %v2276 = vmul.f32 %v2262, %v2274
        %v2277 = vlaneseq
        %v2278 = vshrl.u32 %v2277, 7
        %v2279 = vsub.s32 4, %v2278
        %v2280 = vrot.slane %v1738, %v2279
        %v2281 = vmul.f32 %v2275, %v2280
        %v2282 = vmul.f32 %v2276, %v2280
        %v2283 = vlaneseq
        %v2284 = vshrl.u32 %v2283, 7
        %v2285 = vsub.s32 5, %v2284
        %v2286 = vrot.slane %v1738, %v2285
        %v2287 = vadd.f32 %v2281, %v2286
        %v2288 = vadd.f32 %v2282, %v2286
        %v2289 = vmax.f32 %v2287, 0.0
        %v2290 = vmax.f32 %v2288, 0.0
        %v2291 = vpack.c.bf16 %v2290, %v2289
        %s2292 = scalar_lea.vmem %s9, 64
        %v2293 = vld [vmem:[%s2292] sm:$0xf]
        %v2294 = vld [vmem:[%s2292 + $0x4] sm:$0xf]
        %v2295 = vld [vmem:[%s2292 + $0x8] sm:$0xf]
        %v2296 = vld [vmem:[%s2292 + $0xc] sm:$0xf]
        %v2297 = vld [vmem:[%s2292 + $0x10] sm:$0xf]
        %v2298 = vld [vmem:[%s2292 + $0x14] sm:$0xf]
        %v2299 = vld [vmem:[%s2292 + $0x18] sm:$0xf]
        %v2300 = vld [vmem:[%s2292 + $0x1c] sm:$0xf]
        %v2301 = vld [vmem:[%s2292 + $0x20] sm:$0xf]
        %v2302 = vld [vmem:[%s2292 + $0x24] sm:$0xf]
        %v2303 = vld [vmem:[%s2292 + $0x28] sm:$0xf]
        %v2304 = vld [vmem:[%s2292 + $0x2c] sm:$0xf]
        %v2305 = vld [vmem:[%s2292 + $0x30] sm:$0xf]
        %v2306 = vld [vmem:[%s2292 + $0x34] sm:$0xf]
        %v2307 = vld [vmem:[%s2292 + $0x38] sm:$0xf]
        %v2308 = vld [vmem:[%s2292 + $0x3c] sm:$0xf]
        %v2309 = vlaneseq
        %v2310 = vshrl.u32 %v2309, 7
        %v2311 = vsub.s32 6, %v2310
        %v2312 = vrot.slane %v1738, %v2311
        %v2329 = vunpack.c.l.b16 %v2293
        %v2330 = vunpack.c.l.b16 %v2294
        %v2331 = vunpack.c.l.b16 %v2295
        %v2332 = vunpack.c.l.b16 %v2296
        %v2333 = vunpack.c.l.b16 %v2297
        %v2334 = vunpack.c.l.b16 %v2298
        %v2335 = vunpack.c.l.b16 %v2299
        %v2336 = vunpack.c.l.b16 %v2300
        %v2337 = vunpack.c.l.b16 %v2301
        %v2338 = vunpack.c.l.b16 %v2302
        %v2339 = vunpack.c.l.b16 %v2303
        %v2340 = vunpack.c.l.b16 %v2304
        %v2341 = vunpack.c.l.b16 %v2305
        %v2342 = vunpack.c.l.b16 %v2306
        %v2343 = vunpack.c.l.b16 %v2307
        %v2344 = vunpack.c.l.b16 %v2308
        %v2345 = vpack.c.b16 %v2330, %v2329
        %v2346 = vpack.c.b16 %v2332, %v2331
        %v2347 = vpack.c.b16 %v2334, %v2333
        %v2348 = vpack.c.b16 %v2336, %v2335
        %v2349 = vpack.c.b16 %v2338, %v2337
        %v2350 = vpack.c.b16 %v2340, %v2339
        %v2351 = vpack.c.b16 %v2342, %v2341
        %v2352 = vpack.c.b16 %v2344, %v2343
        %2361 = vmatprep.subr.bf16.mxu0 0
        %2362 = vmatpush1.bf16.msra.mxu0 %v2345
        %2363 = vmatprep.subr.bf16.mxu0 0
        %2364 = vmatpush1.bf16.msra.mxu0 %v2346
        %2365 = vmatprep.subr.bf16.mxu0 0
        %2366 = vmatpush1.bf16.msra.mxu0 %v2347
        %2367 = vmatprep.subr.bf16.mxu0 0
        %2368 = vmatpush1.bf16.msra.mxu0 %v2348
        %2369 = vmatprep.subr.bf16.mxu0 0
        %2370 = vmatpush1.bf16.msra.mxu0 %v2349
        %2371 = vmatprep.subr.bf16.mxu0 0
        %2372 = vmatpush1.bf16.msra.mxu0 %v2350
        %2373 = vmatprep.subr.bf16.mxu0 0
        %2374 = vmatpush1.bf16.msra.mxu0 %v2351
        %2375 = vmatprep.subr.bf16.mxu0 0
        %2376 = vmatpush1.bf16.msra.mxu0 %v2352
        %2377 = vmatprep.subr.bf16.mxu0 0
        %2378 = vmatpush1.bf16.msra.mxu0 0
        %2379 = vmatprep.subr.bf16.mxu0 0
        %2380 = vmatpush1.bf16.msra.mxu0 0
        %2381 = vmatprep.subr.bf16.mxu0 0
        %2382 = vmatpush1.bf16.msra.mxu0 0
        %2383 = vmatprep.subr.bf16.mxu0 0
        %2384 = vmatpush1.bf16.msra.mxu0 0
        %2385 = vmatprep.subr.bf16.mxu0 0
        %2386 = vmatpush1.bf16.msra.mxu0 0
        %2387 = vmatprep.subr.bf16.mxu0 0
        %2388 = vmatpush1.bf16.msra.mxu0 0
        %2389 = vmatprep.subr.bf16.mxu0 0
        %2390 = vmatpush1.bf16.msra.mxu0 0
        %2391 = vmatprep.subr.bf16.mxu0 0
        %2392 = vmatpush1.bf16.msra.mxu0 0
        %2393 = vmatprep.mubr.bf16.mxu0 0
        %2394 = vmatmul.mubr.bf16.gmra.mrb[0].mxu0 %v2291
        %v2395 = vpop.f32.mrb[0].mxu0
        %v2396 = vadd.f32 %v2312, %v2395
        %v2397 = vpop.f32.mrb[0].mxu0
        %v2398 = vpop.f32.mrb[0].mxu0
        %v2399 = vadd.f32 %v2312, %v2398
        %v2400 = vpop.f32.mrb[0].mxu0
        %2401 = vdwg.mxu0
        %v2402 = vmul.f32 %v1733, 2.0
        %v2403 = vmul.f32 %v1734, 2.0
        %v2404 = vadd.f32 %v2396, %v2402
        %v2405 = vadd.f32 %v2399, %v2403
        %v2406 = vlaneseq
        %v2407 = vshrl.u32 %v2406, 7
        %v2408 = vsub.s32 7, %v2407
        %v2409 = vrot.slane %v1738, %v2408
        %v2410 = vsub.f32 %v2404, %v2409
        %v2411 = vsub.f32 %v2405, %v2409
        %v2412 = vadd.f32 %v1739, 1e-05
        %v2413 = vrsqrt.pop %v2412
        %v2414 = vlaneseq
        %v2415 = vshrl.u32 %v2414, 7
        %v2416 = vsub.s32 0, %v2415
        %v2417 = vrot.slane %v2413, %v2416
        %v2418 = vmul.f32 %v2410, %v2417
        %v2419 = vmul.f32 %v2411, %v2417
        %v2420 = vlaneseq
        %v2421 = vshrl.u32 %v2420, 7
        %v2422 = vsub.s32 1, %v2421
        %v2423 = vrot.slane %v1739, %v2422
        %v2424 = vmul.f32 %v2418, %v2423
        %v2425 = vmul.f32 %v2419, %v2423
        %v2426 = vlaneseq
        %v2427 = vshrl.u32 %v2426, 7
        %v2428 = vsub.s32 2, %v2427
        %v2429 = vrot.slane %v1739, %v2428
        %v2430 = vadd.f32 %v2424, %v2429
        %v2431 = vadd.f32 %v2425, %v2429
        %v2432 = vmax.f32 %v2430, 0.0
        %v2433 = vmax.f32 %v2431, 0.0
        %v2434 = vadd.f32 %v1735, %v2432
        %v2435 = vadd.f32 %v1736, %v2433
        %s2436 = scalar_lea.vmem %s10, 32
        %v2437 = vld [vmem:[%s2436] sm:$0xff]
        %v2438 = vld [vmem:[%s2436 + $0x8] sm:$0xf]
        %v2439 = vpack.c.bf16 %v2433, %v2432
        %2440 = vmatprep.subr.bf16.mxu0 0
        %2441 = vmatpush1.bf16.msra.mxu0 %v2439
        %2442 = vmatprep.subr.bf16.mxu0 0
        %2443 = vmatpush1.bf16.msra.mxu0 0
        %2444 = vmatprep.subr.bf16.mxu0 0
        %2445 = vmatpush1.bf16.msra.mxu0 0
        %2446 = vmatprep.subr.bf16.mxu0 0
        %2447 = vmatpush1.bf16.msra.mxu0 0
        %2448 = vmatprep.subr.bf16.mxu0 0
        %2449 = vmatpush1.bf16.msra.mxu0 0
        %2450 = vmatprep.subr.bf16.mxu0 0
        %2451 = vmatpush1.bf16.msra.mxu0 0
        %2452 = vmatprep.subr.bf16.mxu0 0
        %2453 = vmatpush1.bf16.msra.mxu0 0
        %2454 = vmatprep.subr.bf16.mxu0 0
        %2455 = vmatpush1.bf16.msra.mxu0 0
        %2456 = vmatprep.subr.bf16.mxu0 0
        %2457 = vmatpush1.bf16.msra.mxu0 0
        %2458 = vmatprep.subr.bf16.mxu0 0
        %2459 = vmatpush1.bf16.msra.mxu0 0
        %2460 = vmatprep.subr.bf16.mxu0 0
        %2461 = vmatpush1.bf16.msra.mxu0 0
        %2462 = vmatprep.subr.bf16.mxu0 0
        %2463 = vmatpush1.bf16.msra.mxu0 0
        %2464 = vmatprep.subr.bf16.mxu0 0
        %2465 = vmatpush1.bf16.msra.mxu0 0
        %2466 = vmatprep.subr.bf16.mxu0 0
        %2467 = vmatpush1.bf16.msra.mxu0 0
        %2468 = vmatprep.subr.bf16.mxu0 0
        %2469 = vmatpush1.bf16.msra.mxu0 0
        %2470 = vmatprep.subr.bf16.mxu0 0
        %2471 = vmatpush1.bf16.msra.mxu0 0
        %2472 = vmatprep.mubr.bf16.mxu0 0
        %2473 = vmatmul.mubr.bf16.gmra.mrb[0].mxu0 %v1033
        %v2474 = vpop.f32.mrb[0].mxu0
        %v2475 = vadd.f32 0.0, %v2474
        %v2476 = vpop.f32.mrb[0].mxu0
        %v2477 = vpop.f32.mrb[0].mxu0
        %v2478 = vadd.f32 0.0, %v2477
        %v2479 = vpop.f32.mrb[0].mxu0
        %2480 = vmatprep.mubr.bf16.mxu0 0
        %2481 = vmatmul.mubr.bf16.gmra.mrb[0].mxu0 %v1036
        %v2482 = vpop.f32.mrb[0].mxu0
        %v2483 = vadd.f32 0.0, %v2482
        %v2484 = vpop.f32.mrb[0].mxu0
        %v2485 = vpop.f32.mrb[0].mxu0
        %v2486 = vadd.f32 0.0, %v2485
        %v2487 = vpop.f32.mrb[0].mxu0
        %2488 = vmatprep.mubr.bf16.mxu0 0
        %2489 = vmatmul.mubr.bf16.gmra.mrb[0].mxu0 %v1039
        %v2490 = vpop.f32.mrb[0].mxu0
        %v2491 = vadd.f32 0.0, %v2490
        %v2492 = vpop.f32.mrb[0].mxu0
        %v2493 = vpop.f32.mrb[0].mxu0
        %v2494 = vadd.f32 0.0, %v2493
        %v2495 = vpop.f32.mrb[0].mxu0
        %2496 = vdwg.mxu0
        %v2497 = vpack.c.bf16 %v2478, %v2475
        %v2498 = vpack.c.bf16 %v2486, %v2483
        %v2499 = vpack.c.bf16 %v2494, %v2491
        %s2500 = scalar_lea.vmem %s7, 256
        %v2501 = vld [vmem:[%s2500] sm:$0xf]
        %v2502 = vld [vmem:[%s2500 + $0x4] sm:$0xf]
        %v2503 = vld [vmem:[%s2500 + $0x8] sm:$0xf]
        %v2504 = vld [vmem:[%s2500 + $0xc] sm:$0xf]
        %v2505 = vld [vmem:[%s2500 + $0x10] sm:$0xf]
        %v2506 = vld [vmem:[%s2500 + $0x14] sm:$0xf]
        %v2507 = vld [vmem:[%s2500 + $0x18] sm:$0xf]
        %v2508 = vld [vmem:[%s2500 + $0x1c] sm:$0xf]
        %v2509 = vld [vmem:[%s2500 + $0x20] sm:$0xf]
        %v2510 = vld [vmem:[%s2500 + $0x24] sm:$0xf]
        %v2511 = vld [vmem:[%s2500 + $0x28] sm:$0xf]
        %v2512 = vld [vmem:[%s2500 + $0x2c] sm:$0xf]
        %v2513 = vld [vmem:[%s2500 + $0x30] sm:$0xf]
        %v2514 = vld [vmem:[%s2500 + $0x34] sm:$0xf]
        %v2515 = vld [vmem:[%s2500 + $0x38] sm:$0xf]
        %v2516 = vld [vmem:[%s2500 + $0x3c] sm:$0xf]
        %v2517 = vld [vmem:[%s2500 + $0x40] sm:$0xf]
        %v2518 = vld [vmem:[%s2500 + $0x44] sm:$0xf]
        %v2519 = vld [vmem:[%s2500 + $0x48] sm:$0xf]
        %v2520 = vld [vmem:[%s2500 + $0x4c] sm:$0xf]
        %v2521 = vld [vmem:[%s2500 + $0x50] sm:$0xf]
        %v2522 = vld [vmem:[%s2500 + $0x54] sm:$0xf]
        %v2523 = vld [vmem:[%s2500 + $0x58] sm:$0xf]
        %v2524 = vld [vmem:[%s2500 + $0x5c] sm:$0xf]
        %v2525 = vld [vmem:[%s2500 + $0x60] sm:$0xf]
        %v2526 = vld [vmem:[%s2500 + $0x64] sm:$0xf]
        %v2527 = vld [vmem:[%s2500 + $0x68] sm:$0xf]
        %v2528 = vld [vmem:[%s2500 + $0x6c] sm:$0xf]
        %v2529 = vld [vmem:[%s2500 + $0x70] sm:$0xf]
        %v2530 = vld [vmem:[%s2500 + $0x74] sm:$0xf]
        %v2531 = vld [vmem:[%s2500 + $0x78] sm:$0xf]
        %v2532 = vld [vmem:[%s2500 + $0x7c] sm:$0xf]
        %v2533 = vlaneseq
        %v2534 = vshrl.u32 %v2533, 7
        %v2535 = vsub.s32 0, %v2534
        %v2536 = vrot.slane %v2437, %v2535
        %v2569 = vunpack.c.l.b16 %v2501
        %v2570 = vunpack.c.l.b16 %v2502
        %v2571 = vunpack.c.l.b16 %v2503
        %v2572 = vunpack.c.l.b16 %v2504
        %v2573 = vunpack.c.l.b16 %v2505
        %v2574 = vunpack.c.l.b16 %v2506
        %v2575 = vunpack.c.l.b16 %v2507
        %v2576 = vunpack.c.l.b16 %v2508
        %v2577 = vunpack.c.l.b16 %v2509
        %v2578 = vunpack.c.l.b16 %v2510
        %v2579 = vunpack.c.l.b16 %v2511
        %v2580 = vunpack.c.l.b16 %v2512
        %v2581 = vunpack.c.l.b16 %v2513
        %v2582 = vunpack.c.l.b16 %v2514
        %v2583 = vunpack.c.l.b16 %v2515
        %v2584 = vunpack.c.l.b16 %v2516
        %v2585 = vunpack.c.l.b16 %v2517
        %v2586 = vunpack.c.l.b16 %v2518
        %v2587 = vunpack.c.l.b16 %v2519
        %v2588 = vunpack.c.l.b16 %v2520
        %v2589 = vunpack.c.l.b16 %v2521
        %v2590 = vunpack.c.l.b16 %v2522
        %v2591 = vunpack.c.l.b16 %v2523
        %v2592 = vunpack.c.l.b16 %v2524
        %v2593 = vunpack.c.l.b16 %v2525
        %v2594 = vunpack.c.l.b16 %v2526
        %v2595 = vunpack.c.l.b16 %v2527
        %v2596 = vunpack.c.l.b16 %v2528
        %v2597 = vunpack.c.l.b16 %v2529
        %v2598 = vunpack.c.l.b16 %v2530
        %v2599 = vunpack.c.l.b16 %v2531
        %v2600 = vunpack.c.l.b16 %v2532
        %v2601 = vpack.c.b16 %v2570, %v2569
        %v2602 = vpack.c.b16 %v2572, %v2571
        %v2603 = vpack.c.b16 %v2574, %v2573
        %v2604 = vpack.c.b16 %v2576, %v2575
        %v2605 = vpack.c.b16 %v2578, %v2577
        %v2606 = vpack.c.b16 %v2580, %v2579
        %v2607 = vpack.c.b16 %v2582, %v2581
        %v2608 = vpack.c.b16 %v2584, %v2583
        %v2609 = vpack.c.b16 %v2586, %v2585
        %v2610 = vpack.c.b16 %v2588, %v2587
        %v2611 = vpack.c.b16 %v2590, %v2589
        %v2612 = vpack.c.b16 %v2592, %v2591
        %v2613 = vpack.c.b16 %v2594, %v2593
        %v2614 = vpack.c.b16 %v2596, %v2595
        %v2615 = vpack.c.b16 %v2598, %v2597
        %v2616 = vpack.c.b16 %v2600, %v2599
        %2633 = vmatprep.subr.bf16.mxu0 0
        %2634 = vmatpush1.bf16.msra.mxu0 %v2601
        %2635 = vmatprep.subr.bf16.mxu0 0
        %2636 = vmatpush1.bf16.msra.mxu0 %v2602
        %2637 = vmatprep.subr.bf16.mxu0 0
        %2638 = vmatpush1.bf16.msra.mxu0 %v2603
        %2639 = vmatprep.subr.bf16.mxu0 0
        %2640 = vmatpush1.bf16.msra.mxu0 %v2604
        %2641 = vmatprep.subr.bf16.mxu0 0
        %2642 = vmatpush1.bf16.msra.mxu0 %v2605
        %2643 = vmatprep.subr.bf16.mxu0 0
        %2644 = vmatpush1.bf16.msra.mxu0 %v2606
        %2645 = vmatprep.subr.bf16.mxu0 0
        %2646 = vmatpush1.bf16.msra.mxu0 %v2607
        %2647 = vmatprep.subr.bf16.mxu0 0
        %2648 = vmatpush1.bf16.msra.mxu0 %v2608
        %2649 = vmatprep.subr.bf16.mxu0 0
        %2650 = vmatpush1.bf16.msra.mxu0 %v2609
        %2651 = vmatprep.subr.bf16.mxu0 0
        %2652 = vmatpush1.bf16.msra.mxu0 %v2610
        %2653 = vmatprep.subr.bf16.mxu0 0
        %2654 = vmatpush1.bf16.msra.mxu0 %v2611
        %2655 = vmatprep.subr.bf16.mxu0 0
        %2656 = vmatpush1.bf16.msra.mxu0 %v2612
        %2657 = vmatprep.subr.bf16.mxu0 0
        %2658 = vmatpush1.bf16.msra.mxu0 %v2613
        %2659 = vmatprep.subr.bf16.mxu0 0
        %2660 = vmatpush1.bf16.msra.mxu0 %v2614
        %2661 = vmatprep.subr.bf16.mxu0 0
        %2662 = vmatpush1.bf16.msra.mxu0 %v2615
        %2663 = vmatprep.subr.bf16.mxu0 0
        %2664 = vmatpush1.bf16.msra.mxu0 %v2616
        %2665 = vmatprep.mubr.bf16.mxu0 %v965
        %2666 = vmatmul.mubr.bf16.gmra.mrb[0].mxu0 %v2497
        %v2667 = vpop.f32.mrb[0].mxu0
        %v2668 = vadd.f32 %v2536, %v2667
        %v2669 = vpop.f32.mrb[0].mxu0
        %v2670 = vpop.f32.mrb[0].mxu0
        %v2671 = vadd.f32 %v2536, %v2670
        %v2672 = vpop.f32.mrb[0].mxu0
        %2673 = vmatprep.mubr.bf16.mxu0 %v966
        %2674 = vmatmul.mubr.bf16.gmra.mrb[0].mxu0 %v2498
        %v2675 = vpop.f32.mrb[0].mxu0
        %v2676 = vadd.f32 %v2536, %v2675
        %v2677 = vpop.f32.mrb[0].mxu0
        %v2678 = vpop.f32.mrb[0].mxu0
        %v2679 = vadd.f32 %v2536, %v2678
        %v2680 = vpop.f32.mrb[0].mxu0
        %2681 = vmatprep.mubr.bf16.mxu0 %v967
        %2682 = vmatmul.mubr.bf16.gmra.mrb[0].mxu0 %v2499
        %v2683 = vpop.f32.mrb[0].mxu0
        %v2684 = vadd.f32 %v2536, %v2683
        %v2685 = vpop.f32.mrb[0].mxu0
        %v2686 = vpop.f32.mrb[0].mxu0
        %v2687 = vadd.f32 %v2536, %v2686
        %v2688 = vpop.f32.mrb[0].mxu0
        %2689 = vdwg.mxu0
        %2690 = vadd.xlane.f32.xlu0 %v2668
        %v2691 = vpop.xlane.xlu0 %2690
        %2692 = vadd.xlane.f32.xlu0 %v2671
        %v2693 = vpop.xlane.xlu0 %2692
        %2694 = vadd.xlane.f32.xlu0 %v2676
        %v2695 = vpop.xlane.xlu0 %2694
        %2696 = vadd.xlane.f32.xlu0 %v2679
        %v2697 = vpop.xlane.xlu0 %2696
        %2698 = vadd.xlane.f32.xlu0 %v2684
        %v2699 = vpop.xlane.xlu0 %2698
        %2700 = vadd.xlane.f32.xlu0 %v2687
        %v2701 = vpop.xlane.xlu0 %2700
        %v2702 = vmul.f32 %v2691, 0.03125
        %v2703 = vmul.f32 %v2693, 0.03125
        %v2704 = vmul.f32 %v2695, 0.03125
        %v2705 = vmul.f32 %v2697, 0.03125
        %v2706 = vmul.f32 %v2699, 0.03125
        %v2707 = vmul.f32 %v2701, 0.03125
        %v2708 = vsub.f32 %v2668, %v2702
        %v2709 = vsub.f32 %v2671, %v2703
        %v2710 = vsub.f32 %v2676, %v2704
        %v2711 = vsub.f32 %v2679, %v2705
        %v2712 = vsub.f32 %v2684, %v2706
        %v2713 = vsub.f32 %v2687, %v2707
        %v2714 = vmul.f32 %v2708, %v578
        %v2715 = vmul.f32 %v2709, %v578
        %v2716 = vmul.f32 %v2710, %v578
        %v2717 = vmul.f32 %v2711, %v578
        %v2718 = vmul.f32 %v2712, %v578
        %v2719 = vmul.f32 %v2713, %v578
        %v2720 = vmul.f32 %v2714, %v2714
        %v2721 = vmul.f32 %v2715, %v2715
        %v2722 = vmul.f32 %v2716, %v2716
        %v2723 = vmul.f32 %v2717, %v2717
        %v2724 = vmul.f32 %v2718, %v2718
        %v2725 = vmul.f32 %v2719, %v2719
        %2726 = vadd.xlane.f32.xlu0 %v2720
        %v2727 = vpop.xlane.xlu0 %2726
        %2728 = vadd.xlane.f32.xlu0 %v2721
        %v2729 = vpop.xlane.xlu0 %2728
        %2730 = vadd.xlane.f32.xlu0 %v2722
        %v2731 = vpop.xlane.xlu0 %2730
        %2732 = vadd.xlane.f32.xlu0 %v2723
        %v2733 = vpop.xlane.xlu0 %2732
        %2734 = vadd.xlane.f32.xlu0 %v2724
        %v2735 = vpop.xlane.xlu0 %2734
        %2736 = vadd.xlane.f32.xlu0 %v2725
        %v2737 = vpop.xlane.xlu0 %2736
        %v2738 = vmul.f32 %v2727, 0.03125
        %v2739 = vmul.f32 %v2729, 0.03125
        %v2740 = vmul.f32 %v2731, 0.03125
        %v2741 = vmul.f32 %v2733, 0.03125
        %v2742 = vmul.f32 %v2735, 0.03125
        %v2743 = vmul.f32 %v2737, 0.03125
        %v2744 = vadd.f32 %v2738, 1e-05
        %v2745 = vadd.f32 %v2739, 1e-05
        %v2746 = vadd.f32 %v2740, 1e-05
        %v2747 = vadd.f32 %v2741, 1e-05
        %v2748 = vadd.f32 %v2742, 1e-05
        %v2749 = vadd.f32 %v2743, 1e-05
        %v2750 = vrsqrt.pop %v2744
        %v2751 = vrsqrt.pop %v2745
        %v2752 = vrsqrt.pop %v2746
        %v2753 = vrsqrt.pop %v2747
        %v2754 = vrsqrt.pop %v2748
        %v2755 = vrsqrt.pop %v2749
        %v2756 = vmul.f32 %v2714, %v2750
        %v2757 = vmul.f32 %v2715, %v2751
        %v2758 = vmul.f32 %v2716, %v2752
        %v2759 = vmul.f32 %v2717, %v2753
        %v2760 = vmul.f32 %v2718, %v2754
        %v2761 = vmul.f32 %v2719, %v2755
        %v2762 = vlaneseq
        %v2763 = vshrl.u32 %v2762, 7
        %v2764 = vsub.s32 1, %v2763
        %v2765 = vrot.slane %v2437, %v2764
        %v2766 = vmul.f32 %v2756, %v2765
        %v2767 = vmul.f32 %v2757, %v2765
        %v2768 = vmul.f32 %v2758, %v2765
        %v2769 = vmul.f32 %v2759, %v2765
        %v2770 = vmul.f32 %v2760, %v2765
        %v2771 = vmul.f32 %v2761, %v2765
        %v2772 = vlaneseq
        %v2773 = vshrl.u32 %v2772, 7
        %v2774 = vsub.s32 2, %v2773
        %v2775 = vrot.slane %v2437, %v2774
        %v2776 = vadd.f32 %v2766, %v2775
        %v2777 = vadd.f32 %v2767, %v2775
        %v2778 = vadd.f32 %v2768, %v2775
        %v2779 = vadd.f32 %v2769, %v2775
        %v2780 = vadd.f32 %v2770, %v2775
        %v2781 = vadd.f32 %v2771, %v2775
        %v2782 = vmax.f32 %v2776, 0.0
        %v2783 = vmax.f32 %v2777, 0.0
        %v2784 = vmax.f32 %v2778, 0.0
        %v2785 = vmax.f32 %v2779, 0.0
        %v2786 = vmax.f32 %v2780, 0.0
        %v2787 = vmax.f32 %v2781, 0.0
        %v2788 = vadd.f32 %v2438, 1.0
        %v2789 = vlaneseq
        %v2790 = vshrl.u32 %v2789, 7
        %v2791 = vsub.s32 3, %v2790
        %v2792 = vrot.slane %v2788, %v2791
        %v2793 = vmul.f32 %v2792, %v2432
        %v2794 = vmul.f32 %v2792, %v2433
        %v2795 = vpack.c.bf16 %v2783, %v2782
        %v2796 = vpack.c.bf16 %v2785, %v2784
        %v2797 = vpack.c.bf16 %v2787, %v2786
        %2798 = vmatprep.subr.bf16.mxu0 0
        %2799 = vmatpush1.bf16.msra.mxu0 %v2795
        %2800 = vmatprep.subr.bf16.mxu0 0
        %2801 = vmatpush1.bf16.msra.mxu0 %v2796
        %2802 = vmatprep.subr.bf16.mxu0 0
        %2803 = vmatpush1.bf16.msra.mxu0 %v2797
        %2804 = vmatprep.subr.bf16.mxu0 0
        %2805 = vmatpush1.bf16.msra.mxu0 0
        %2806 = vmatprep.subr.bf16.mxu0 0
        %2807 = vmatpush1.bf16.msra.mxu0 0
        %2808 = vmatprep.subr.bf16.mxu0 0
        %2809 = vmatpush1.bf16.msra.mxu0 0
        %2810 = vmatprep.subr.bf16.mxu0 0
        %2811 = vmatpush1.bf16.msra.mxu0 0
        %2812 = vmatprep.subr.bf16.mxu0 0
        %2813 = vmatpush1.bf16.msra.mxu0 0
        %2814 = vmatprep.subr.bf16.mxu0 0
        %2815 = vmatpush1.bf16.msra.mxu0 0
        %2816 = vmatprep.subr.bf16.mxu0 0
        %2817 = vmatpush1.bf16.msra.mxu0 0
        %2818 = vmatprep.subr.bf16.mxu0 0
        %2819 = vmatpush1.bf16.msra.mxu0 0
        %2820 = vmatprep.subr.bf16.mxu0 0
        %2821 = vmatpush1.bf16.msra.mxu0 0
        %2822 = vmatprep.subr.bf16.mxu0 0
        %2823 = vmatpush1.bf16.msra.mxu0 0
        %2824 = vmatprep.subr.bf16.mxu0 0
        %2825 = vmatpush1.bf16.msra.mxu0 0
        %2826 = vmatprep.subr.bf16.mxu0 0
        %2827 = vmatpush1.bf16.msra.mxu0 0
        %2828 = vmatprep.subr.bf16.mxu0 0
        %2829 = vmatpush1.bf16.msra.mxu0 0
        %2830 = vmatprep.mubr.bf16.mxu0 0
        %2831 = vmatmul.mubr.bf16.gmra.mrb[0].mxu0 %v1400
        %v2832 = vpop.f32.mrb[0].mxu0
        %v2833 = vadd.f32 0.0, %v2832
        %v2834 = vpop.f32.mrb[0].mxu0
        %v2835 = vpop.f32.mrb[0].mxu0
        %v2836 = vadd.f32 0.0, %v2835
        %v2837 = vpop.f32.mrb[0].mxu0
        %2838 = vdwg.mxu0
        %v2839 = vadd.f32 %v2793, %v2833
        %v2840 = vadd.f32 %v2794, %v2836
        %v2841 = vpack.c.bf16 %v2840, %v2839
        %s2842 = scalar_lea.vmem %s8, 128
        %v2843 = vld [vmem:[%s2842] sm:$0xf]
        %v2844 = vld [vmem:[%s2842 + $0x4] sm:$0xf]
        %v2845 = vld [vmem:[%s2842 + $0x8] sm:$0xf]
        %v2846 = vld [vmem:[%s2842 + $0xc] sm:$0xf]
        %v2847 = vld [vmem:[%s2842 + $0x10] sm:$0xf]
        %v2848 = vld [vmem:[%s2842 + $0x14] sm:$0xf]
        %v2849 = vld [vmem:[%s2842 + $0x18] sm:$0xf]
        %v2850 = vld [vmem:[%s2842 + $0x1c] sm:$0xf]
        %v2851 = vld [vmem:[%s2842 + $0x20] sm:$0xf]
        %v2852 = vld [vmem:[%s2842 + $0x24] sm:$0xf]
        %v2853 = vld [vmem:[%s2842 + $0x28] sm:$0xf]
        %v2854 = vld [vmem:[%s2842 + $0x2c] sm:$0xf]
        %v2855 = vld [vmem:[%s2842 + $0x30] sm:$0xf]
        %v2856 = vld [vmem:[%s2842 + $0x34] sm:$0xf]
        %v2857 = vld [vmem:[%s2842 + $0x38] sm:$0xf]
        %v2858 = vld [vmem:[%s2842 + $0x3c] sm:$0xf]
        %v2859 = vlaneseq
        %v2860 = vshrl.u32 %v2859, 7
        %v2861 = vsub.s32 3, %v2860
        %v2862 = vrot.slane %v2437, %v2861
        %v2879 = vunpack.c.l.b16 %v2843
        %v2880 = vunpack.c.l.b16 %v2844
        %v2881 = vunpack.c.l.b16 %v2845
        %v2882 = vunpack.c.l.b16 %v2846
        %v2883 = vunpack.c.l.b16 %v2847
        %v2884 = vunpack.c.l.b16 %v2848
        %v2885 = vunpack.c.l.b16 %v2849
        %v2886 = vunpack.c.l.b16 %v2850
        %v2887 = vunpack.c.l.b16 %v2851
        %v2888 = vunpack.c.l.b16 %v2852
        %v2889 = vunpack.c.l.b16 %v2853
        %v2890 = vunpack.c.l.b16 %v2854
        %v2891 = vunpack.c.l.b16 %v2855
        %v2892 = vunpack.c.l.b16 %v2856
        %v2893 = vunpack.c.l.b16 %v2857
        %v2894 = vunpack.c.l.b16 %v2858
        %v2895 = vpack.c.b16 %v2880, %v2879
        %v2896 = vpack.c.b16 %v2882, %v2881
        %v2897 = vpack.c.b16 %v2884, %v2883
        %v2898 = vpack.c.b16 %v2886, %v2885
        %v2899 = vpack.c.b16 %v2888, %v2887
        %v2900 = vpack.c.b16 %v2890, %v2889
        %v2901 = vpack.c.b16 %v2892, %v2891
        %v2902 = vpack.c.b16 %v2894, %v2893
        %2911 = vmatprep.subr.bf16.mxu0 0
        %2912 = vmatpush1.bf16.msra.mxu0 %v2895
        %2913 = vmatprep.subr.bf16.mxu0 0
        %2914 = vmatpush1.bf16.msra.mxu0 %v2896
        %2915 = vmatprep.subr.bf16.mxu0 0
        %2916 = vmatpush1.bf16.msra.mxu0 %v2897
        %2917 = vmatprep.subr.bf16.mxu0 0
        %2918 = vmatpush1.bf16.msra.mxu0 %v2898
        %2919 = vmatprep.subr.bf16.mxu0 0
        %2920 = vmatpush1.bf16.msra.mxu0 %v2899
        %2921 = vmatprep.subr.bf16.mxu0 0
        %2922 = vmatpush1.bf16.msra.mxu0 %v2900
        %2923 = vmatprep.subr.bf16.mxu0 0
        %2924 = vmatpush1.bf16.msra.mxu0 %v2901
        %2925 = vmatprep.subr.bf16.mxu0 0
        %2926 = vmatpush1.bf16.msra.mxu0 %v2902
        %2927 = vmatprep.subr.bf16.mxu0 0
        %2928 = vmatpush1.bf16.msra.mxu0 0
        %2929 = vmatprep.subr.bf16.mxu0 0
        %2930 = vmatpush1.bf16.msra.mxu0 0
        %2931 = vmatprep.subr.bf16.mxu0 0
        %2932 = vmatpush1.bf16.msra.mxu0 0
        %2933 = vmatprep.subr.bf16.mxu0 0
        %2934 = vmatpush1.bf16.msra.mxu0 0
        %2935 = vmatprep.subr.bf16.mxu0 0
        %2936 = vmatpush1.bf16.msra.mxu0 0
        %2937 = vmatprep.subr.bf16.mxu0 0
        %2938 = vmatpush1.bf16.msra.mxu0 0
        %2939 = vmatprep.subr.bf16.mxu0 0
        %2940 = vmatpush1.bf16.msra.mxu0 0
        %2941 = vmatprep.subr.bf16.mxu0 0
        %2942 = vmatpush1.bf16.msra.mxu0 0
        %2943 = vmatprep.mubr.bf16.mxu0 0
        %2944 = vmatmul.mubr.bf16.gmra.mrb[0].mxu0 %v2841
        %v2945 = vpop.f32.mrb[0].mxu0
        %v2946 = vadd.f32 %v2862, %v2945
        %v2947 = vpop.f32.mrb[0].mxu0
        %v2948 = vpop.f32.mrb[0].mxu0
        %v2949 = vadd.f32 %v2862, %v2948
        %v2950 = vpop.f32.mrb[0].mxu0
        %2951 = vdwg.mxu0
        %2952 = vadd.xlane.f32.xlu0 %v2946
        %v2953 = vpop.xlane.xlu0 %2952
        %2954 = vadd.xlane.f32.xlu0 %v2949
        %v2955 = vpop.xlane.xlu0 %2954
        %v2956 = vmul.f32 %v2953, 0.03125
        %v2957 = vmul.f32 %v2955, 0.03125
        %v2958 = vsub.f32 %v2946, %v2956
        %v2959 = vsub.f32 %v2949, %v2957
        %v2960 = vmul.f32 %v2958, %v578
        %v2961 = vmul.f32 %v2959, %v578
        %v2962 = vmul.f32 %v2960, %v2960
        %v2963 = vmul.f32 %v2961, %v2961
        %2964 = vadd.xlane.f32.xlu0 %v2962
        %v2965 = vpop.xlane.xlu0 %2964
        %2966 = vadd.xlane.f32.xlu0 %v2963
        %v2967 = vpop.xlane.xlu0 %2966
        %v2968 = vmul.f32 %v2965, 0.03125
        %v2969 = vmul.f32 %v2967, 0.03125
        %v2970 = vadd.f32 %v2968, 1e-05
        %v2971 = vadd.f32 %v2969, 1e-05
        %v2972 = vrsqrt.pop %v2970
        %v2973 = vrsqrt.pop %v2971
        %v2974 = vmul.f32 %v2960, %v2972
        %v2975 = vmul.f32 %v2961, %v2973
        %v2976 = vlaneseq
        %v2977 = vshrl.u32 %v2976, 7
        %v2978 = vsub.s32 4, %v2977
        %v2979 = vrot.slane %v2437, %v2978
        %v2980 = vmul.f32 %v2974, %v2979
        %v2981 = vmul.f32 %v2975, %v2979
        %v2982 = vlaneseq
        %v2983 = vshrl.u32 %v2982, 7
        %v2984 = vsub.s32 5, %v2983
        %v2985 = vrot.slane %v2437, %v2984
        %v2986 = vadd.f32 %v2980, %v2985
        %v2987 = vadd.f32 %v2981, %v2985
        %v2988 = vmax.f32 %v2986, 0.0
        %v2989 = vmax.f32 %v2987, 0.0
        %v2990 = vpack.c.bf16 %v2989, %v2988
        %s2991 = scalar_lea.vmem %s9, 128
        %v2992 = vld [vmem:[%s2991] sm:$0xf]
        %v2993 = vld [vmem:[%s2991 + $0x4] sm:$0xf]
        %v2994 = vld [vmem:[%s2991 + $0x8] sm:$0xf]
        %v2995 = vld [vmem:[%s2991 + $0xc] sm:$0xf]
        %v2996 = vld [vmem:[%s2991 + $0x10] sm:$0xf]
        %v2997 = vld [vmem:[%s2991 + $0x14] sm:$0xf]
        %v2998 = vld [vmem:[%s2991 + $0x18] sm:$0xf]
        %v2999 = vld [vmem:[%s2991 + $0x1c] sm:$0xf]
        %v3000 = vld [vmem:[%s2991 + $0x20] sm:$0xf]
        %v3001 = vld [vmem:[%s2991 + $0x24] sm:$0xf]
        %v3002 = vld [vmem:[%s2991 + $0x28] sm:$0xf]
        %v3003 = vld [vmem:[%s2991 + $0x2c] sm:$0xf]
        %v3004 = vld [vmem:[%s2991 + $0x30] sm:$0xf]
        %v3005 = vld [vmem:[%s2991 + $0x34] sm:$0xf]
        %v3006 = vld [vmem:[%s2991 + $0x38] sm:$0xf]
        %v3007 = vld [vmem:[%s2991 + $0x3c] sm:$0xf]
        %v3008 = vlaneseq
        %v3009 = vshrl.u32 %v3008, 7
        %v3010 = vsub.s32 6, %v3009
        %v3011 = vrot.slane %v2437, %v3010
        %v3028 = vunpack.c.l.b16 %v2992
        %v3029 = vunpack.c.l.b16 %v2993
        %v3030 = vunpack.c.l.b16 %v2994
        %v3031 = vunpack.c.l.b16 %v2995
        %v3032 = vunpack.c.l.b16 %v2996
        %v3033 = vunpack.c.l.b16 %v2997
        %v3034 = vunpack.c.l.b16 %v2998
        %v3035 = vunpack.c.l.b16 %v2999
        %v3036 = vunpack.c.l.b16 %v3000
        %v3037 = vunpack.c.l.b16 %v3001
        %v3038 = vunpack.c.l.b16 %v3002
        %v3039 = vunpack.c.l.b16 %v3003
        %v3040 = vunpack.c.l.b16 %v3004
        %v3041 = vunpack.c.l.b16 %v3005
        %v3042 = vunpack.c.l.b16 %v3006
        %v3043 = vunpack.c.l.b16 %v3007
        %v3044 = vpack.c.b16 %v3029, %v3028
        %v3045 = vpack.c.b16 %v3031, %v3030
        %v3046 = vpack.c.b16 %v3033, %v3032
        %v3047 = vpack.c.b16 %v3035, %v3034
        %v3048 = vpack.c.b16 %v3037, %v3036
        %v3049 = vpack.c.b16 %v3039, %v3038
        %v3050 = vpack.c.b16 %v3041, %v3040
        %v3051 = vpack.c.b16 %v3043, %v3042
        %3060 = vmatprep.subr.bf16.mxu0 0
        %3061 = vmatpush1.bf16.msra.mxu0 %v3044
        %3062 = vmatprep.subr.bf16.mxu0 0
        %3063 = vmatpush1.bf16.msra.mxu0 %v3045
        %3064 = vmatprep.subr.bf16.mxu0 0
        %3065 = vmatpush1.bf16.msra.mxu0 %v3046
        %3066 = vmatprep.subr.bf16.mxu0 0
        %3067 = vmatpush1.bf16.msra.mxu0 %v3047
        %3068 = vmatprep.subr.bf16.mxu0 0
        %3069 = vmatpush1.bf16.msra.mxu0 %v3048
        %3070 = vmatprep.subr.bf16.mxu0 0
        %3071 = vmatpush1.bf16.msra.mxu0 %v3049
        %3072 = vmatprep.subr.bf16.mxu0 0
        %3073 = vmatpush1.bf16.msra.mxu0 %v3050
        %3074 = vmatprep.subr.bf16.mxu0 0
        %3075 = vmatpush1.bf16.msra.mxu0 %v3051
        %3076 = vmatprep.subr.bf16.mxu0 0
        %3077 = vmatpush1.bf16.msra.mxu0 0
        %3078 = vmatprep.subr.bf16.mxu0 0
        %3079 = vmatpush1.bf16.msra.mxu0 0
        %3080 = vmatprep.subr.bf16.mxu0 0
        %3081 = vmatpush1.bf16.msra.mxu0 0
        %3082 = vmatprep.subr.bf16.mxu0 0
        %3083 = vmatpush1.bf16.msra.mxu0 0
        %3084 = vmatprep.subr.bf16.mxu0 0
        %3085 = vmatpush1.bf16.msra.mxu0 0
        %3086 = vmatprep.subr.bf16.mxu0 0
        %3087 = vmatpush1.bf16.msra.mxu0 0
        %3088 = vmatprep.subr.bf16.mxu0 0
        %3089 = vmatpush1.bf16.msra.mxu0 0
        %3090 = vmatprep.subr.bf16.mxu0 0
        %3091 = vmatpush1.bf16.msra.mxu0 0
        %3092 = vmatprep.mubr.bf16.mxu0 0
        %3093 = vmatmul.mubr.bf16.gmra.mrb[0].mxu0 %v2990
        %v3094 = vpop.f32.mrb[0].mxu0
        %v3095 = vadd.f32 %v3011, %v3094
        %v3096 = vpop.f32.mrb[0].mxu0
        %v3097 = vpop.f32.mrb[0].mxu0
        %v3098 = vadd.f32 %v3011, %v3097
        %v3099 = vpop.f32.mrb[0].mxu0
        %3100 = vdwg.mxu0
        %v3101 = vmul.f32 %v2432, 2.0
        %v3102 = vmul.f32 %v2433, 2.0
        %v3103 = vadd.f32 %v3095, %v3101
        %v3104 = vadd.f32 %v3098, %v3102
        %v3105 = vlaneseq
        %v3106 = vshrl.u32 %v3105, 7
        %v3107 = vsub.s32 7, %v3106
        %v3108 = vrot.slane %v2437, %v3107
        %v3109 = vsub.f32 %v3103, %v3108
        %v3110 = vsub.f32 %v3104, %v3108
        %v3111 = vadd.f32 %v2438, 1e-05
        %v3112 = vrsqrt.pop %v3111
        %v3113 = vlaneseq
        %v3114 = vshrl.u32 %v3113, 7
        %v3115 = vsub.s32 0, %v3114
        %v3116 = vrot.slane %v3112, %v3115
        %v3117 = vmul.f32 %v3109, %v3116
        %v3118 = vmul.f32 %v3110, %v3116
        %v3119 = vlaneseq
        %v3120 = vshrl.u32 %v3119, 7
        %v3121 = vsub.s32 1, %v3120
        %v3122 = vrot.slane %v2438, %v3121
        %v3123 = vmul.f32 %v3117, %v3122
        %v3124 = vmul.f32 %v3118, %v3122
        %v3125 = vlaneseq
        %v3126 = vshrl.u32 %v3125, 7
        %v3127 = vsub.s32 2, %v3126
        %v3128 = vrot.slane %v2438, %v3127
        %v3129 = vadd.f32 %v3123, %v3128
        %v3130 = vadd.f32 %v3124, %v3128
        %v3131 = vmax.f32 %v3129, 0.0
        %v3132 = vmax.f32 %v3130, 0.0
        %v3133 = vadd.f32 %v2434, %v3131
        %v3134 = vadd.f32 %v2435, %v3132
        %s3135 = scalar_lea.vmem %s10, 48
        %v3136 = vld [vmem:[%s3135] sm:$0xff]
        %v3137 = vld [vmem:[%s3135 + $0x8] sm:$0xf]
        %v3138 = vpack.c.bf16 %v3132, %v3131
        %3139 = vmatprep.subr.bf16.mxu0 0
        %3140 = vmatpush1.bf16.msra.mxu0 %v3138
        %3141 = vmatprep.subr.bf16.mxu0 0
        %3142 = vmatpush1.bf16.msra.mxu0 0
        %3143 = vmatprep.subr.bf16.mxu0 0
        %3144 = vmatpush1.bf16.msra.mxu0 0
        %3145 = vmatprep.subr.bf16.mxu0 0
        %3146 = vmatpush1.bf16.msra.mxu0 0
        %3147 = vmatprep.subr.bf16.mxu0 0
        %3148 = vmatpush1.bf16.msra.mxu0 0
        %3149 = vmatprep.subr.bf16.mxu0 0
        %3150 = vmatpush1.bf16.msra.mxu0 0
        %3151 = vmatprep.subr.bf16.mxu0 0
        %3152 = vmatpush1.bf16.msra.mxu0 0
        %3153 = vmatprep.subr.bf16.mxu0 0
        %3154 = vmatpush1.bf16.msra.mxu0 0
        %3155 = vmatprep.subr.bf16.mxu0 0
        %3156 = vmatpush1.bf16.msra.mxu0 0
        %3157 = vmatprep.subr.bf16.mxu0 0
        %3158 = vmatpush1.bf16.msra.mxu0 0
        %3159 = vmatprep.subr.bf16.mxu0 0
        %3160 = vmatpush1.bf16.msra.mxu0 0
        %3161 = vmatprep.subr.bf16.mxu0 0
        %3162 = vmatpush1.bf16.msra.mxu0 0
        %3163 = vmatprep.subr.bf16.mxu0 0
        %3164 = vmatpush1.bf16.msra.mxu0 0
        %3165 = vmatprep.subr.bf16.mxu0 0
        %3166 = vmatpush1.bf16.msra.mxu0 0
        %3167 = vmatprep.subr.bf16.mxu0 0
        %3168 = vmatpush1.bf16.msra.mxu0 0
        %3169 = vmatprep.subr.bf16.mxu0 0
        %3170 = vmatpush1.bf16.msra.mxu0 0
        %3171 = vmatprep.mubr.bf16.mxu0 0
        %3172 = vmatmul.mubr.bf16.gmra.mrb[0].mxu0 %v1033
        %v3173 = vpop.f32.mrb[0].mxu0
        %v3174 = vadd.f32 0.0, %v3173
        %v3175 = vpop.f32.mrb[0].mxu0
        %v3176 = vpop.f32.mrb[0].mxu0
        %v3177 = vadd.f32 0.0, %v3176
        %v3178 = vpop.f32.mrb[0].mxu0
        %3179 = vmatprep.mubr.bf16.mxu0 0
        %3180 = vmatmul.mubr.bf16.gmra.mrb[0].mxu0 %v1036
        %v3181 = vpop.f32.mrb[0].mxu0
        %v3182 = vadd.f32 0.0, %v3181
        %v3183 = vpop.f32.mrb[0].mxu0
        %v3184 = vpop.f32.mrb[0].mxu0
        %v3185 = vadd.f32 0.0, %v3184
        %v3186 = vpop.f32.mrb[0].mxu0
        %3187 = vmatprep.mubr.bf16.mxu0 0
        %3188 = vmatmul.mubr.bf16.gmra.mrb[0].mxu0 %v1039
        %v3189 = vpop.f32.mrb[0].mxu0
        %v3190 = vadd.f32 0.0, %v3189
        %v3191 = vpop.f32.mrb[0].mxu0
        %v3192 = vpop.f32.mrb[0].mxu0
        %v3193 = vadd.f32 0.0, %v3192
        %v3194 = vpop.f32.mrb[0].mxu0
        %3195 = vdwg.mxu0
        %v3196 = vpack.c.bf16 %v3177, %v3174
        %v3197 = vpack.c.bf16 %v3185, %v3182
        %v3198 = vpack.c.bf16 %v3193, %v3190
        %s3199 = scalar_lea.vmem %s7, 384
        %v3200 = vld [vmem:[%s3199] sm:$0xf]
        %v3201 = vld [vmem:[%s3199 + $0x4] sm:$0xf]
        %v3202 = vld [vmem:[%s3199 + $0x8] sm:$0xf]
        %v3203 = vld [vmem:[%s3199 + $0xc] sm:$0xf]
        %v3204 = vld [vmem:[%s3199 + $0x10] sm:$0xf]
        %v3205 = vld [vmem:[%s3199 + $0x14] sm:$0xf]
        %v3206 = vld [vmem:[%s3199 + $0x18] sm:$0xf]
        %v3207 = vld [vmem:[%s3199 + $0x1c] sm:$0xf]
        %v3208 = vld [vmem:[%s3199 + $0x20] sm:$0xf]
        %v3209 = vld [vmem:[%s3199 + $0x24] sm:$0xf]
        %v3210 = vld [vmem:[%s3199 + $0x28] sm:$0xf]
        %v3211 = vld [vmem:[%s3199 + $0x2c] sm:$0xf]
        %v3212 = vld [vmem:[%s3199 + $0x30] sm:$0xf]
        %v3213 = vld [vmem:[%s3199 + $0x34] sm:$0xf]
        %v3214 = vld [vmem:[%s3199 + $0x38] sm:$0xf]
        %v3215 = vld [vmem:[%s3199 + $0x3c] sm:$0xf]
        %v3216 = vld [vmem:[%s3199 + $0x40] sm:$0xf]
        %v3217 = vld [vmem:[%s3199 + $0x44] sm:$0xf]
        %v3218 = vld [vmem:[%s3199 + $0x48] sm:$0xf]
        %v3219 = vld [vmem:[%s3199 + $0x4c] sm:$0xf]
        %v3220 = vld [vmem:[%s3199 + $0x50] sm:$0xf]
        %v3221 = vld [vmem:[%s3199 + $0x54] sm:$0xf]
        %v3222 = vld [vmem:[%s3199 + $0x58] sm:$0xf]
        %v3223 = vld [vmem:[%s3199 + $0x5c] sm:$0xf]
        %v3224 = vld [vmem:[%s3199 + $0x60] sm:$0xf]
        %v3225 = vld [vmem:[%s3199 + $0x64] sm:$0xf]
        %v3226 = vld [vmem:[%s3199 + $0x68] sm:$0xf]
        %v3227 = vld [vmem:[%s3199 + $0x6c] sm:$0xf]
        %v3228 = vld [vmem:[%s3199 + $0x70] sm:$0xf]
        %v3229 = vld [vmem:[%s3199 + $0x74] sm:$0xf]
        %v3230 = vld [vmem:[%s3199 + $0x78] sm:$0xf]
        %v3231 = vld [vmem:[%s3199 + $0x7c] sm:$0xf]
        %v3232 = vlaneseq
        %v3233 = vshrl.u32 %v3232, 7
        %v3234 = vsub.s32 0, %v3233
        %v3235 = vrot.slane %v3136, %v3234
        %v3268 = vunpack.c.l.b16 %v3200
        %v3269 = vunpack.c.l.b16 %v3201
        %v3270 = vunpack.c.l.b16 %v3202
        %v3271 = vunpack.c.l.b16 %v3203
        %v3272 = vunpack.c.l.b16 %v3204
        %v3273 = vunpack.c.l.b16 %v3205
        %v3274 = vunpack.c.l.b16 %v3206
        %v3275 = vunpack.c.l.b16 %v3207
        %v3276 = vunpack.c.l.b16 %v3208
        %v3277 = vunpack.c.l.b16 %v3209
        %v3278 = vunpack.c.l.b16 %v3210
        %v3279 = vunpack.c.l.b16 %v3211
        %v3280 = vunpack.c.l.b16 %v3212
        %v3281 = vunpack.c.l.b16 %v3213
        %v3282 = vunpack.c.l.b16 %v3214
        %v3283 = vunpack.c.l.b16 %v3215
        %v3284 = vunpack.c.l.b16 %v3216
        %v3285 = vunpack.c.l.b16 %v3217
        %v3286 = vunpack.c.l.b16 %v3218
        %v3287 = vunpack.c.l.b16 %v3219
        %v3288 = vunpack.c.l.b16 %v3220
        %v3289 = vunpack.c.l.b16 %v3221
        %v3290 = vunpack.c.l.b16 %v3222
        %v3291 = vunpack.c.l.b16 %v3223
        %v3292 = vunpack.c.l.b16 %v3224
        %v3293 = vunpack.c.l.b16 %v3225
        %v3294 = vunpack.c.l.b16 %v3226
        %v3295 = vunpack.c.l.b16 %v3227
        %v3296 = vunpack.c.l.b16 %v3228
        %v3297 = vunpack.c.l.b16 %v3229
        %v3298 = vunpack.c.l.b16 %v3230
        %v3299 = vunpack.c.l.b16 %v3231
        %v3300 = vpack.c.b16 %v3269, %v3268
        %v3301 = vpack.c.b16 %v3271, %v3270
        %v3302 = vpack.c.b16 %v3273, %v3272
        %v3303 = vpack.c.b16 %v3275, %v3274
        %v3304 = vpack.c.b16 %v3277, %v3276
        %v3305 = vpack.c.b16 %v3279, %v3278
        %v3306 = vpack.c.b16 %v3281, %v3280
        %v3307 = vpack.c.b16 %v3283, %v3282
        %v3308 = vpack.c.b16 %v3285, %v3284
        %v3309 = vpack.c.b16 %v3287, %v3286
        %v3310 = vpack.c.b16 %v3289, %v3288
        %v3311 = vpack.c.b16 %v3291, %v3290
        %v3312 = vpack.c.b16 %v3293, %v3292
        %v3313 = vpack.c.b16 %v3295, %v3294
        %v3314 = vpack.c.b16 %v3297, %v3296
        %v3315 = vpack.c.b16 %v3299, %v3298
        %3332 = vmatprep.subr.bf16.mxu0 0
        %3333 = vmatpush1.bf16.msra.mxu0 %v3300
        %3334 = vmatprep.subr.bf16.mxu0 0
        %3335 = vmatpush1.bf16.msra.mxu0 %v3301
        %3336 = vmatprep.subr.bf16.mxu0 0
        %3337 = vmatpush1.bf16.msra.mxu0 %v3302
        %3338 = vmatprep.subr.bf16.mxu0 0
        %3339 = vmatpush1.bf16.msra.mxu0 %v3303
        %3340 = vmatprep.subr.bf16.mxu0 0
        %3341 = vmatpush1.bf16.msra.mxu0 %v3304
        %3342 = vmatprep.subr.bf16.mxu0 0
        %3343 = vmatpush1.bf16.msra.mxu0 %v3305
        %3344 = vmatprep.subr.bf16.mxu0 0
        %3345 = vmatpush1.bf16.msra.mxu0 %v3306
        %3346 = vmatprep.subr.bf16.mxu0 0
        %3347 = vmatpush1.bf16.msra.mxu0 %v3307
        %3348 = vmatprep.subr.bf16.mxu0 0
        %3349 = vmatpush1.bf16.msra.mxu0 %v3308
        %3350 = vmatprep.subr.bf16.mxu0 0
        %3351 = vmatpush1.bf16.msra.mxu0 %v3309
        %3352 = vmatprep.subr.bf16.mxu0 0
        %3353 = vmatpush1.bf16.msra.mxu0 %v3310
        %3354 = vmatprep.subr.bf16.mxu0 0
        %3355 = vmatpush1.bf16.msra.mxu0 %v3311
        %3356 = vmatprep.subr.bf16.mxu0 0
        %3357 = vmatpush1.bf16.msra.mxu0 %v3312
        %3358 = vmatprep.subr.bf16.mxu0 0
        %3359 = vmatpush1.bf16.msra.mxu0 %v3313
        %3360 = vmatprep.subr.bf16.mxu0 0
        %3361 = vmatpush1.bf16.msra.mxu0 %v3314
        %3362 = vmatprep.subr.bf16.mxu0 0
        %3363 = vmatpush1.bf16.msra.mxu0 %v3315
        %3364 = vmatprep.mubr.bf16.mxu0 %v965
        %3365 = vmatmul.mubr.bf16.gmra.mrb[0].mxu0 %v3196
        %v3366 = vpop.f32.mrb[0].mxu0
        %v3367 = vadd.f32 %v3235, %v3366
        %v3368 = vpop.f32.mrb[0].mxu0
        %v3369 = vpop.f32.mrb[0].mxu0
        %v3370 = vadd.f32 %v3235, %v3369
        %v3371 = vpop.f32.mrb[0].mxu0
        %3372 = vmatprep.mubr.bf16.mxu0 %v966
        %3373 = vmatmul.mubr.bf16.gmra.mrb[0].mxu0 %v3197
        %v3374 = vpop.f32.mrb[0].mxu0
        %v3375 = vadd.f32 %v3235, %v3374
        %v3376 = vpop.f32.mrb[0].mxu0
        %v3377 = vpop.f32.mrb[0].mxu0
        %v3378 = vadd.f32 %v3235, %v3377
        %v3379 = vpop.f32.mrb[0].mxu0
        %3380 = vmatprep.mubr.bf16.mxu0 %v967
        %3381 = vmatmul.mubr.bf16.gmra.mrb[0].mxu0 %v3198
        %v3382 = vpop.f32.mrb[0].mxu0
        %v3383 = vadd.f32 %v3235, %v3382
        %v3384 = vpop.f32.mrb[0].mxu0
        %v3385 = vpop.f32.mrb[0].mxu0
        %v3386 = vadd.f32 %v3235, %v3385
        %v3387 = vpop.f32.mrb[0].mxu0
        %3388 = vdwg.mxu0
        %3389 = vadd.xlane.f32.xlu0 %v3367
        %v3390 = vpop.xlane.xlu0 %3389
        %3391 = vadd.xlane.f32.xlu0 %v3370
        %v3392 = vpop.xlane.xlu0 %3391
        %3393 = vadd.xlane.f32.xlu0 %v3375
        %v3394 = vpop.xlane.xlu0 %3393
        %3395 = vadd.xlane.f32.xlu0 %v3378
        %v3396 = vpop.xlane.xlu0 %3395
        %3397 = vadd.xlane.f32.xlu0 %v3383
        %v3398 = vpop.xlane.xlu0 %3397
        %3399 = vadd.xlane.f32.xlu0 %v3386
        %v3400 = vpop.xlane.xlu0 %3399
        %v3401 = vmul.f32 %v3390, 0.03125
        %v3402 = vmul.f32 %v3392, 0.03125
        %v3403 = vmul.f32 %v3394, 0.03125
        %v3404 = vmul.f32 %v3396, 0.03125
        %v3405 = vmul.f32 %v3398, 0.03125
        %v3406 = vmul.f32 %v3400, 0.03125
        %v3407 = vsub.f32 %v3367, %v3401
        %v3408 = vsub.f32 %v3370, %v3402
        %v3409 = vsub.f32 %v3375, %v3403
        %v3410 = vsub.f32 %v3378, %v3404
        %v3411 = vsub.f32 %v3383, %v3405
        %v3412 = vsub.f32 %v3386, %v3406
        %v3413 = vmul.f32 %v3407, %v578
        %v3414 = vmul.f32 %v3408, %v578
        %v3415 = vmul.f32 %v3409, %v578
        %v3416 = vmul.f32 %v3410, %v578
        %v3417 = vmul.f32 %v3411, %v578
        %v3418 = vmul.f32 %v3412, %v578
        %v3419 = vmul.f32 %v3413, %v3413
        %v3420 = vmul.f32 %v3414, %v3414
        %v3421 = vmul.f32 %v3415, %v3415
        %v3422 = vmul.f32 %v3416, %v3416
        %v3423 = vmul.f32 %v3417, %v3417
        %v3424 = vmul.f32 %v3418, %v3418
        %3425 = vadd.xlane.f32.xlu0 %v3419
        %v3426 = vpop.xlane.xlu0 %3425
        %3427 = vadd.xlane.f32.xlu0 %v3420
        %v3428 = vpop.xlane.xlu0 %3427
        %3429 = vadd.xlane.f32.xlu0 %v3421
        %v3430 = vpop.xlane.xlu0 %3429
        %3431 = vadd.xlane.f32.xlu0 %v3422
        %v3432 = vpop.xlane.xlu0 %3431
        %3433 = vadd.xlane.f32.xlu0 %v3423
        %v3434 = vpop.xlane.xlu0 %3433
        %3435 = vadd.xlane.f32.xlu0 %v3424
        %v3436 = vpop.xlane.xlu0 %3435
        %v3437 = vmul.f32 %v3426, 0.03125
        %v3438 = vmul.f32 %v3428, 0.03125
        %v3439 = vmul.f32 %v3430, 0.03125
        %v3440 = vmul.f32 %v3432, 0.03125
        %v3441 = vmul.f32 %v3434, 0.03125
        %v3442 = vmul.f32 %v3436, 0.03125
        %v3443 = vadd.f32 %v3437, 1e-05
        %v3444 = vadd.f32 %v3438, 1e-05
        %v3445 = vadd.f32 %v3439, 1e-05
        %v3446 = vadd.f32 %v3440, 1e-05
        %v3447 = vadd.f32 %v3441, 1e-05
        %v3448 = vadd.f32 %v3442, 1e-05
        %v3449 = vrsqrt.pop %v3443
        %v3450 = vrsqrt.pop %v3444
        %v3451 = vrsqrt.pop %v3445
        %v3452 = vrsqrt.pop %v3446
        %v3453 = vrsqrt.pop %v3447
        %v3454 = vrsqrt.pop %v3448
        %v3455 = vmul.f32 %v3413, %v3449
        %v3456 = vmul.f32 %v3414, %v3450
        %v3457 = vmul.f32 %v3415, %v3451
        %v3458 = vmul.f32 %v3416, %v3452
        %v3459 = vmul.f32 %v3417, %v3453
        %v3460 = vmul.f32 %v3418, %v3454
        %v3461 = vlaneseq
        %v3462 = vshrl.u32 %v3461, 7
        %v3463 = vsub.s32 1, %v3462
        %v3464 = vrot.slane %v3136, %v3463
        %v3465 = vmul.f32 %v3455, %v3464
        %v3466 = vmul.f32 %v3456, %v3464
        %v3467 = vmul.f32 %v3457, %v3464
        %v3468 = vmul.f32 %v3458, %v3464
        %v3469 = vmul.f32 %v3459, %v3464
        %v3470 = vmul.f32 %v3460, %v3464
        %v3471 = vlaneseq
        %v3472 = vshrl.u32 %v3471, 7
        %v3473 = vsub.s32 2, %v3472
        %v3474 = vrot.slane %v3136, %v3473
        %v3475 = vadd.f32 %v3465, %v3474
        %v3476 = vadd.f32 %v3466, %v3474
        %v3477 = vadd.f32 %v3467, %v3474
        %v3478 = vadd.f32 %v3468, %v3474
        %v3479 = vadd.f32 %v3469, %v3474
        %v3480 = vadd.f32 %v3470, %v3474
        %v3481 = vmax.f32 %v3475, 0.0
        %v3482 = vmax.f32 %v3476, 0.0
        %v3483 = vmax.f32 %v3477, 0.0
        %v3484 = vmax.f32 %v3478, 0.0
        %v3485 = vmax.f32 %v3479, 0.0
        %v3486 = vmax.f32 %v3480, 0.0
        %v3487 = vadd.f32 %v3137, 1.0
        %v3488 = vlaneseq
        %v3489 = vshrl.u32 %v3488, 7
        %v3490 = vsub.s32 3, %v3489
        %v3491 = vrot.slane %v3487, %v3490
        %v3492 = vmul.f32 %v3491, %v3131
        %v3493 = vmul.f32 %v3491, %v3132
        %v3494 = vpack.c.bf16 %v3482, %v3481
        %v3495 = vpack.c.bf16 %v3484, %v3483
        %v3496 = vpack.c.bf16 %v3486, %v3485
        %3497 = vmatprep.subr.bf16.mxu0 0
        %3498 = vmatpush1.bf16.msra.mxu0 %v3494
        %3499 = vmatprep.subr.bf16.mxu0 0
        %3500 = vmatpush1.bf16.msra.mxu0 %v3495
        %3501 = vmatprep.subr.bf16.mxu0 0
        %3502 = vmatpush1.bf16.msra.mxu0 %v3496
        %3503 = vmatprep.subr.bf16.mxu0 0
        %3504 = vmatpush1.bf16.msra.mxu0 0
        %3505 = vmatprep.subr.bf16.mxu0 0
        %3506 = vmatpush1.bf16.msra.mxu0 0
        %3507 = vmatprep.subr.bf16.mxu0 0
        %3508 = vmatpush1.bf16.msra.mxu0 0
        %3509 = vmatprep.subr.bf16.mxu0 0
        %3510 = vmatpush1.bf16.msra.mxu0 0
        %3511 = vmatprep.subr.bf16.mxu0 0
        %3512 = vmatpush1.bf16.msra.mxu0 0
        %3513 = vmatprep.subr.bf16.mxu0 0
        %3514 = vmatpush1.bf16.msra.mxu0 0
        %3515 = vmatprep.subr.bf16.mxu0 0
        %3516 = vmatpush1.bf16.msra.mxu0 0
        %3517 = vmatprep.subr.bf16.mxu0 0
        %3518 = vmatpush1.bf16.msra.mxu0 0
        %3519 = vmatprep.subr.bf16.mxu0 0
        %3520 = vmatpush1.bf16.msra.mxu0 0
        %3521 = vmatprep.subr.bf16.mxu0 0
        %3522 = vmatpush1.bf16.msra.mxu0 0
        %3523 = vmatprep.subr.bf16.mxu0 0
        %3524 = vmatpush1.bf16.msra.mxu0 0
        %3525 = vmatprep.subr.bf16.mxu0 0
        %3526 = vmatpush1.bf16.msra.mxu0 0
        %3527 = vmatprep.subr.bf16.mxu0 0
        %3528 = vmatpush1.bf16.msra.mxu0 0
        %3529 = vmatprep.mubr.bf16.mxu0 0
        %3530 = vmatmul.mubr.bf16.gmra.mrb[0].mxu0 %v1400
        %v3531 = vpop.f32.mrb[0].mxu0
        %v3532 = vadd.f32 0.0, %v3531
        %v3533 = vpop.f32.mrb[0].mxu0
        %v3534 = vpop.f32.mrb[0].mxu0
        %v3535 = vadd.f32 0.0, %v3534
        %v3536 = vpop.f32.mrb[0].mxu0
        %3537 = vdwg.mxu0
        %v3538 = vadd.f32 %v3492, %v3532
        %v3539 = vadd.f32 %v3493, %v3535
        %v3540 = vpack.c.bf16 %v3539, %v3538
        %s3541 = scalar_lea.vmem %s8, 192
        %v3542 = vld [vmem:[%s3541] sm:$0xf]
        %v3543 = vld [vmem:[%s3541 + $0x4] sm:$0xf]
        %v3544 = vld [vmem:[%s3541 + $0x8] sm:$0xf]
        %v3545 = vld [vmem:[%s3541 + $0xc] sm:$0xf]
        %v3546 = vld [vmem:[%s3541 + $0x10] sm:$0xf]
        %v3547 = vld [vmem:[%s3541 + $0x14] sm:$0xf]
        %v3548 = vld [vmem:[%s3541 + $0x18] sm:$0xf]
        %v3549 = vld [vmem:[%s3541 + $0x1c] sm:$0xf]
        %v3550 = vld [vmem:[%s3541 + $0x20] sm:$0xf]
        %v3551 = vld [vmem:[%s3541 + $0x24] sm:$0xf]
        %v3552 = vld [vmem:[%s3541 + $0x28] sm:$0xf]
        %v3553 = vld [vmem:[%s3541 + $0x2c] sm:$0xf]
        %v3554 = vld [vmem:[%s3541 + $0x30] sm:$0xf]
        %v3555 = vld [vmem:[%s3541 + $0x34] sm:$0xf]
        %v3556 = vld [vmem:[%s3541 + $0x38] sm:$0xf]
        %v3557 = vld [vmem:[%s3541 + $0x3c] sm:$0xf]
        %v3558 = vlaneseq
        %v3559 = vshrl.u32 %v3558, 7
        %v3560 = vsub.s32 3, %v3559
        %v3561 = vrot.slane %v3136, %v3560
        %v3578 = vunpack.c.l.b16 %v3542
        %v3579 = vunpack.c.l.b16 %v3543
        %v3580 = vunpack.c.l.b16 %v3544
        %v3581 = vunpack.c.l.b16 %v3545
        %v3582 = vunpack.c.l.b16 %v3546
        %v3583 = vunpack.c.l.b16 %v3547
        %v3584 = vunpack.c.l.b16 %v3548
        %v3585 = vunpack.c.l.b16 %v3549
        %v3586 = vunpack.c.l.b16 %v3550
        %v3587 = vunpack.c.l.b16 %v3551
        %v3588 = vunpack.c.l.b16 %v3552
        %v3589 = vunpack.c.l.b16 %v3553
        %v3590 = vunpack.c.l.b16 %v3554
        %v3591 = vunpack.c.l.b16 %v3555
        %v3592 = vunpack.c.l.b16 %v3556
        %v3593 = vunpack.c.l.b16 %v3557
        %v3594 = vpack.c.b16 %v3579, %v3578
        %v3595 = vpack.c.b16 %v3581, %v3580
        %v3596 = vpack.c.b16 %v3583, %v3582
        %v3597 = vpack.c.b16 %v3585, %v3584
        %v3598 = vpack.c.b16 %v3587, %v3586
        %v3599 = vpack.c.b16 %v3589, %v3588
        %v3600 = vpack.c.b16 %v3591, %v3590
        %v3601 = vpack.c.b16 %v3593, %v3592
        %3610 = vmatprep.subr.bf16.mxu0 0
        %3611 = vmatpush1.bf16.msra.mxu0 %v3594
        %3612 = vmatprep.subr.bf16.mxu0 0
        %3613 = vmatpush1.bf16.msra.mxu0 %v3595
        %3614 = vmatprep.subr.bf16.mxu0 0
        %3615 = vmatpush1.bf16.msra.mxu0 %v3596
        %3616 = vmatprep.subr.bf16.mxu0 0
        %3617 = vmatpush1.bf16.msra.mxu0 %v3597
        %3618 = vmatprep.subr.bf16.mxu0 0
        %3619 = vmatpush1.bf16.msra.mxu0 %v3598
        %3620 = vmatprep.subr.bf16.mxu0 0
        %3621 = vmatpush1.bf16.msra.mxu0 %v3599
        %3622 = vmatprep.subr.bf16.mxu0 0
        %3623 = vmatpush1.bf16.msra.mxu0 %v3600
        %3624 = vmatprep.subr.bf16.mxu0 0
        %3625 = vmatpush1.bf16.msra.mxu0 %v3601
        %3626 = vmatprep.subr.bf16.mxu0 0
        %3627 = vmatpush1.bf16.msra.mxu0 0
        %3628 = vmatprep.subr.bf16.mxu0 0
        %3629 = vmatpush1.bf16.msra.mxu0 0
        %3630 = vmatprep.subr.bf16.mxu0 0
        %3631 = vmatpush1.bf16.msra.mxu0 0
        %3632 = vmatprep.subr.bf16.mxu0 0
        %3633 = vmatpush1.bf16.msra.mxu0 0
        %3634 = vmatprep.subr.bf16.mxu0 0
        %3635 = vmatpush1.bf16.msra.mxu0 0
        %3636 = vmatprep.subr.bf16.mxu0 0
        %3637 = vmatpush1.bf16.msra.mxu0 0
        %3638 = vmatprep.subr.bf16.mxu0 0
        %3639 = vmatpush1.bf16.msra.mxu0 0
        %3640 = vmatprep.subr.bf16.mxu0 0
        %3641 = vmatpush1.bf16.msra.mxu0 0
        %3642 = vmatprep.mubr.bf16.mxu0 0
        %3643 = vmatmul.mubr.bf16.gmra.mrb[0].mxu0 %v3540
        %v3644 = vpop.f32.mrb[0].mxu0
        %v3645 = vadd.f32 %v3561, %v3644
        %v3646 = vpop.f32.mrb[0].mxu0
        %v3647 = vpop.f32.mrb[0].mxu0
        %v3648 = vadd.f32 %v3561, %v3647
        %v3649 = vpop.f32.mrb[0].mxu0
        %3650 = vdwg.mxu0
        %3651 = vadd.xlane.f32.xlu0 %v3645
        %v3652 = vpop.xlane.xlu0 %3651
        %3653 = vadd.xlane.f32.xlu0 %v3648
        %v3654 = vpop.xlane.xlu0 %3653
        %v3655 = vmul.f32 %v3652, 0.03125
        %v3656 = vmul.f32 %v3654, 0.03125
        %v3657 = vsub.f32 %v3645, %v3655
        %v3658 = vsub.f32 %v3648, %v3656
        %v3659 = vmul.f32 %v3657, %v578
        %v3660 = vmul.f32 %v3658, %v578
        %v3661 = vmul.f32 %v3659, %v3659
        %v3662 = vmul.f32 %v3660, %v3660
        %3663 = vadd.xlane.f32.xlu0 %v3661
        %v3664 = vpop.xlane.xlu0 %3663
        %3665 = vadd.xlane.f32.xlu0 %v3662
        %v3666 = vpop.xlane.xlu0 %3665
        %v3667 = vmul.f32 %v3664, 0.03125
        %v3668 = vmul.f32 %v3666, 0.03125
        %v3669 = vadd.f32 %v3667, 1e-05
        %v3670 = vadd.f32 %v3668, 1e-05
        %v3671 = vrsqrt.pop %v3669
        %v3672 = vrsqrt.pop %v3670
        %v3673 = vmul.f32 %v3659, %v3671
        %v3674 = vmul.f32 %v3660, %v3672
        %v3675 = vlaneseq
        %v3676 = vshrl.u32 %v3675, 7
        %v3677 = vsub.s32 4, %v3676
        %v3678 = vrot.slane %v3136, %v3677
        %v3679 = vmul.f32 %v3673, %v3678
        %v3680 = vmul.f32 %v3674, %v3678
        %v3681 = vlaneseq
        %v3682 = vshrl.u32 %v3681, 7
        %v3683 = vsub.s32 5, %v3682
        %v3684 = vrot.slane %v3136, %v3683
        %v3685 = vadd.f32 %v3679, %v3684
        %v3686 = vadd.f32 %v3680, %v3684
        %v3687 = vmax.f32 %v3685, 0.0
        %v3688 = vmax.f32 %v3686, 0.0
        %v3689 = vpack.c.bf16 %v3688, %v3687
        %s3690 = scalar_lea.vmem %s9, 192
        %v3691 = vld [vmem:[%s3690] sm:$0xf]
        %v3692 = vld [vmem:[%s3690 + $0x4] sm:$0xf]
        %v3693 = vld [vmem:[%s3690 + $0x8] sm:$0xf]
        %v3694 = vld [vmem:[%s3690 + $0xc] sm:$0xf]
        %v3695 = vld [vmem:[%s3690 + $0x10] sm:$0xf]
        %v3696 = vld [vmem:[%s3690 + $0x14] sm:$0xf]
        %v3697 = vld [vmem:[%s3690 + $0x18] sm:$0xf]
        %v3698 = vld [vmem:[%s3690 + $0x1c] sm:$0xf]
        %v3699 = vld [vmem:[%s3690 + $0x20] sm:$0xf]
        %v3700 = vld [vmem:[%s3690 + $0x24] sm:$0xf]
        %v3701 = vld [vmem:[%s3690 + $0x28] sm:$0xf]
        %v3702 = vld [vmem:[%s3690 + $0x2c] sm:$0xf]
        %v3703 = vld [vmem:[%s3690 + $0x30] sm:$0xf]
        %v3704 = vld [vmem:[%s3690 + $0x34] sm:$0xf]
        %v3705 = vld [vmem:[%s3690 + $0x38] sm:$0xf]
        %v3706 = vld [vmem:[%s3690 + $0x3c] sm:$0xf]
        %v3707 = vlaneseq
        %v3708 = vshrl.u32 %v3707, 7
        %v3709 = vsub.s32 6, %v3708
        %v3710 = vrot.slane %v3136, %v3709
        %v3727 = vunpack.c.l.b16 %v3691
        %v3728 = vunpack.c.l.b16 %v3692
        %v3729 = vunpack.c.l.b16 %v3693
        %v3730 = vunpack.c.l.b16 %v3694
        %v3731 = vunpack.c.l.b16 %v3695
        %v3732 = vunpack.c.l.b16 %v3696
        %v3733 = vunpack.c.l.b16 %v3697
        %v3734 = vunpack.c.l.b16 %v3698
        %v3735 = vunpack.c.l.b16 %v3699
        %v3736 = vunpack.c.l.b16 %v3700
        %v3737 = vunpack.c.l.b16 %v3701
        %v3738 = vunpack.c.l.b16 %v3702
        %v3739 = vunpack.c.l.b16 %v3703
        %v3740 = vunpack.c.l.b16 %v3704
        %v3741 = vunpack.c.l.b16 %v3705
        %v3742 = vunpack.c.l.b16 %v3706
        %v3743 = vpack.c.b16 %v3728, %v3727
        %v3744 = vpack.c.b16 %v3730, %v3729
        %v3745 = vpack.c.b16 %v3732, %v3731
        %v3746 = vpack.c.b16 %v3734, %v3733
        %v3747 = vpack.c.b16 %v3736, %v3735
        %v3748 = vpack.c.b16 %v3738, %v3737
        %v3749 = vpack.c.b16 %v3740, %v3739
        %v3750 = vpack.c.b16 %v3742, %v3741
        %3759 = vmatprep.subr.bf16.mxu0 0
        %3760 = vmatpush1.bf16.msra.mxu0 %v3743
        %3761 = vmatprep.subr.bf16.mxu0 0
        %3762 = vmatpush1.bf16.msra.mxu0 %v3744
        %3763 = vmatprep.subr.bf16.mxu0 0
        %3764 = vmatpush1.bf16.msra.mxu0 %v3745
        %3765 = vmatprep.subr.bf16.mxu0 0
        %3766 = vmatpush1.bf16.msra.mxu0 %v3746
        %3767 = vmatprep.subr.bf16.mxu0 0
        %3768 = vmatpush1.bf16.msra.mxu0 %v3747
        %3769 = vmatprep.subr.bf16.mxu0 0
        %3770 = vmatpush1.bf16.msra.mxu0 %v3748
        %3771 = vmatprep.subr.bf16.mxu0 0
        %3772 = vmatpush1.bf16.msra.mxu0 %v3749
        %3773 = vmatprep.subr.bf16.mxu0 0
        %3774 = vmatpush1.bf16.msra.mxu0 %v3750
        %3775 = vmatprep.subr.bf16.mxu0 0
        %3776 = vmatpush1.bf16.msra.mxu0 0
        %3777 = vmatprep.subr.bf16.mxu0 0
        %3778 = vmatpush1.bf16.msra.mxu0 0
        %3779 = vmatprep.subr.bf16.mxu0 0
        %3780 = vmatpush1.bf16.msra.mxu0 0
        %3781 = vmatprep.subr.bf16.mxu0 0
        %3782 = vmatpush1.bf16.msra.mxu0 0
        %3783 = vmatprep.subr.bf16.mxu0 0
        %3784 = vmatpush1.bf16.msra.mxu0 0
        %3785 = vmatprep.subr.bf16.mxu0 0
        %3786 = vmatpush1.bf16.msra.mxu0 0
        %3787 = vmatprep.subr.bf16.mxu0 0
        %3788 = vmatpush1.bf16.msra.mxu0 0
        %3789 = vmatprep.subr.bf16.mxu0 0
        %3790 = vmatpush1.bf16.msra.mxu0 0
        %3791 = vmatprep.mubr.bf16.mxu0 0
        %3792 = vmatmul.mubr.bf16.gmra.mrb[0].mxu0 %v3689
        %v3793 = vpop.f32.mrb[0].mxu0
        %v3794 = vadd.f32 %v3710, %v3793
        %v3795 = vpop.f32.mrb[0].mxu0
        %v3796 = vpop.f32.mrb[0].mxu0
        %v3797 = vadd.f32 %v3710, %v3796
        %v3798 = vpop.f32.mrb[0].mxu0
        %3799 = vdwg.mxu0
        %v3800 = vmul.f32 %v3131, 2.0
        %v3801 = vmul.f32 %v3132, 2.0
        %v3802 = vadd.f32 %v3794, %v3800
        %v3803 = vadd.f32 %v3797, %v3801
        %v3804 = vlaneseq
        %v3805 = vshrl.u32 %v3804, 7
        %v3806 = vsub.s32 7, %v3805
        %v3807 = vrot.slane %v3136, %v3806
        %v3808 = vsub.f32 %v3802, %v3807
        %v3809 = vsub.f32 %v3803, %v3807
        %v3810 = vadd.f32 %v3137, 1e-05
        %v3811 = vrsqrt.pop %v3810
        %v3812 = vlaneseq
        %v3813 = vshrl.u32 %v3812, 7
        %v3814 = vsub.s32 0, %v3813
        %v3815 = vrot.slane %v3811, %v3814
        %v3816 = vmul.f32 %v3808, %v3815
        %v3817 = vmul.f32 %v3809, %v3815
        %v3818 = vlaneseq
        %v3819 = vshrl.u32 %v3818, 7
        %v3820 = vsub.s32 1, %v3819
        %v3821 = vrot.slane %v3137, %v3820
        %v3822 = vmul.f32 %v3816, %v3821
        %v3823 = vmul.f32 %v3817, %v3821
        %v3824 = vlaneseq
        %v3825 = vshrl.u32 %v3824, 7
        %v3826 = vsub.s32 2, %v3825
        %v3827 = vrot.slane %v3137, %v3826
        %v3828 = vadd.f32 %v3822, %v3827
        %v3829 = vadd.f32 %v3823, %v3827
        %v3830 = vmax.f32 %v3828, 0.0
        %v3831 = vmax.f32 %v3829, 0.0
        %v3832 = vadd.f32 %v3133, %v3830
        %v3833 = vadd.f32 %v3134, %v3831
        %s3834 = scalar_lea.vmem %s10, 64
        %v3835 = vld [vmem:[%s3834] sm:$0xff]
        %v3836 = vld [vmem:[%s3834 + $0x8] sm:$0xf]
        %v3837 = vpack.c.bf16 %v3831, %v3830
        %3838 = vmatprep.subr.bf16.mxu0 0
        %3839 = vmatpush1.bf16.msra.mxu0 %v3837
        %3840 = vmatprep.subr.bf16.mxu0 0
        %3841 = vmatpush1.bf16.msra.mxu0 0
        %3842 = vmatprep.subr.bf16.mxu0 0
        %3843 = vmatpush1.bf16.msra.mxu0 0
        %3844 = vmatprep.subr.bf16.mxu0 0
        %3845 = vmatpush1.bf16.msra.mxu0 0
        %3846 = vmatprep.subr.bf16.mxu0 0
        %3847 = vmatpush1.bf16.msra.mxu0 0
        %3848 = vmatprep.subr.bf16.mxu0 0
        %3849 = vmatpush1.bf16.msra.mxu0 0
        %3850 = vmatprep.subr.bf16.mxu0 0
        %3851 = vmatpush1.bf16.msra.mxu0 0
        %3852 = vmatprep.subr.bf16.mxu0 0
        %3853 = vmatpush1.bf16.msra.mxu0 0
        %3854 = vmatprep.subr.bf16.mxu0 0
        %3855 = vmatpush1.bf16.msra.mxu0 0
        %3856 = vmatprep.subr.bf16.mxu0 0
        %3857 = vmatpush1.bf16.msra.mxu0 0
        %3858 = vmatprep.subr.bf16.mxu0 0
        %3859 = vmatpush1.bf16.msra.mxu0 0
        %3860 = vmatprep.subr.bf16.mxu0 0
        %3861 = vmatpush1.bf16.msra.mxu0 0
        %3862 = vmatprep.subr.bf16.mxu0 0
        %3863 = vmatpush1.bf16.msra.mxu0 0
        %3864 = vmatprep.subr.bf16.mxu0 0
        %3865 = vmatpush1.bf16.msra.mxu0 0
        %3866 = vmatprep.subr.bf16.mxu0 0
        %3867 = vmatpush1.bf16.msra.mxu0 0
        %3868 = vmatprep.subr.bf16.mxu0 0
        %3869 = vmatpush1.bf16.msra.mxu0 0
        %3870 = vmatprep.mubr.bf16.mxu0 0
        %3871 = vmatmul.mubr.bf16.gmra.mrb[0].mxu0 %v1033
        %v3872 = vpop.f32.mrb[0].mxu0
        %v3873 = vadd.f32 0.0, %v3872
        %v3874 = vpop.f32.mrb[0].mxu0
        %v3875 = vpop.f32.mrb[0].mxu0
        %v3876 = vadd.f32 0.0, %v3875
        %v3877 = vpop.f32.mrb[0].mxu0
        %3878 = vmatprep.mubr.bf16.mxu0 0
        %3879 = vmatmul.mubr.bf16.gmra.mrb[0].mxu0 %v1036
        %v3880 = vpop.f32.mrb[0].mxu0
        %v3881 = vadd.f32 0.0, %v3880
        %v3882 = vpop.f32.mrb[0].mxu0
        %v3883 = vpop.f32.mrb[0].mxu0
        %v3884 = vadd.f32 0.0, %v3883
        %v3885 = vpop.f32.mrb[0].mxu0
        %3886 = vmatprep.mubr.bf16.mxu0 0
        %3887 = vmatmul.mubr.bf16.gmra.mrb[0].mxu0 %v1039
        %v3888 = vpop.f32.mrb[0].mxu0
        %v3889 = vadd.f32 0.0, %v3888
        %v3890 = vpop.f32.mrb[0].mxu0
        %v3891 = vpop.f32.mrb[0].mxu0
        %v3892 = vadd.f32 0.0, %v3891
        %v3893 = vpop.f32.mrb[0].mxu0
        %3894 = vdwg.mxu0
        %v3895 = vpack.c.bf16 %v3876, %v3873
        %v3896 = vpack.c.bf16 %v3884, %v3881
        %v3897 = vpack.c.bf16 %v3892, %v3889
        %s3898 = scalar_lea.vmem %s7, 512
        %v3899 = vld [vmem:[%s3898] sm:$0xf]
        %v3900 = vld [vmem:[%s3898 + $0x4] sm:$0xf]
        %v3901 = vld [vmem:[%s3898 + $0x8] sm:$0xf]
        %v3902 = vld [vmem:[%s3898 + $0xc] sm:$0xf]
        %v3903 = vld [vmem:[%s3898 + $0x10] sm:$0xf]
        %v3904 = vld [vmem:[%s3898 + $0x14] sm:$0xf]
        %v3905 = vld [vmem:[%s3898 + $0x18] sm:$0xf]
        %v3906 = vld [vmem:[%s3898 + $0x1c] sm:$0xf]
        %v3907 = vld [vmem:[%s3898 + $0x20] sm:$0xf]
        %v3908 = vld [vmem:[%s3898 + $0x24] sm:$0xf]
        %v3909 = vld [vmem:[%s3898 + $0x28] sm:$0xf]
        %v3910 = vld [vmem:[%s3898 + $0x2c] sm:$0xf]
        %v3911 = vld [vmem:[%s3898 + $0x30] sm:$0xf]
        %v3912 = vld [vmem:[%s3898 + $0x34] sm:$0xf]
        %v3913 = vld [vmem:[%s3898 + $0x38] sm:$0xf]
        %v3914 = vld [vmem:[%s3898 + $0x3c] sm:$0xf]
        %v3915 = vld [vmem:[%s3898 + $0x40] sm:$0xf]
        %v3916 = vld [vmem:[%s3898 + $0x44] sm:$0xf]
        %v3917 = vld [vmem:[%s3898 + $0x48] sm:$0xf]
        %v3918 = vld [vmem:[%s3898 + $0x4c] sm:$0xf]
        %v3919 = vld [vmem:[%s3898 + $0x50] sm:$0xf]
        %v3920 = vld [vmem:[%s3898 + $0x54] sm:$0xf]
        %v3921 = vld [vmem:[%s3898 + $0x58] sm:$0xf]
        %v3922 = vld [vmem:[%s3898 + $0x5c] sm:$0xf]
        %v3923 = vld [vmem:[%s3898 + $0x60] sm:$0xf]
        %v3924 = vld [vmem:[%s3898 + $0x64] sm:$0xf]
        %v3925 = vld [vmem:[%s3898 + $0x68] sm:$0xf]
        %v3926 = vld [vmem:[%s3898 + $0x6c] sm:$0xf]
        %v3927 = vld [vmem:[%s3898 + $0x70] sm:$0xf]
        %v3928 = vld [vmem:[%s3898 + $0x74] sm:$0xf]
        %v3929 = vld [vmem:[%s3898 + $0x78] sm:$0xf]
        %v3930 = vld [vmem:[%s3898 + $0x7c] sm:$0xf]
        %v3931 = vlaneseq
        %v3932 = vshrl.u32 %v3931, 7
        %v3933 = vsub.s32 0, %v3932
        %v3934 = vrot.slane %v3835, %v3933
        %v3967 = vunpack.c.l.b16 %v3899
        %v3968 = vunpack.c.l.b16 %v3900
        %v3969 = vunpack.c.l.b16 %v3901
        %v3970 = vunpack.c.l.b16 %v3902
        %v3971 = vunpack.c.l.b16 %v3903
        %v3972 = vunpack.c.l.b16 %v3904
        %v3973 = vunpack.c.l.b16 %v3905
        %v3974 = vunpack.c.l.b16 %v3906
        %v3975 = vunpack.c.l.b16 %v3907
        %v3976 = vunpack.c.l.b16 %v3908
        %v3977 = vunpack.c.l.b16 %v3909
        %v3978 = vunpack.c.l.b16 %v3910
        %v3979 = vunpack.c.l.b16 %v3911
        %v3980 = vunpack.c.l.b16 %v3912
        %v3981 = vunpack.c.l.b16 %v3913
        %v3982 = vunpack.c.l.b16 %v3914
        %v3983 = vunpack.c.l.b16 %v3915
        %v3984 = vunpack.c.l.b16 %v3916
        %v3985 = vunpack.c.l.b16 %v3917
        %v3986 = vunpack.c.l.b16 %v3918
        %v3987 = vunpack.c.l.b16 %v3919
        %v3988 = vunpack.c.l.b16 %v3920
        %v3989 = vunpack.c.l.b16 %v3921
        %v3990 = vunpack.c.l.b16 %v3922
        %v3991 = vunpack.c.l.b16 %v3923
        %v3992 = vunpack.c.l.b16 %v3924
        %v3993 = vunpack.c.l.b16 %v3925
        %v3994 = vunpack.c.l.b16 %v3926
        %v3995 = vunpack.c.l.b16 %v3927
        %v3996 = vunpack.c.l.b16 %v3928
        %v3997 = vunpack.c.l.b16 %v3929
        %v3998 = vunpack.c.l.b16 %v3930
        %v3999 = vpack.c.b16 %v3968, %v3967
        %v4000 = vpack.c.b16 %v3970, %v3969
        %v4001 = vpack.c.b16 %v3972, %v3971
        %v4002 = vpack.c.b16 %v3974, %v3973
        %v4003 = vpack.c.b16 %v3976, %v3975
        %v4004 = vpack.c.b16 %v3978, %v3977
        %v4005 = vpack.c.b16 %v3980, %v3979
        %v4006 = vpack.c.b16 %v3982, %v3981
        %v4007 = vpack.c.b16 %v3984, %v3983
        %v4008 = vpack.c.b16 %v3986, %v3985
        %v4009 = vpack.c.b16 %v3988, %v3987
        %v4010 = vpack.c.b16 %v3990, %v3989
        %v4011 = vpack.c.b16 %v3992, %v3991
        %v4012 = vpack.c.b16 %v3994, %v3993
        %v4013 = vpack.c.b16 %v3996, %v3995
        %v4014 = vpack.c.b16 %v3998, %v3997
        %4031 = vmatprep.subr.bf16.mxu0 0
        %4032 = vmatpush1.bf16.msra.mxu0 %v3999
        %4033 = vmatprep.subr.bf16.mxu0 0
        %4034 = vmatpush1.bf16.msra.mxu0 %v4000
        %4035 = vmatprep.subr.bf16.mxu0 0
        %4036 = vmatpush1.bf16.msra.mxu0 %v4001
        %4037 = vmatprep.subr.bf16.mxu0 0
        %4038 = vmatpush1.bf16.msra.mxu0 %v4002
        %4039 = vmatprep.subr.bf16.mxu0 0
        %4040 = vmatpush1.bf16.msra.mxu0 %v4003
        %4041 = vmatprep.subr.bf16.mxu0 0
        %4042 = vmatpush1.bf16.msra.mxu0 %v4004
        %4043 = vmatprep.subr.bf16.mxu0 0
        %4044 = vmatpush1.bf16.msra.mxu0 %v4005
        %4045 = vmatprep.subr.bf16.mxu0 0
        %4046 = vmatpush1.bf16.msra.mxu0 %v4006
        %4047 = vmatprep.subr.bf16.mxu0 0
        %4048 = vmatpush1.bf16.msra.mxu0 %v4007
        %4049 = vmatprep.subr.bf16.mxu0 0
        %4050 = vmatpush1.bf16.msra.mxu0 %v4008
        %4051 = vmatprep.subr.bf16.mxu0 0
        %4052 = vmatpush1.bf16.msra.mxu0 %v4009
        %4053 = vmatprep.subr.bf16.mxu0 0
        %4054 = vmatpush1.bf16.msra.mxu0 %v4010
        %4055 = vmatprep.subr.bf16.mxu0 0
        %4056 = vmatpush1.bf16.msra.mxu0 %v4011
        %4057 = vmatprep.subr.bf16.mxu0 0
        %4058 = vmatpush1.bf16.msra.mxu0 %v4012
        %4059 = vmatprep.subr.bf16.mxu0 0
        %4060 = vmatpush1.bf16.msra.mxu0 %v4013
        %4061 = vmatprep.subr.bf16.mxu0 0
        %4062 = vmatpush1.bf16.msra.mxu0 %v4014
        %4063 = vmatprep.mubr.bf16.mxu0 %v965
        %4064 = vmatmul.mubr.bf16.gmra.mrb[0].mxu0 %v3895
        %v4065 = vpop.f32.mrb[0].mxu0
        %v4066 = vadd.f32 %v3934, %v4065
        %v4067 = vpop.f32.mrb[0].mxu0
        %v4068 = vpop.f32.mrb[0].mxu0
        %v4069 = vadd.f32 %v3934, %v4068
        %v4070 = vpop.f32.mrb[0].mxu0
        %4071 = vmatprep.mubr.bf16.mxu0 %v966
        %4072 = vmatmul.mubr.bf16.gmra.mrb[0].mxu0 %v3896
        %v4073 = vpop.f32.mrb[0].mxu0
        %v4074 = vadd.f32 %v3934, %v4073
        %v4075 = vpop.f32.mrb[0].mxu0
        %v4076 = vpop.f32.mrb[0].mxu0
        %v4077 = vadd.f32 %v3934, %v4076
        %v4078 = vpop.f32.mrb[0].mxu0
        %4079 = vmatprep.mubr.bf16.mxu0 %v967
        %4080 = vmatmul.mubr.bf16.gmra.mrb[0].mxu0 %v3897
        %v4081 = vpop.f32.mrb[0].mxu0
        %v4082 = vadd.f32 %v3934, %v4081
        %v4083 = vpop.f32.mrb[0].mxu0
        %v4084 = vpop.f32.mrb[0].mxu0
        %v4085 = vadd.f32 %v3934, %v4084
        %v4086 = vpop.f32.mrb[0].mxu0
        %4087 = vdwg.mxu0
        %4088 = vadd.xlane.f32.xlu0 %v4066
        %v4089 = vpop.xlane.xlu0 %4088
        %4090 = vadd.xlane.f32.xlu0 %v4069
        %v4091 = vpop.xlane.xlu0 %4090
        %4092 = vadd.xlane.f32.xlu0 %v4074
        %v4093 = vpop.xlane.xlu0 %4092
        %4094 = vadd.xlane.f32.xlu0 %v4077
        %v4095 = vpop.xlane.xlu0 %4094
        %4096 = vadd.xlane.f32.xlu0 %v4082
        %v4097 = vpop.xlane.xlu0 %4096
        %4098 = vadd.xlane.f32.xlu0 %v4085
        %v4099 = vpop.xlane.xlu0 %4098
        %v4100 = vmul.f32 %v4089, 0.03125
        %v4101 = vmul.f32 %v4091, 0.03125
        %v4102 = vmul.f32 %v4093, 0.03125
        %v4103 = vmul.f32 %v4095, 0.03125
        %v4104 = vmul.f32 %v4097, 0.03125
        %v4105 = vmul.f32 %v4099, 0.03125
        %v4106 = vsub.f32 %v4066, %v4100
        %v4107 = vsub.f32 %v4069, %v4101
        %v4108 = vsub.f32 %v4074, %v4102
        %v4109 = vsub.f32 %v4077, %v4103
        %v4110 = vsub.f32 %v4082, %v4104
        %v4111 = vsub.f32 %v4085, %v4105
        %v4112 = vmul.f32 %v4106, %v578
        %v4113 = vmul.f32 %v4107, %v578
        %v4114 = vmul.f32 %v4108, %v578
        %v4115 = vmul.f32 %v4109, %v578
        %v4116 = vmul.f32 %v4110, %v578
        %v4117 = vmul.f32 %v4111, %v578
        %v4118 = vmul.f32 %v4112, %v4112
        %v4119 = vmul.f32 %v4113, %v4113
        %v4120 = vmul.f32 %v4114, %v4114
        %v4121 = vmul.f32 %v4115, %v4115
        %v4122 = vmul.f32 %v4116, %v4116
        %v4123 = vmul.f32 %v4117, %v4117
        %4124 = vadd.xlane.f32.xlu0 %v4118
        %v4125 = vpop.xlane.xlu0 %4124
        %4126 = vadd.xlane.f32.xlu0 %v4119
        %v4127 = vpop.xlane.xlu0 %4126
        %4128 = vadd.xlane.f32.xlu0 %v4120
        %v4129 = vpop.xlane.xlu0 %4128
        %4130 = vadd.xlane.f32.xlu0 %v4121
        %v4131 = vpop.xlane.xlu0 %4130
        %4132 = vadd.xlane.f32.xlu0 %v4122
        %v4133 = vpop.xlane.xlu0 %4132
        %4134 = vadd.xlane.f32.xlu0 %v4123
        %v4135 = vpop.xlane.xlu0 %4134
        %v4136 = vmul.f32 %v4125, 0.03125
        %v4137 = vmul.f32 %v4127, 0.03125
        %v4138 = vmul.f32 %v4129, 0.03125
        %v4139 = vmul.f32 %v4131, 0.03125
        %v4140 = vmul.f32 %v4133, 0.03125
        %v4141 = vmul.f32 %v4135, 0.03125
        %v4142 = vadd.f32 %v4136, 1e-05
        %v4143 = vadd.f32 %v4137, 1e-05
        %v4144 = vadd.f32 %v4138, 1e-05
        %v4145 = vadd.f32 %v4139, 1e-05
        %v4146 = vadd.f32 %v4140, 1e-05
        %v4147 = vadd.f32 %v4141, 1e-05
        %v4148 = vrsqrt.pop %v4142
        %v4149 = vrsqrt.pop %v4143
        %v4150 = vrsqrt.pop %v4144
        %v4151 = vrsqrt.pop %v4145
        %v4152 = vrsqrt.pop %v4146
        %v4153 = vrsqrt.pop %v4147
        %v4154 = vmul.f32 %v4112, %v4148
        %v4155 = vmul.f32 %v4113, %v4149
        %v4156 = vmul.f32 %v4114, %v4150
        %v4157 = vmul.f32 %v4115, %v4151
        %v4158 = vmul.f32 %v4116, %v4152
        %v4159 = vmul.f32 %v4117, %v4153
        %v4160 = vlaneseq
        %v4161 = vshrl.u32 %v4160, 7
        %v4162 = vsub.s32 1, %v4161
        %v4163 = vrot.slane %v3835, %v4162
        %v4164 = vmul.f32 %v4154, %v4163
        %v4165 = vmul.f32 %v4155, %v4163
        %v4166 = vmul.f32 %v4156, %v4163
        %v4167 = vmul.f32 %v4157, %v4163
        %v4168 = vmul.f32 %v4158, %v4163
        %v4169 = vmul.f32 %v4159, %v4163
        %v4170 = vlaneseq
        %v4171 = vshrl.u32 %v4170, 7
        %v4172 = vsub.s32 2, %v4171
        %v4173 = vrot.slane %v3835, %v4172
        %v4174 = vadd.f32 %v4164, %v4173
        %v4175 = vadd.f32 %v4165, %v4173
        %v4176 = vadd.f32 %v4166, %v4173
        %v4177 = vadd.f32 %v4167, %v4173
        %v4178 = vadd.f32 %v4168, %v4173
        %v4179 = vadd.f32 %v4169, %v4173
        %v4180 = vmax.f32 %v4174, 0.0
        %v4181 = vmax.f32 %v4175, 0.0
        %v4182 = vmax.f32 %v4176, 0.0
        %v4183 = vmax.f32 %v4177, 0.0
        %v4184 = vmax.f32 %v4178, 0.0
        %v4185 = vmax.f32 %v4179, 0.0
        %v4186 = vadd.f32 %v3836, 1.0
        %v4187 = vlaneseq
        %v4188 = vshrl.u32 %v4187, 7
        %v4189 = vsub.s32 3, %v4188
        %v4190 = vrot.slane %v4186, %v4189
        %v4191 = vmul.f32 %v4190, %v3830
        %v4192 = vmul.f32 %v4190, %v3831
        %v4193 = vpack.c.bf16 %v4181, %v4180
        %v4194 = vpack.c.bf16 %v4183, %v4182
        %v4195 = vpack.c.bf16 %v4185, %v4184
        %4196 = vmatprep.subr.bf16.mxu0 0
        %4197 = vmatpush1.bf16.msra.mxu0 %v4193
        %4198 = vmatprep.subr.bf16.mxu0 0
        %4199 = vmatpush1.bf16.msra.mxu0 %v4194
        %4200 = vmatprep.subr.bf16.mxu0 0
        %4201 = vmatpush1.bf16.msra.mxu0 %v4195
        %4202 = vmatprep.subr.bf16.mxu0 0
        %4203 = vmatpush1.bf16.msra.mxu0 0
        %4204 = vmatprep.subr.bf16.mxu0 0
        %4205 = vmatpush1.bf16.msra.mxu0 0
        %4206 = vmatprep.subr.bf16.mxu0 0
        %4207 = vmatpush1.bf16.msra.mxu0 0
        %4208 = vmatprep.subr.bf16.mxu0 0
        %4209 = vmatpush1.bf16.msra.mxu0 0
        %4210 = vmatprep.subr.bf16.mxu0 0
        %4211 = vmatpush1.bf16.msra.mxu0 0
        %4212 = vmatprep.subr.bf16.mxu0 0
        %4213 = vmatpush1.bf16.msra.mxu0 0
        %4214 = vmatprep.subr.bf16.mxu0 0
        %4215 = vmatpush1.bf16.msra.mxu0 0
        %4216 = vmatprep.subr.bf16.mxu0 0
        %4217 = vmatpush1.bf16.msra.mxu0 0
        %4218 = vmatprep.subr.bf16.mxu0 0
        %4219 = vmatpush1.bf16.msra.mxu0 0
        %4220 = vmatprep.subr.bf16.mxu0 0
        %4221 = vmatpush1.bf16.msra.mxu0 0
        %4222 = vmatprep.subr.bf16.mxu0 0
        %4223 = vmatpush1.bf16.msra.mxu0 0
        %4224 = vmatprep.subr.bf16.mxu0 0
        %4225 = vmatpush1.bf16.msra.mxu0 0
        %4226 = vmatprep.subr.bf16.mxu0 0
        %4227 = vmatpush1.bf16.msra.mxu0 0
        %4228 = vmatprep.mubr.bf16.mxu0 0
        %4229 = vmatmul.mubr.bf16.gmra.mrb[0].mxu0 %v1400
        %v4230 = vpop.f32.mrb[0].mxu0
        %v4231 = vadd.f32 0.0, %v4230
        %v4232 = vpop.f32.mrb[0].mxu0
        %v4233 = vpop.f32.mrb[0].mxu0
        %v4234 = vadd.f32 0.0, %v4233
        %v4235 = vpop.f32.mrb[0].mxu0
        %4236 = vdwg.mxu0
        %v4237 = vadd.f32 %v4191, %v4231
        %v4238 = vadd.f32 %v4192, %v4234
        %v4239 = vpack.c.bf16 %v4238, %v4237
        %s4240 = scalar_lea.vmem %s8, 256
        %v4241 = vld [vmem:[%s4240] sm:$0xf]
        %v4242 = vld [vmem:[%s4240 + $0x4] sm:$0xf]
        %v4243 = vld [vmem:[%s4240 + $0x8] sm:$0xf]
        %v4244 = vld [vmem:[%s4240 + $0xc] sm:$0xf]
        %v4245 = vld [vmem:[%s4240 + $0x10] sm:$0xf]
        %v4246 = vld [vmem:[%s4240 + $0x14] sm:$0xf]
        %v4247 = vld [vmem:[%s4240 + $0x18] sm:$0xf]
        %v4248 = vld [vmem:[%s4240 + $0x1c] sm:$0xf]
        %v4249 = vld [vmem:[%s4240 + $0x20] sm:$0xf]
        %v4250 = vld [vmem:[%s4240 + $0x24] sm:$0xf]
        %v4251 = vld [vmem:[%s4240 + $0x28] sm:$0xf]
        %v4252 = vld [vmem:[%s4240 + $0x2c] sm:$0xf]
        %v4253 = vld [vmem:[%s4240 + $0x30] sm:$0xf]
        %v4254 = vld [vmem:[%s4240 + $0x34] sm:$0xf]
        %v4255 = vld [vmem:[%s4240 + $0x38] sm:$0xf]
        %v4256 = vld [vmem:[%s4240 + $0x3c] sm:$0xf]
        %v4257 = vlaneseq
        %v4258 = vshrl.u32 %v4257, 7
        %v4259 = vsub.s32 3, %v4258
        %v4260 = vrot.slane %v3835, %v4259
        %v4277 = vunpack.c.l.b16 %v4241
        %v4278 = vunpack.c.l.b16 %v4242
        %v4279 = vunpack.c.l.b16 %v4243
        %v4280 = vunpack.c.l.b16 %v4244
        %v4281 = vunpack.c.l.b16 %v4245
        %v4282 = vunpack.c.l.b16 %v4246
        %v4283 = vunpack.c.l.b16 %v4247
        %v4284 = vunpack.c.l.b16 %v4248
        %v4285 = vunpack.c.l.b16 %v4249
        %v4286 = vunpack.c.l.b16 %v4250
        %v4287 = vunpack.c.l.b16 %v4251
        %v4288 = vunpack.c.l.b16 %v4252
        %v4289 = vunpack.c.l.b16 %v4253
        %v4290 = vunpack.c.l.b16 %v4254
        %v4291 = vunpack.c.l.b16 %v4255
        %v4292 = vunpack.c.l.b16 %v4256
        %v4293 = vpack.c.b16 %v4278, %v4277
        %v4294 = vpack.c.b16 %v4280, %v4279
        %v4295 = vpack.c.b16 %v4282, %v4281
        %v4296 = vpack.c.b16 %v4284, %v4283
        %v4297 = vpack.c.b16 %v4286, %v4285
        %v4298 = vpack.c.b16 %v4288, %v4287
        %v4299 = vpack.c.b16 %v4290, %v4289
        %v4300 = vpack.c.b16 %v4292, %v4291
        %4309 = vmatprep.subr.bf16.mxu0 0
        %4310 = vmatpush1.bf16.msra.mxu0 %v4293
        %4311 = vmatprep.subr.bf16.mxu0 0
        %4312 = vmatpush1.bf16.msra.mxu0 %v4294
        %4313 = vmatprep.subr.bf16.mxu0 0
        %4314 = vmatpush1.bf16.msra.mxu0 %v4295
        %4315 = vmatprep.subr.bf16.mxu0 0
        %4316 = vmatpush1.bf16.msra.mxu0 %v4296
        %4317 = vmatprep.subr.bf16.mxu0 0
        %4318 = vmatpush1.bf16.msra.mxu0 %v4297
        %4319 = vmatprep.subr.bf16.mxu0 0
        %4320 = vmatpush1.bf16.msra.mxu0 %v4298
        %4321 = vmatprep.subr.bf16.mxu0 0
        %4322 = vmatpush1.bf16.msra.mxu0 %v4299
        %4323 = vmatprep.subr.bf16.mxu0 0
        %4324 = vmatpush1.bf16.msra.mxu0 %v4300
        %4325 = vmatprep.subr.bf16.mxu0 0
        %4326 = vmatpush1.bf16.msra.mxu0 0
        %4327 = vmatprep.subr.bf16.mxu0 0
        %4328 = vmatpush1.bf16.msra.mxu0 0
        %4329 = vmatprep.subr.bf16.mxu0 0
        %4330 = vmatpush1.bf16.msra.mxu0 0
        %4331 = vmatprep.subr.bf16.mxu0 0
        %4332 = vmatpush1.bf16.msra.mxu0 0
        %4333 = vmatprep.subr.bf16.mxu0 0
        %4334 = vmatpush1.bf16.msra.mxu0 0
        %4335 = vmatprep.subr.bf16.mxu0 0
        %4336 = vmatpush1.bf16.msra.mxu0 0
        %4337 = vmatprep.subr.bf16.mxu0 0
        %4338 = vmatpush1.bf16.msra.mxu0 0
        %4339 = vmatprep.subr.bf16.mxu0 0
        %4340 = vmatpush1.bf16.msra.mxu0 0
        %4341 = vmatprep.mubr.bf16.mxu0 0
        %4342 = vmatmul.mubr.bf16.gmra.mrb[0].mxu0 %v4239
        %v4343 = vpop.f32.mrb[0].mxu0
        %v4344 = vadd.f32 %v4260, %v4343
        %v4345 = vpop.f32.mrb[0].mxu0
        %v4346 = vpop.f32.mrb[0].mxu0
        %v4347 = vadd.f32 %v4260, %v4346
        %v4348 = vpop.f32.mrb[0].mxu0
        %4349 = vdwg.mxu0
        %4350 = vadd.xlane.f32.xlu0 %v4344
        %v4351 = vpop.xlane.xlu0 %4350
        %4352 = vadd.xlane.f32.xlu0 %v4347
        %v4353 = vpop.xlane.xlu0 %4352
        %v4354 = vmul.f32 %v4351, 0.03125
        %v4355 = vmul.f32 %v4353, 0.03125
        %v4356 = vsub.f32 %v4344, %v4354
        %v4357 = vsub.f32 %v4347, %v4355
        %v4358 = vmul.f32 %v4356, %v578
        %v4359 = vmul.f32 %v4357, %v578
        %v4360 = vmul.f32 %v4358, %v4358
        %v4361 = vmul.f32 %v4359, %v4359
        %4362 = vadd.xlane.f32.xlu0 %v4360
        %v4363 = vpop.xlane.xlu0 %4362
        %4364 = vadd.xlane.f32.xlu0 %v4361
        %v4365 = vpop.xlane.xlu0 %4364
        %v4366 = vmul.f32 %v4363, 0.03125
        %v4367 = vmul.f32 %v4365, 0.03125
        %v4368 = vadd.f32 %v4366, 1e-05
        %v4369 = vadd.f32 %v4367, 1e-05
        %v4370 = vrsqrt.pop %v4368
        %v4371 = vrsqrt.pop %v4369
        %v4372 = vmul.f32 %v4358, %v4370
        %v4373 = vmul.f32 %v4359, %v4371
        %v4374 = vlaneseq
        %v4375 = vshrl.u32 %v4374, 7
        %v4376 = vsub.s32 4, %v4375
        %v4377 = vrot.slane %v3835, %v4376
        %v4378 = vmul.f32 %v4372, %v4377
        %v4379 = vmul.f32 %v4373, %v4377
        %v4380 = vlaneseq
        %v4381 = vshrl.u32 %v4380, 7
        %v4382 = vsub.s32 5, %v4381
        %v4383 = vrot.slane %v3835, %v4382
        %v4384 = vadd.f32 %v4378, %v4383
        %v4385 = vadd.f32 %v4379, %v4383
        %v4386 = vmax.f32 %v4384, 0.0
        %v4387 = vmax.f32 %v4385, 0.0
        %v4388 = vpack.c.bf16 %v4387, %v4386
        %s4389 = scalar_lea.vmem %s9, 256
        %v4390 = vld [vmem:[%s4389] sm:$0xf]
        %v4391 = vld [vmem:[%s4389 + $0x4] sm:$0xf]
        %v4392 = vld [vmem:[%s4389 + $0x8] sm:$0xf]
        %v4393 = vld [vmem:[%s4389 + $0xc] sm:$0xf]
        %v4394 = vld [vmem:[%s4389 + $0x10] sm:$0xf]
        %v4395 = vld [vmem:[%s4389 + $0x14] sm:$0xf]
        %v4396 = vld [vmem:[%s4389 + $0x18] sm:$0xf]
        %v4397 = vld [vmem:[%s4389 + $0x1c] sm:$0xf]
        %v4398 = vld [vmem:[%s4389 + $0x20] sm:$0xf]
        %v4399 = vld [vmem:[%s4389 + $0x24] sm:$0xf]
        %v4400 = vld [vmem:[%s4389 + $0x28] sm:$0xf]
        %v4401 = vld [vmem:[%s4389 + $0x2c] sm:$0xf]
        %v4402 = vld [vmem:[%s4389 + $0x30] sm:$0xf]
        %v4403 = vld [vmem:[%s4389 + $0x34] sm:$0xf]
        %v4404 = vld [vmem:[%s4389 + $0x38] sm:$0xf]
        %v4405 = vld [vmem:[%s4389 + $0x3c] sm:$0xf]
        %v4406 = vlaneseq
        %v4407 = vshrl.u32 %v4406, 7
        %v4408 = vsub.s32 6, %v4407
        %v4409 = vrot.slane %v3835, %v4408
        %v4426 = vunpack.c.l.b16 %v4390
        %v4427 = vunpack.c.l.b16 %v4391
        %v4428 = vunpack.c.l.b16 %v4392
        %v4429 = vunpack.c.l.b16 %v4393
        %v4430 = vunpack.c.l.b16 %v4394
        %v4431 = vunpack.c.l.b16 %v4395
        %v4432 = vunpack.c.l.b16 %v4396
        %v4433 = vunpack.c.l.b16 %v4397
        %v4434 = vunpack.c.l.b16 %v4398
        %v4435 = vunpack.c.l.b16 %v4399
        %v4436 = vunpack.c.l.b16 %v4400
        %v4437 = vunpack.c.l.b16 %v4401
        %v4438 = vunpack.c.l.b16 %v4402
        %v4439 = vunpack.c.l.b16 %v4403
        %v4440 = vunpack.c.l.b16 %v4404
        %v4441 = vunpack.c.l.b16 %v4405
        %v4442 = vpack.c.b16 %v4427, %v4426
        %v4443 = vpack.c.b16 %v4429, %v4428
        %v4444 = vpack.c.b16 %v4431, %v4430
        %v4445 = vpack.c.b16 %v4433, %v4432
        %v4446 = vpack.c.b16 %v4435, %v4434
        %v4447 = vpack.c.b16 %v4437, %v4436
        %v4448 = vpack.c.b16 %v4439, %v4438
        %v4449 = vpack.c.b16 %v4441, %v4440
        %4458 = vmatprep.subr.bf16.mxu0 0
        %4459 = vmatpush1.bf16.msra.mxu0 %v4442
        %4460 = vmatprep.subr.bf16.mxu0 0
        %4461 = vmatpush1.bf16.msra.mxu0 %v4443
        %4462 = vmatprep.subr.bf16.mxu0 0
        %4463 = vmatpush1.bf16.msra.mxu0 %v4444
        %4464 = vmatprep.subr.bf16.mxu0 0
        %4465 = vmatpush1.bf16.msra.mxu0 %v4445
        %4466 = vmatprep.subr.bf16.mxu0 0
        %4467 = vmatpush1.bf16.msra.mxu0 %v4446
        %4468 = vmatprep.subr.bf16.mxu0 0
        %4469 = vmatpush1.bf16.msra.mxu0 %v4447
        %4470 = vmatprep.subr.bf16.mxu0 0
        %4471 = vmatpush1.bf16.msra.mxu0 %v4448
        %4472 = vmatprep.subr.bf16.mxu0 0
        %4473 = vmatpush1.bf16.msra.mxu0 %v4449
        %4474 = vmatprep.subr.bf16.mxu0 0
        %4475 = vmatpush1.bf16.msra.mxu0 0
        %4476 = vmatprep.subr.bf16.mxu0 0
        %4477 = vmatpush1.bf16.msra.mxu0 0
        %4478 = vmatprep.subr.bf16.mxu0 0
        %4479 = vmatpush1.bf16.msra.mxu0 0
        %4480 = vmatprep.subr.bf16.mxu0 0
        %4481 = vmatpush1.bf16.msra.mxu0 0
        %4482 = vmatprep.subr.bf16.mxu0 0
        %4483 = vmatpush1.bf16.msra.mxu0 0
        %4484 = vmatprep.subr.bf16.mxu0 0
        %4485 = vmatpush1.bf16.msra.mxu0 0
        %4486 = vmatprep.subr.bf16.mxu0 0
        %4487 = vmatpush1.bf16.msra.mxu0 0
        %4488 = vmatprep.subr.bf16.mxu0 0
        %4489 = vmatpush1.bf16.msra.mxu0 0
        %4490 = vmatprep.mubr.bf16.mxu0 0
        %4491 = vmatmul.mubr.bf16.gmra.mrb[0].mxu0 %v4388
        %v4492 = vpop.f32.mrb[0].mxu0
        %v4493 = vadd.f32 %v4409, %v4492
        %v4494 = vpop.f32.mrb[0].mxu0
        %v4495 = vpop.f32.mrb[0].mxu0
        %v4496 = vadd.f32 %v4409, %v4495
        %v4497 = vpop.f32.mrb[0].mxu0
        %4498 = vdwg.mxu0
        %v4499 = vmul.f32 %v3830, 2.0
        %v4500 = vmul.f32 %v3831, 2.0
        %v4501 = vadd.f32 %v4493, %v4499
        %v4502 = vadd.f32 %v4496, %v4500
        %v4503 = vlaneseq
        %v4504 = vshrl.u32 %v4503, 7
        %v4505 = vsub.s32 7, %v4504
        %v4506 = vrot.slane %v3835, %v4505
        %v4507 = vsub.f32 %v4501, %v4506
        %v4508 = vsub.f32 %v4502, %v4506
        %v4509 = vadd.f32 %v3836, 1e-05
        %v4510 = vrsqrt.pop %v4509
        %v4511 = vlaneseq
        %v4512 = vshrl.u32 %v4511, 7
        %v4513 = vsub.s32 0, %v4512
        %v4514 = vrot.slane %v4510, %v4513
        %v4515 = vmul.f32 %v4507, %v4514
        %v4516 = vmul.f32 %v4508, %v4514
        %v4517 = vlaneseq
        %v4518 = vshrl.u32 %v4517, 7
        %v4519 = vsub.s32 1, %v4518
        %v4520 = vrot.slane %v3836, %v4519
        %v4521 = vmul.f32 %v4515, %v4520
        %v4522 = vmul.f32 %v4516, %v4520
        %v4523 = vlaneseq
        %v4524 = vshrl.u32 %v4523, 7
        %v4525 = vsub.s32 2, %v4524
        %v4526 = vrot.slane %v3836, %v4525
        %v4527 = vadd.f32 %v4521, %v4526
        %v4528 = vadd.f32 %v4522, %v4526
        %v4529 = vmax.f32 %v4527, 0.0
        %v4530 = vmax.f32 %v4528, 0.0
        %v4531 = vadd.f32 %v3832, %v4529
        %v4532 = vadd.f32 %v3833, %v4530
        %v4533 = vld [vmem:[%s15] sm:$0xf]
        %v4534 = vadd.f32 %v4531, %v4532
        %v4535 = vrot.slane %v4534, 4
        %v4536 = vadd.f32 %v4534, %v4535
        %v4537 = vrot.slane %v4536, 2
        %v4538 = vadd.f32 %v4536, %v4537
        %v4539 = vrot.slane %v4538, 1
        %v4540 = vadd.f32 %v4538, %v4539
        %v4541 = vmul.f32 %v4540, 0.0625
        %v4542 = vpack.c.bf16 %v4541, %v4541
        %v4543 = vld [vmem:[%s11] sm:$0xf]
        %v4544 = vld [vmem:[%s11 + $0x4] sm:$0xf]
        %v4545 = vld [vmem:[%s11 + $0x8] sm:$0xf]
        %v4546 = vld [vmem:[%s11 + $0xc] sm:$0xf]
        %v4547 = vld [vmem:[%s11 + $0x10] sm:$0xf]
        %v4548 = vld [vmem:[%s11 + $0x14] sm:$0xf]
        %v4549 = vld [vmem:[%s11 + $0x18] sm:$0xf]
        %v4550 = vld [vmem:[%s11 + $0x1c] sm:$0xf]
        %v4551 = vld [vmem:[%s11 + $0x20] sm:$0xf]
        %v4552 = vld [vmem:[%s11 + $0x24] sm:$0xf]
        %v4553 = vld [vmem:[%s11 + $0x28] sm:$0xf]
        %v4554 = vld [vmem:[%s11 + $0x2c] sm:$0xf]
        %v4555 = vld [vmem:[%s11 + $0x30] sm:$0xf]
        %v4556 = vld [vmem:[%s11 + $0x34] sm:$0xf]
        %v4557 = vld [vmem:[%s11 + $0x38] sm:$0xf]
        %v4558 = vld [vmem:[%s11 + $0x3c] sm:$0xf]
        %v4559 = vld [vmem:[%s14] sm:$0x1]
        %v4576 = vunpack.c.l.b16 %v4543
        %v4577 = vunpack.c.l.b16 %v4544
        %v4578 = vunpack.c.l.b16 %v4545
        %v4579 = vunpack.c.l.b16 %v4546
        %v4580 = vunpack.c.l.b16 %v4547
        %v4581 = vunpack.c.l.b16 %v4548
        %v4582 = vunpack.c.l.b16 %v4549
        %v4583 = vunpack.c.l.b16 %v4550
        %v4584 = vunpack.c.l.b16 %v4551
        %v4585 = vunpack.c.l.b16 %v4552
        %v4586 = vunpack.c.l.b16 %v4553
        %v4587 = vunpack.c.l.b16 %v4554
        %v4588 = vunpack.c.l.b16 %v4555
        %v4589 = vunpack.c.l.b16 %v4556
        %v4590 = vunpack.c.l.b16 %v4557
        %v4591 = vunpack.c.l.b16 %v4558
        %v4592 = vpack.c.b16 %v4577, %v4576
        %v4593 = vpack.c.b16 %v4579, %v4578
        %v4594 = vpack.c.b16 %v4581, %v4580
        %v4595 = vpack.c.b16 %v4583, %v4582
        %v4596 = vpack.c.b16 %v4585, %v4584
        %v4597 = vpack.c.b16 %v4587, %v4586
        %v4598 = vpack.c.b16 %v4589, %v4588
        %v4599 = vpack.c.b16 %v4591, %v4590
        %4608 = vmatprep.subr.bf16.mxu0 0
        %4609 = vmatpush1.bf16.msra.mxu0 %v4592
        %4610 = vmatprep.subr.bf16.mxu0 0
        %4611 = vmatpush1.bf16.msra.mxu0 %v4593
        %4612 = vmatprep.subr.bf16.mxu0 0
        %4613 = vmatpush1.bf16.msra.mxu0 %v4594
        %4614 = vmatprep.subr.bf16.mxu0 0
        %4615 = vmatpush1.bf16.msra.mxu0 %v4595
        %4616 = vmatprep.subr.bf16.mxu0 0
        %4617 = vmatpush1.bf16.msra.mxu0 %v4596
        %4618 = vmatprep.subr.bf16.mxu0 0
        %4619 = vmatpush1.bf16.msra.mxu0 %v4597
        %4620 = vmatprep.subr.bf16.mxu0 0
        %4621 = vmatpush1.bf16.msra.mxu0 %v4598
        %4622 = vmatprep.subr.bf16.mxu0 0
        %4623 = vmatpush1.bf16.msra.mxu0 %v4599
        %4624 = vmatprep.subr.bf16.mxu0 0
        %4625 = vmatpush1.bf16.msra.mxu0 0
        %4626 = vmatprep.subr.bf16.mxu0 0
        %4627 = vmatpush1.bf16.msra.mxu0 0
        %4628 = vmatprep.subr.bf16.mxu0 0
        %4629 = vmatpush1.bf16.msra.mxu0 0
        %4630 = vmatprep.subr.bf16.mxu0 0
        %4631 = vmatpush1.bf16.msra.mxu0 0
        %4632 = vmatprep.subr.bf16.mxu0 0
        %4633 = vmatpush1.bf16.msra.mxu0 0
        %4634 = vmatprep.subr.bf16.mxu0 0
        %4635 = vmatpush1.bf16.msra.mxu0 0
        %4636 = vmatprep.subr.bf16.mxu0 0
        %4637 = vmatpush1.bf16.msra.mxu0 0
        %4638 = vmatprep.subr.bf16.mxu0 0
        %4639 = vmatpush1.bf16.msra.mxu0 0
        %4640 = vmatprep.mubr.bf16.mxu0 0
        %4641 = vmatmul.mubr.bf16.gmra.mrb[0].mxu0 %v4542
        %v4642 = vpop.f32.mrb[0].mxu0
        %v4643 = vadd.f32 %v4559, %v4642
        %v4644 = vpop.f32.mrb[0].mxu0
        %v4645 = vpop.f32.mrb[0].mxu0
        %v4646 = vpop.f32.mrb[0].mxu0
        %4647 = vdwg.mxu0
        %v4648 = vmax.f32 %v4643, 0.0
        %v4649 = vpack.c.bf16 %v4648, %v4648
        %v4650 = vld [vmem:[%s12] sm:$0xf]
        %v4651 = vld [vmem:[%s12 + $0x4] sm:$0xf]
        %v4652 = vld [vmem:[%s12 + $0x8] sm:$0xf]
        %v4653 = vld [vmem:[%s12 + $0xc] sm:$0xf]
        %v4654 = vld [vmem:[%s12 + $0x10] sm:$0xf]
        %v4655 = vld [vmem:[%s12 + $0x14] sm:$0xf]
        %v4656 = vld [vmem:[%s12 + $0x18] sm:$0xf]
        %v4657 = vld [vmem:[%s12 + $0x1c] sm:$0xf]
        %v4658 = vld [vmem:[%s12 + $0x20] sm:$0xf]
        %v4659 = vld [vmem:[%s12 + $0x24] sm:$0xf]
        %v4660 = vld [vmem:[%s12 + $0x28] sm:$0xf]
        %v4661 = vld [vmem:[%s12 + $0x2c] sm:$0xf]
        %v4662 = vld [vmem:[%s12 + $0x30] sm:$0xf]
        %v4663 = vld [vmem:[%s12 + $0x34] sm:$0xf]
        %v4664 = vld [vmem:[%s12 + $0x38] sm:$0xf]
        %v4665 = vld [vmem:[%s12 + $0x3c] sm:$0xf]
        %v4682 = vunpack.c.l.b16 %v4650
        %v4683 = vunpack.c.l.b16 %v4651
        %v4684 = vunpack.c.l.b16 %v4652
        %v4685 = vunpack.c.l.b16 %v4653
        %v4686 = vunpack.c.l.b16 %v4654
        %v4687 = vunpack.c.l.b16 %v4655
        %v4688 = vunpack.c.l.b16 %v4656
        %v4689 = vunpack.c.l.b16 %v4657
        %v4690 = vunpack.c.l.b16 %v4658
        %v4691 = vunpack.c.l.b16 %v4659
        %v4692 = vunpack.c.l.b16 %v4660
        %v4693 = vunpack.c.l.b16 %v4661
        %v4694 = vunpack.c.l.b16 %v4662
        %v4695 = vunpack.c.l.b16 %v4663
        %v4696 = vunpack.c.l.b16 %v4664
        %v4697 = vunpack.c.l.b16 %v4665
        %v4698 = vpack.c.b16 %v4683, %v4682
        %v4699 = vpack.c.b16 %v4685, %v4684
        %v4700 = vpack.c.b16 %v4687, %v4686
        %v4701 = vpack.c.b16 %v4689, %v4688
        %v4702 = vpack.c.b16 %v4691, %v4690
        %v4703 = vpack.c.b16 %v4693, %v4692
        %v4704 = vpack.c.b16 %v4695, %v4694
        %v4705 = vpack.c.b16 %v4697, %v4696
        %4714 = vmatprep.subr.bf16.mxu0 0
        %4715 = vmatpush1.bf16.msra.mxu0 %v4698
        %4716 = vmatprep.subr.bf16.mxu0 0
        %4717 = vmatpush1.bf16.msra.mxu0 %v4699
        %4718 = vmatprep.subr.bf16.mxu0 0
        %4719 = vmatpush1.bf16.msra.mxu0 %v4700
        %4720 = vmatprep.subr.bf16.mxu0 0
        %4721 = vmatpush1.bf16.msra.mxu0 %v4701
        %4722 = vmatprep.subr.bf16.mxu0 0
        %4723 = vmatpush1.bf16.msra.mxu0 %v4702
        %4724 = vmatprep.subr.bf16.mxu0 0
        %4725 = vmatpush1.bf16.msra.mxu0 %v4703
        %4726 = vmatprep.subr.bf16.mxu0 0
        %4727 = vmatpush1.bf16.msra.mxu0 %v4704
        %4728 = vmatprep.subr.bf16.mxu0 0
        %4729 = vmatpush1.bf16.msra.mxu0 %v4705
        %4730 = vmatprep.subr.bf16.mxu0 0
        %4731 = vmatpush1.bf16.msra.mxu0 0
        %4732 = vmatprep.subr.bf16.mxu0 0
        %4733 = vmatpush1.bf16.msra.mxu0 0
        %4734 = vmatprep.subr.bf16.mxu0 0
        %4735 = vmatpush1.bf16.msra.mxu0 0
        %4736 = vmatprep.subr.bf16.mxu0 0
        %4737 = vmatpush1.bf16.msra.mxu0 0
        %4738 = vmatprep.subr.bf16.mxu0 0
        %4739 = vmatpush1.bf16.msra.mxu0 0
        %4740 = vmatprep.subr.bf16.mxu0 0
        %4741 = vmatpush1.bf16.msra.mxu0 0
        %4742 = vmatprep.subr.bf16.mxu0 0
        %4743 = vmatpush1.bf16.msra.mxu0 0
        %4744 = vmatprep.subr.bf16.mxu0 0
        %4745 = vmatpush1.bf16.msra.mxu0 0
        %4746 = vmatprep.mubr.bf16.mxu0 0
        %4747 = vmatmul.mubr.bf16.gmra.mrb[0].mxu0 %v4649
        %v4748 = vpop.f32.mrb[0].mxu0
        %v4749 = vadd.f32 %v4533, %v4748
        %v4750 = vpop.f32.mrb[0].mxu0
        %v4751 = vpop.f32.mrb[0].mxu0
        %v4752 = vpop.f32.mrb[0].mxu0
        %4753 = vdwg.mxu0
        %v4754 = vpack.c.bf16 %v4749, %v4749
        %v4755 = vld [vmem:[%s13] sm:$0xf]
        %v4756 = vld [vmem:[%s13 + $0x4] sm:$0xf]
        %v4757 = vld [vmem:[%s13 + $0x8] sm:$0xf]
        %v4758 = vld [vmem:[%s13 + $0xc] sm:$0xf]
        %v4759 = vld [vmem:[%s13 + $0x10] sm:$0xf]
        %v4760 = vld [vmem:[%s13 + $0x14] sm:$0xf]
        %v4761 = vld [vmem:[%s13 + $0x18] sm:$0xf]
        %v4762 = vld [vmem:[%s13 + $0x1c] sm:$0xf]
        %v4763 = vld [vmem:[%s13 + $0x20] sm:$0xf]
        %v4764 = vld [vmem:[%s13 + $0x24] sm:$0xf]
        %v4765 = vld [vmem:[%s13 + $0x28] sm:$0xf]
        %v4766 = vld [vmem:[%s13 + $0x2c] sm:$0xf]
        %v4767 = vld [vmem:[%s13 + $0x30] sm:$0xf]
        %v4768 = vld [vmem:[%s13 + $0x34] sm:$0xf]
        %v4769 = vld [vmem:[%s13 + $0x38] sm:$0xf]
        %v4770 = vld [vmem:[%s13 + $0x3c] sm:$0xf]
        %v4787 = vunpack.c.l.b16 %v4755
        %v4788 = vunpack.c.l.b16 %v4756
        %v4789 = vunpack.c.l.b16 %v4757
        %v4790 = vunpack.c.l.b16 %v4758
        %v4791 = vunpack.c.l.b16 %v4759
        %v4792 = vunpack.c.l.b16 %v4760
        %v4793 = vunpack.c.l.b16 %v4761
        %v4794 = vunpack.c.l.b16 %v4762
        %v4795 = vunpack.c.l.b16 %v4763
        %v4796 = vunpack.c.l.b16 %v4764
        %v4797 = vunpack.c.l.b16 %v4765
        %v4798 = vunpack.c.l.b16 %v4766
        %v4799 = vunpack.c.l.b16 %v4767
        %v4800 = vunpack.c.l.b16 %v4768
        %v4801 = vunpack.c.l.b16 %v4769
        %v4802 = vunpack.c.l.b16 %v4770
        %v4803 = vpack.c.b16 %v4788, %v4787
        %v4804 = vpack.c.b16 %v4790, %v4789
        %v4805 = vpack.c.b16 %v4792, %v4791
        %v4806 = vpack.c.b16 %v4794, %v4793
        %v4807 = vpack.c.b16 %v4796, %v4795
        %v4808 = vpack.c.b16 %v4798, %v4797
        %v4809 = vpack.c.b16 %v4800, %v4799
        %v4810 = vpack.c.b16 %v4802, %v4801
        %v4820 = vrot.slane %v4533, 1
        %4822 = vmatprep.subr.bf16.mxu0 0
        %4823 = vmatpush1.bf16.msra.mxu0 %v4803
        %4824 = vmatprep.subr.bf16.mxu0 0
        %4825 = vmatpush1.bf16.msra.mxu0 %v4804
        %4826 = vmatprep.subr.bf16.mxu0 0
        %4827 = vmatpush1.bf16.msra.mxu0 %v4805
        %4828 = vmatprep.subr.bf16.mxu0 0
        %4829 = vmatpush1.bf16.msra.mxu0 %v4806
        %4830 = vmatprep.subr.bf16.mxu0 0
        %4831 = vmatpush1.bf16.msra.mxu0 %v4807
        %4832 = vmatprep.subr.bf16.mxu0 0
        %4833 = vmatpush1.bf16.msra.mxu0 %v4808
        %4834 = vmatprep.subr.bf16.mxu0 0
        %4835 = vmatpush1.bf16.msra.mxu0 %v4809
        %4836 = vmatprep.subr.bf16.mxu0 0
        %4837 = vmatpush1.bf16.msra.mxu0 %v4810
        %4838 = vmatprep.subr.bf16.mxu0 0
        %4839 = vmatpush1.bf16.msra.mxu0 0
        %4840 = vmatprep.subr.bf16.mxu0 0
        %4841 = vmatpush1.bf16.msra.mxu0 0
        %4842 = vmatprep.subr.bf16.mxu0 0
        %4843 = vmatpush1.bf16.msra.mxu0 0
        %4844 = vmatprep.subr.bf16.mxu0 0
        %4845 = vmatpush1.bf16.msra.mxu0 0
        %4846 = vmatprep.subr.bf16.mxu0 0
        %4847 = vmatpush1.bf16.msra.mxu0 0
        %4848 = vmatprep.subr.bf16.mxu0 0
        %4849 = vmatpush1.bf16.msra.mxu0 0
        %4850 = vmatprep.subr.bf16.mxu0 0
        %4851 = vmatpush1.bf16.msra.mxu0 0
        %4852 = vmatprep.subr.bf16.mxu0 0
        %4853 = vmatpush1.bf16.msra.mxu0 0
        %4854 = vmatprep.mubr.bf16.mxu0 0
        %4855 = vmatmul.mubr.bf16.gmra.mrb[0].mxu0 %v4754
        %v4856 = vpop.f32.mrb[0].mxu0
        %v4857 = vadd.f32 %v4820, %v4856
        %v4858 = vpop.f32.mrb[0].mxu0
        %v4859 = vpop.f32.mrb[0].mxu0
        %v4860 = vpop.f32.mrb[0].mxu0
        %4861 = vdwg.mxu0
        %vm4862 = vcmask 1040384
        %v4863 = vsel %vm4862, %v4857, 0.0
        %4864 = vadd.xlane.f32.xlu0 %v4863
        %v4865 = vpop.xlane.xlu0 %4864
        %v4866 = vmul.f32 %v4865, 0.015625
        %v4867 = vsub.f32 %v4857, %v4866
        %v4868 = vmul.f32 %v4867, %v581
        %v4869 = vmul.f32 %v4868, %v4868
        %v4870 = vsel %vm4862, %v4869, 0.0
        %4871 = vadd.xlane.f32.xlu0 %v4870
        %v4872 = vpop.xlane.xlu0 %4871
        %v4873 = vmul.f32 %v4872, 0.015625
        %v4874 = vadd.f32 %v4873, 1e-05
        %v4875 = vrsqrt.pop %v4874
        %v4876 = vmul.f32 %v4868, %v4875
        %v4877 = vrot.slane %v4533, 2
        %v4879 = vmul.f32 %v4876, %v4877
        %v4880 = vrot.slane %v4533, 3
        %v4882 = vadd.f32 %v4879, %v4880
        %v4883 = vmax.f32 %v4882, 0.0
        %4884 = vst [vmem:[%s554] sm:$0x1] %v4883
        %s4885 = sand.u32 %s394, 1
        %s4886 = scalar_lea.sflag [#allocation3], %s4885
        %s4887 = sand.u32 %s394, 1
        %s4888 = scalar_lea.vmem [#allocation2], %s4887
        // Predicated region
        $region85: #{gin_forward.1} parent=83 // pred_check
          %p4889 = pneg %p404
        $region86: #{gin_forward.1} parent=83 // pred_check_branch
          %4891 = sbr.rel (%p4889) target = $region88
        $region87: #{gin_forward.1} parent=83 // pred_region
          %s4893 = ssub.s32 16, 16
          %4894 = vsyncadd %s4886, %s4893
          %s4895 = smul.addr %s30, 16
          %s4896 = scalar_lea.hbm %s16, %s4895
          %s4898 = sshll.u32 %s4888, 4
          %s4899 = int_to_ptr.vmem [resolvable:$true] %s4898
          %4901 = dma.vmem_to_hbm [thread:$0]  %s4899, 16, %s4896, %s4886
        $region88: #{gin_forward.1} parent=83 // pred_fallthru
          _
      $region84: #{gin_forward.1} parent=5 // pred_fallthru
        _
      %p4902 = scmp.le.s32.totalorder 2, %s25
      // Predicated region
      $region89: #{gin_forward.1} parent=5 // pred_check
        %p4903 = pneg %p4902
      $region90: #{gin_forward.1} parent=5 // pred_check_branch
        %4905 = sbr.rel (%p4903) target = $region92
      $region91: #{gin_forward.1} parent=5 // pred_region
        %s4906 = ssub.s32 %s25, 2
        // Predicated region
        $region93: #{gin_forward.1} parent=91 // pred_check
          %p4907 = pneg %p410
        $region94: #{gin_forward.1} parent=91 // pred_check_branch
          %4909 = sbr.rel (%p4907) target = $region96
        $region95: #{gin_forward.1} parent=91 // pred_region
          %s4910 = sand.u32 %s395, 1
          %s4911 = scalar_lea.sflag [#allocation3], %s4910
          %s4912 = sand.u32 %s395, 1
          %s4913 = scalar_lea.vmem [#allocation2], %s4912
          %4914 = dma.done %s4911, 16
        $region96: #{gin_forward.1} parent=91 // pred_fallthru
          _
      $region92: #{gin_forward.1} parent=5 // pred_fallthru
        _
    $region6: #{gin_forward.1} parent=1 // loop_footer
      %s29 = sadd.s32 1, %s25
    $region7: #{gin_forward.1} parent=1 // loop_footer_branch
      %24 = sbr.rel target = $region3
    $region8: #{gin_forward.1} parent=1 // loop_exit
      _
    %4915 = vsyncpa [#allocation3], 1
    %s4916 = scalar_lea.sflag [#allocation3], 1
    %4917 = vsyncpa %s4916, 1

</llo_original>
